<compile_context>
chip_gen: v6e
topology: v6e:2x2x1
jax: 0.10.0
libtpu: 0.0.40
codegen_flags: <defaults>
</compile_context>

<pallas_src>
import functools

import jax
import jax.numpy as jnp
from jax.experimental import pallas as pl
from jax.experimental.pallas import tpu as pltpu

NUM_TARGET = 3
LN_EPS = 1e-5


# ---------------------------------------------------------------- kernels ---
def _layernorm(x, gamma, beta):
    mean = jnp.mean(x, axis=-1, keepdims=True)
    var = jnp.mean((x - mean) ** 2, axis=-1, keepdims=True)
    return (x - mean) * jax.lax.rsqrt(var + LN_EPS) * gamma + beta


def _decoder_layer_compute(tgt, mem, wq, bq, wk, bk, wv, bv, wo, bo,
                           g1, be1, w1, bb1, w2, bb2, g2, be2,
                           *, num_heads, dim_k):
    """One decoder layer for a single batch element.

    tgt: (St, D) f32, mem: (Sm, D) f32.  Matmul weights are bf16 (f32 accum);
    biases / LayerNorm params are f32.
    """
    St, D = tgt.shape
    tgt_bf = tgt.astype(jnp.bfloat16)
    mem_bf = mem.astype(jnp.bfloat16)

    # Fused full-width Q/K/V projections — one MXU matmul each.
    q = jnp.dot(tgt_bf, wq, preferred_element_type=jnp.float32) + bq   # (St, H*dk)
    k = jnp.dot(mem_bf, wk, preferred_element_type=jnp.float32) + bk   # (Sm, H*dk)
    v = jnp.dot(mem_bf, wv, preferred_element_type=jnp.float32) + bv   # (Sm, H*dk)

    # Pre-scale q (cheaper than dividing the (St, Sm) score matrix).
    q = q * jnp.float32(1.0 / (dim_k ** 0.5))

    # Per-head attention over contiguous lane slices; accumulate head @ Wo-slice
    # (no concatenate, every output matmul has full-width N = D).
    acc = jnp.zeros((St, D), jnp.float32)
    for h in range(num_heads):
        sl = slice(h * dim_k, (h + 1) * dim_k)
        qh = q[:, sl].astype(jnp.bfloat16)                 # (St, dk)
        kh = k[:, sl].astype(jnp.bfloat16)                 # (Sm, dk)
        vh = v[:, sl].astype(jnp.bfloat16)                 # (Sm, dk)
        s = jnp.einsum("qd,kd->qk", qh, kh,
                       preferred_element_type=jnp.float32)  # (St, Sm)
        s = s - jnp.max(s, axis=-1, keepdims=True)
        p = jnp.exp(s)
        p = p * pl.reciprocal(jnp.sum(p, axis=-1, keepdims=True), approx=True)
        ctx = jnp.dot(p.astype(jnp.bfloat16), vh,
                      preferred_element_type=jnp.float32)   # (St, dk)
        acc = acc + jnp.dot(ctx.astype(jnp.bfloat16), wo[sl, :],
                            preferred_element_type=jnp.float32)  # (St, D)

    # Residual + LayerNorm (f32).  Dropout == identity (eval).
    x1 = _layernorm(tgt + acc + bo, g1, be1)

    # Feed-forward: Linear -> ReLU -> Linear, residual + LayerNorm.
    hdn = jnp.dot(x1.astype(jnp.bfloat16), w1,
                  preferred_element_type=jnp.float32) + bb1
    hdn = jnp.maximum(hdn, 0.0)
    f = jnp.dot(hdn.astype(jnp.bfloat16), w2,
                preferred_element_type=jnp.float32) + bb2
    return _layernorm(x1 + f, g2, be2)


def decoder_layer_kernel(tgt_ref, mem_ref, wq_ref, bq_ref, wk_ref, bk_ref,
                         wv_ref, bv_ref, wo_ref, bo_ref, g1_ref, be1_ref,
                         w1_ref, bb1_ref, w2_ref, bb2_ref, g2_ref, be2_ref,
                         out_ref, *, num_heads, dim_k):
    out_ref[0] = _decoder_layer_compute(
        tgt_ref[0], mem_ref[0],
        wq_ref[...], bq_ref[...], wk_ref[...], bk_ref[...],
        wv_ref[...], bv_ref[...], wo_ref[...], bo_ref[...],
        g1_ref[...], be1_ref[...], w1_ref[...], bb1_ref[...],
        w2_ref[...], bb2_ref[...], g2_ref[...], be2_ref[...],
        num_heads=num_heads, dim_k=dim_k)


def decoder_last_layer_kernel(tgt_ref, mem_ref, wq_ref, bq_ref, wk_ref, bk_ref,
                              wv_ref, bv_ref, wo_ref, bo_ref, g1_ref, be1_ref,
                              w1_ref, bb1_ref, w2_ref, bb2_ref, g2_ref, be2_ref,
                              wout_ref, bout_ref, out_ref, *, num_heads, dim_k):
    x = _decoder_layer_compute(
        tgt_ref[0], mem_ref[0],
        wq_ref[...], bq_ref[...], wk_ref[...], bk_ref[...],
        wv_ref[...], bv_ref[...], wo_ref[...], bo_ref[...],
        g1_ref[...], be1_ref[...], w1_ref[...], bb1_ref[...],
        w2_ref[...], bb2_ref[...], g2_ref[...], be2_ref[...],
        num_heads=num_heads, dim_k=dim_k)
    # Final linear_out fused into the last layer (saves one kernel launch and
    # one HBM round trip of the activations).
    out_ref[0] = (jnp.dot(x.astype(jnp.bfloat16), wout_ref[...],
                          preferred_element_type=jnp.float32) + bout_ref[...])


# --------------------------------------------------------------- wrappers ---
def _const_spec(arr):
    nd = arr.ndim
    return pl.BlockSpec(arr.shape, lambda b, _nd=nd: (0,) * _nd)


_LAYER_KEYS = ("wq", "bq", "wk", "bk", "wv", "bv", "wo", "bo",
               "ln1_g", "ln1_b", "w1", "b1", "w2", "b2", "ln2_g", "ln2_b")


def decoder_layer(tgt, mem, lp, *, num_heads, dim_k, wout=None, bout=None):
    B, St, D = tgt.shape
    Sm = mem.shape[1]
    weights = [lp[k] for k in _LAYER_KEYS]
    if wout is not None:
        weights += [wout, bout]
        kern = decoder_last_layer_kernel
        out_dim = wout.shape[1]
    else:
        kern = decoder_layer_kernel
        out_dim = D

    in_specs = [pl.BlockSpec((1, St, D), lambda b: (b, 0, 0)),
                pl.BlockSpec((1, Sm, D), lambda b: (b, 0, 0))]
    in_specs += [_const_spec(w) for w in weights]

    return pl.pallas_call(
        functools.partial(kern, num_heads=num_heads, dim_k=dim_k),
        out_shape=jax.ShapeDtypeStruct((B, St, out_dim), jnp.float32),
        grid=(B,),
        in_specs=in_specs,
        out_specs=pl.BlockSpec((1, St, out_dim), lambda b: (b, 0, 0)),
        compiler_params=pltpu.CompilerParams(
            dimension_semantics=("parallel",),
            vmem_limit_bytes=32 * 1024 * 1024),
    )(tgt, mem, *weights)


def transformer_decoder_forward(tgt, memory, params, *, num_heads, output_size):
    dim_k = params["layers"][0]["wq"].shape[1] // num_heads
    x = tgt
    n_layers = len(params["layers"])
    for i, lp in enumerate(params["layers"]):
        if i == n_layers - 1:
            x = decoder_layer(x, memory, lp, num_heads=num_heads, dim_k=dim_k,
                              wout=params["wout"], bout=params["bout"])
        else:
            x = decoder_layer(x, memory, lp, num_heads=num_heads, dim_k=dim_k)
    B = tgt.shape[0]
    out = x.reshape(NUM_TARGET, B, -1, output_size)   # PyTorch .view
    return jnp.transpose(out, (1, 2, 0, 3))           # .permute(1, 2, 0, 3)


# --------------------------------------------------------- parameter init ---
def init_params(key, *, num_layers, dim_model, num_heads, dim_ff, output_size):
    dim_k = max(dim_model // num_heads, 1)

    def lin(k, fan_in, fan_out):
        # PyTorch nn.Linear default init; weight stored pre-transposed
        # (in, out) and cast to bf16 for the MXU, bias kept f32.
        s = 1.0 / (fan_in ** 0.5)
        kw, kb = jax.random.split(k)
        w = jax.random.uniform(kw, (fan_in, fan_out), jnp.float32, -s, s)
        b = jax.random.uniform(kb, (1, fan_out), jnp.float32, -s, s)
        return w.astype(jnp.bfloat16), b

    def heads_fused(k, fan_in, d_head):
        # H independent nn.Linear(fan_in, d_head) fused into (fan_in, H*d_head).
        ws, bs = [], []
        for kk in jax.random.split(k, num_heads):
            w, b = lin(kk, fan_in, d_head)
            ws.append(w)
            bs.append(b)
        return jnp.concatenate(ws, axis=1), jnp.concatenate(bs, axis=1)

    layers = []
    for _ in range(num_layers):
        key, k_q, k_k, k_v, k_o, k_1, k_2 = jax.random.split(key, 7)
        wq, bq = heads_fused(k_q, dim_model, dim_k)
        wk, bk = heads_fused(k_k, dim_model, dim_k)
        wv, bv = heads_fused(k_v, dim_model, dim_k)
        wo, bo = lin(k_o, num_heads * dim_k, dim_model)
        w1, b1 = lin(k_1, dim_model, dim_ff)
        w2, b2 = lin(k_2, dim_ff, dim_model)
        layers.append({
            "wq": wq, "bq": bq, "wk": wk, "bk": bk, "wv": wv, "bv": bv,
            "wo": wo, "bo": bo,
            "ln1_g": jnp.ones((1, dim_model), jnp.float32),
            "ln1_b": jnp.zeros((1, dim_model), jnp.float32),
            "w1": w1, "b1": b1, "w2": w2, "b2": b2,
            "ln2_g": jnp.ones((1, dim_model), jnp.float32),
            "ln2_b": jnp.zeros((1, dim_model), jnp.float32),
        })
    key, k_out = jax.random.split(key)
    wout, bout = lin(k_out, dim_model, output_size)
    return {"layers": layers, "wout": wout, "bout": bout}


# ------------------------------------------------------ pure-JAX reference ---
def _ref_forward(tgt, memory, params, *, num_heads, output_size):
    """Pure-JAX reference mirroring the kernel math (bf16 matmuls, f32 accum)."""
    def ln(x, g, b):
        m = jnp.mean(x, axis=-1, keepdims=True)
        v = jnp.mean((x - m) ** 2, axis=-1, keepdims=True)
        return (x - m) * jax.lax.rsqrt(v + LN_EPS) * g + b

    dk = params["layers"][0]["wq"].shape[1] // num_heads
    x = tgt
    for lp in params["layers"]:
        xb = x.astype(jnp.bfloat16)
        mb = memory.astype(jnp.bfloat16)
        q = jnp.dot(xb, lp["wq"], preferred_element_type=jnp.float32) + lp["bq"]
        k = jnp.dot(mb, lp["wk"], preferred_element_type=jnp.float32) + lp["bk"]
        v = jnp.dot(mb, lp["wv"], preferred_element_type=jnp.float32) + lp["bv"]
        q = q * (1.0 / (dk ** 0.5))
        acc = jnp.zeros(x.shape, jnp.float32)
        for h in range(num_heads):
            sl = slice(h * dk, (h + 1) * dk)
            qh = q[..., sl].astype(jnp.bfloat16)
            kh = k[..., sl].astype(jnp.bfloat16)
            vh = v[..., sl].astype(jnp.bfloat16)
            s = jnp.einsum("bqd,bkd->bqk", qh, kh,
                           preferred_element_type=jnp.float32)
            p = jax.nn.softmax(s, axis=-1)
            ctx = jnp.einsum("bqk,bkd->bqd", p.astype(jnp.bfloat16), vh,
                             preferred_element_type=jnp.float32)
            acc = acc + jnp.dot(ctx.astype(jnp.bfloat16), lp["wo"][sl, :],
                                preferred_element_type=jnp.float32)
        x = ln(x + acc + lp["bo"], lp["ln1_g"], lp["ln1_b"])
        hdn = jnp.dot(x.astype(jnp.bfloat16), lp["w1"],
                      preferred_element_type=jnp.float32) + lp["b1"]
        hdn = jnp.maximum(hdn, 0.0)
        f = jnp.dot(hdn.astype(jnp.bfloat16), lp["w2"],
                    preferred_element_type=jnp.float32) + lp["b2"]
        x = ln(x + f, lp["ln2_g"], lp["ln2_b"])
    out = jnp.dot(x.astype(jnp.bfloat16), params["wout"],
                  preferred_element_type=jnp.float32) + params["bout"]
    out = out.reshape(NUM_TARGET, tgt.shape[0], -1, output_size)
    return jnp.transpose(out, (1, 2, 0, 3))


# --------------------------------------------------------------------------
if __name__ == "__main__":
    B, S_TGT, S_MEM = 2, 6, 8           # S_TGT divisible by num_target=3
    DIM_MODEL, NUM_HEADS, DIM_FF = 128, 4, 256   # lane-dense (multiples of 128)
    NUM_LAYERS, OUTPUT_SIZE = 2, 4

    key = jax.random.PRNGKey(0)
    key, k_tgt, k_mem, k_par = jax.random.split(key, 4)
    tgt = jax.random.normal(k_tgt, (B, S_TGT, DIM_MODEL), jnp.float32)
    memory = jax.random.normal(k_mem, (B, S_MEM, DIM_MODEL), jnp.float32)
    params = init_params(k_par, num_layers=NUM_LAYERS, dim_model=DIM_MODEL,
                         num_heads=NUM_HEADS, dim_ff=DIM_FF,
                         output_size=OUTPUT_SIZE)

    fwd = jax.jit(functools.partial(transformer_decoder_forward,
                                    num_heads=NUM_HEADS,
                                    output_size=OUTPUT_SIZE))
    out = jax.block_until_ready(fwd(tgt, memory, params))

    ref = _ref_forward(tgt, memory, params,
                       num_heads=NUM_HEADS, output_size=OUTPUT_SIZE)
    assert out.shape == (B, S_TGT // NUM_TARGET, NUM_TARGET, OUTPUT_SIZE), out.shape
    max_err = float(jnp.max(jnp.abs(out - ref)))
    assert jnp.allclose(out, ref, atol=1e-2, rtol=1e-2), f"mismatch: {max_err}"

    print("KERNEL_OK")
</pallas_src>

<mosaic_0001>
module attributes {stable_mosaic.version = 11 : i64} {
  func.func @decoder_last_layer_kernel(%arg0: i32, %arg1: memref<1x6x128xf32, #tpu.memory_space<vmem>>, %arg2: memref<1x8x128xf32, #tpu.memory_space<vmem>>, %arg3: memref<128x128xbf16, #tpu.memory_space<vmem>>, %arg4: memref<1x128xf32, #tpu.memory_space<vmem>>, %arg5: memref<128x128xbf16, #tpu.memory_space<vmem>>, %arg6: memref<1x128xf32, #tpu.memory_space<vmem>>, %arg7: memref<128x128xbf16, #tpu.memory_space<vmem>>, %arg8: memref<1x128xf32, #tpu.memory_space<vmem>>, %arg9: memref<128x128xbf16, #tpu.memory_space<vmem>>, %arg10: memref<1x128xf32, #tpu.memory_space<vmem>>, %arg11: memref<1x128xf32, #tpu.memory_space<vmem>>, %arg12: memref<1x128xf32, #tpu.memory_space<vmem>>, %arg13: memref<128x256xbf16, #tpu.memory_space<vmem>>, %arg14: memref<1x256xf32, #tpu.memory_space<vmem>>, %arg15: memref<256x128xbf16, #tpu.memory_space<vmem>>, %arg16: memref<1x128xf32, #tpu.memory_space<vmem>>, %arg17: memref<1x128xf32, #tpu.memory_space<vmem>>, %arg18: memref<1x128xf32, #tpu.memory_space<vmem>>, %arg19: memref<128x4xbf16, #tpu.memory_space<vmem>>, %arg20: memref<1x4xf32, #tpu.memory_space<vmem>>, %arg21: memref<1x6x4xf32, #tpu.memory_space<vmem>>) attributes {dimension_semantics = [#tpu.dimension_semantics<parallel>], iteration_bounds = array<i64: 2>, scalar_prefetch = 0 : i64, scratch_operands = 0 : i64, tpu.core_type = #tpu.core_type<tc>, window_params = [{transform_indices = @transform_0, window_bounds = array<i64: 1, 6, 128>}, {transform_indices = @transform_1, window_bounds = array<i64: 1, 8, 128>}, {pipeline_mode = #tpu.pipeline_mode<synchronous>, transform_indices = @transform_2, window_bounds = array<i64: 128, 128>}, {pipeline_mode = #tpu.pipeline_mode<synchronous>, transform_indices = @transform_3, window_bounds = array<i64: 1, 128>}, {pipeline_mode = #tpu.pipeline_mode<synchronous>, transform_indices = @transform_4, window_bounds = array<i64: 128, 128>}, {pipeline_mode = #tpu.pipeline_mode<synchronous>, transform_indices = @transform_5, window_bounds = array<i64: 1, 128>}, {pipeline_mode = #tpu.pipeline_mode<synchronous>, transform_indices = @transform_6, window_bounds = array<i64: 128, 128>}, {pipeline_mode = #tpu.pipeline_mode<synchronous>, transform_indices = @transform_7, window_bounds = array<i64: 1, 128>}, {pipeline_mode = #tpu.pipeline_mode<synchronous>, transform_indices = @transform_8, window_bounds = array<i64: 128, 128>}, {pipeline_mode = #tpu.pipeline_mode<synchronous>, transform_indices = @transform_9, window_bounds = array<i64: 1, 128>}, {pipeline_mode = #tpu.pipeline_mode<synchronous>, transform_indices = @transform_10, window_bounds = array<i64: 1, 128>}, {pipeline_mode = #tpu.pipeline_mode<synchronous>, transform_indices = @transform_11, window_bounds = array<i64: 1, 128>}, {pipeline_mode = #tpu.pipeline_mode<synchronous>, transform_indices = @transform_12, window_bounds = array<i64: 128, 256>}, {pipeline_mode = #tpu.pipeline_mode<synchronous>, transform_indices = @transform_13, window_bounds = array<i64: 1, 256>}, {pipeline_mode = #tpu.pipeline_mode<synchronous>, transform_indices = @transform_14, window_bounds = array<i64: 256, 128>}, {pipeline_mode = #tpu.pipeline_mode<synchronous>, transform_indices = @transform_15, window_bounds = array<i64: 1, 128>}, {pipeline_mode = #tpu.pipeline_mode<synchronous>, transform_indices = @transform_16, window_bounds = array<i64: 1, 128>}, {pipeline_mode = #tpu.pipeline_mode<synchronous>, transform_indices = @transform_17, window_bounds = array<i64: 1, 128>}, {pipeline_mode = #tpu.pipeline_mode<synchronous>, transform_indices = @transform_18, window_bounds = array<i64: 128, 4>}, {pipeline_mode = #tpu.pipeline_mode<synchronous>, transform_indices = @transform_19, window_bounds = array<i64: 1, 4>}, {transform_indices = @transform_20, window_bounds = array<i64: 1, 6, 4>}]} {
    %c0 = arith.constant 0 : index
    %c0_0 = arith.constant 0 : index
    %c0_1 = arith.constant 0 : index
    %0 = vector.load %arg1[%c0, %c0_0, %c0_1] : memref<1x6x128xf32, #tpu.memory_space<vmem>>, vector<1x6x128xf32>
    %1 = vector.shape_cast %0 : vector<1x6x128xf32> to vector<6x128xf32>
    %c0_2 = arith.constant 0 : index
    %c0_3 = arith.constant 0 : index
    %c0_4 = arith.constant 0 : index
    %2 = vector.load %arg2[%c0_2, %c0_3, %c0_4] : memref<1x8x128xf32, #tpu.memory_space<vmem>>, vector<1x8x128xf32>
    %3 = vector.shape_cast %2 : vector<1x8x128xf32> to vector<8x128xf32>
    %c0_5 = arith.constant 0 : index
    %c0_6 = arith.constant 0 : index
    %4 = vector.load %arg3[%c0_5, %c0_6] : memref<128x128xbf16, #tpu.memory_space<vmem>>, vector<128x128xbf16>
    %c0_7 = arith.constant 0 : index
    %c0_8 = arith.constant 0 : index
    %5 = vector.load %arg4[%c0_7, %c0_8] : memref<1x128xf32, #tpu.memory_space<vmem>>, vector<1x128xf32>
    %c0_9 = arith.constant 0 : index
    %c0_10 = arith.constant 0 : index
    %6 = vector.load %arg5[%c0_9, %c0_10] : memref<128x128xbf16, #tpu.memory_space<vmem>>, vector<128x128xbf16>
    %c0_11 = arith.constant 0 : index
    %c0_12 = arith.constant 0 : index
    %7 = vector.load %arg6[%c0_11, %c0_12] : memref<1x128xf32, #tpu.memory_space<vmem>>, vector<1x128xf32>
    %c0_13 = arith.constant 0 : index
    %c0_14 = arith.constant 0 : index
    %8 = vector.load %arg7[%c0_13, %c0_14] : memref<128x128xbf16, #tpu.memory_space<vmem>>, vector<128x128xbf16>
    %c0_15 = arith.constant 0 : index
    %c0_16 = arith.constant 0 : index
    %9 = vector.load %arg8[%c0_15, %c0_16] : memref<1x128xf32, #tpu.memory_space<vmem>>, vector<1x128xf32>
    %c0_17 = arith.constant 0 : index
    %c0_18 = arith.constant 0 : index
    %10 = vector.load %arg9[%c0_17, %c0_18] : memref<128x128xbf16, #tpu.memory_space<vmem>>, vector<128x128xbf16>
    %c0_19 = arith.constant 0 : index
    %c0_20 = arith.constant 0 : index
    %11 = vector.load %arg10[%c0_19, %c0_20] : memref<1x128xf32, #tpu.memory_space<vmem>>, vector<1x128xf32>
    %c0_21 = arith.constant 0 : index
    %c0_22 = arith.constant 0 : index
    %12 = vector.load %arg11[%c0_21, %c0_22] : memref<1x128xf32, #tpu.memory_space<vmem>>, vector<1x128xf32>
    %c0_23 = arith.constant 0 : index
    %c0_24 = arith.constant 0 : index
    %13 = vector.load %arg12[%c0_23, %c0_24] : memref<1x128xf32, #tpu.memory_space<vmem>>, vector<1x128xf32>
    %c0_25 = arith.constant 0 : index
    %c0_26 = arith.constant 0 : index
    %14 = vector.load %arg13[%c0_25, %c0_26] : memref<128x256xbf16, #tpu.memory_space<vmem>>, vector<128x256xbf16>
    %c0_27 = arith.constant 0 : index
    %c0_28 = arith.constant 0 : index
    %15 = vector.load %arg14[%c0_27, %c0_28] : memref<1x256xf32, #tpu.memory_space<vmem>>, vector<1x256xf32>
    %c0_29 = arith.constant 0 : index
    %c0_30 = arith.constant 0 : index
    %16 = vector.load %arg15[%c0_29, %c0_30] : memref<256x128xbf16, #tpu.memory_space<vmem>>, vector<256x128xbf16>
    %c0_31 = arith.constant 0 : index
    %c0_32 = arith.constant 0 : index
    %17 = vector.load %arg16[%c0_31, %c0_32] : memref<1x128xf32, #tpu.memory_space<vmem>>, vector<1x128xf32>
    %c0_33 = arith.constant 0 : index
    %c0_34 = arith.constant 0 : index
    %18 = vector.load %arg17[%c0_33, %c0_34] : memref<1x128xf32, #tpu.memory_space<vmem>>, vector<1x128xf32>
    %c0_35 = arith.constant 0 : index
    %c0_36 = arith.constant 0 : index
    %19 = vector.load %arg18[%c0_35, %c0_36] : memref<1x128xf32, #tpu.memory_space<vmem>>, vector<1x128xf32>
    %20 = arith.truncf %1 : vector<6x128xf32> to vector<6x128xbf16>
    %21 = arith.truncf %3 : vector<8x128xf32> to vector<8x128xbf16>
    %cst = arith.constant dense<0.000000e+00> : vector<6x128xf32>
    %22 = tpu.matmul %20, %4, %cst {dimension_numbers = #tpu.dot_dimension_numbers<[1], [0], [0], [1], [0, 0, 1, 1], [], []>} : vector<6x128xbf16>, vector<128x128xbf16>, vector<6x128xf32> -> vector<6x128xf32>
    %23 = vector.broadcast %5 : vector<1x128xf32> to vector<6x128xf32>
    %24 = arith.addf %22, %23 : vector<6x128xf32>
    %cst_37 = arith.constant dense<0.000000e+00> : vector<8x128xf32>
    %25 = tpu.matmul %21, %6, %cst_37 {dimension_numbers = #tpu.dot_dimension_numbers<[1], [0], [0], [1], [0, 0, 1, 1], [], []>} : vector<8x128xbf16>, vector<128x128xbf16>, vector<8x128xf32> -> vector<8x128xf32>
    %26 = vector.broadcast %7 : vector<1x128xf32> to vector<8x128xf32>
    %27 = arith.addf %25, %26 : vector<8x128xf32>
    %cst_38 = arith.constant dense<0.000000e+00> : vector<8x128xf32>
    %28 = tpu.matmul %21, %8, %cst_38 {dimension_numbers = #tpu.dot_dimension_numbers<[1], [0], [0], [1], [0, 0, 1, 1], [], []>} : vector<8x128xbf16>, vector<128x128xbf16>, vector<8x128xf32> -> vector<8x128xf32>
    %29 = vector.broadcast %9 : vector<1x128xf32> to vector<8x128xf32>
    %30 = arith.addf %28, %29 : vector<8x128xf32>
    %cst_39 = arith.constant 0.176776692 : f32
    %31 = vector.broadcast %cst_39 : f32 to vector<6x128xf32>
    %32 = arith.mulf %24, %31 : vector<6x128xf32>
    %cst_40 = arith.constant 0.000000e+00 : f32
    %33 = vector.broadcast %cst_40 : f32 to vector<6x128xf32>
    %34 = vector.extract_strided_slice %32 {offsets = [0, 0], sizes = [6, 32], strides = [1, 1]} : vector<6x128xf32> to vector<6x32xf32>
    %35 = arith.truncf %34 : vector<6x32xf32> to vector<6x32xbf16>
    %36 = vector.extract_strided_slice %27 {offsets = [0, 0], sizes = [8, 32], strides = [1, 1]} : vector<8x128xf32> to vector<8x32xf32>
    %37 = arith.truncf %36 : vector<8x32xf32> to vector<8x32xbf16>
    %38 = vector.extract_strided_slice %30 {offsets = [0, 0], sizes = [8, 32], strides = [1, 1]} : vector<8x128xf32> to vector<8x32xf32>
    %39 = arith.truncf %38 : vector<8x32xf32> to vector<8x32xbf16>
    "tpu.trace_start"() <{level = 10 : i32, message = "qd,kd->qk"}> : () -> ()
    %cst_41 = arith.constant dense<0.000000e+00> : vector<6x8xf32>
    %40 = tpu.matmul %35, %37, %cst_41 {dimension_numbers = #tpu.dot_dimension_numbers<[1], [1], [0], [0], [0, 0, 1, 0], [], []>} : vector<6x32xbf16>, vector<8x32xbf16>, vector<6x8xf32> -> vector<6x8xf32>
    "tpu.trace_stop"() : () -> ()
    %cst_42 = arith.constant dense<0xFF800000> : vector<6xf32>
    %41 = vector.multi_reduction <maximumf>, %40, %cst_42 [1] : vector<6x8xf32> to vector<6xf32>
    %42 = vector.shape_cast %41 : vector<6xf32> to vector<6x1xf32>
    %43 = vector.broadcast %42 : vector<6x1xf32> to vector<6x8xf32>
    %44 = arith.subf %40, %43 : vector<6x8xf32>
    %45 = math.exp %44 : vector<6x8xf32>
    %cst_43 = arith.constant dense<0.000000e+00> : vector<6xf32>
    %46 = vector.multi_reduction <add>, %45, %cst_43 [1] : vector<6x8xf32> to vector<6xf32>
    %47 = vector.shape_cast %46 : vector<6xf32> to vector<6x1xf32>
    %48 = tpu.reciprocal %47 {approx = true} : vector<6x1xf32> -> vector<6x1xf32>
    %49 = vector.broadcast %48 : vector<6x1xf32> to vector<6x8xf32>
    %50 = arith.mulf %45, %49 : vector<6x8xf32>
    %51 = arith.truncf %50 : vector<6x8xf32> to vector<6x8xbf16>
    %cst_44 = arith.constant dense<0.000000e+00> : vector<6x32xf32>
    %52 = tpu.matmul %51, %39, %cst_44 {dimension_numbers = #tpu.dot_dimension_numbers<[1], [0], [0], [1], [0, 0, 1, 1], [], []>} : vector<6x8xbf16>, vector<8x32xbf16>, vector<6x32xf32> -> vector<6x32xf32>
    %53 = arith.truncf %52 : vector<6x32xf32> to vector<6x32xbf16>
    %54 = vector.extract_strided_slice %10 {offsets = [0, 0], sizes = [32, 128], strides = [1, 1]} : vector<128x128xbf16> to vector<32x128xbf16>
    %cst_45 = arith.constant dense<0.000000e+00> : vector<6x128xf32>
    %55 = tpu.matmul %53, %54, %cst_45 {dimension_numbers = #tpu.dot_dimension_numbers<[1], [0], [0], [1], [0, 0, 1, 1], [], []>} : vector<6x32xbf16>, vector<32x128xbf16>, vector<6x128xf32> -> vector<6x128xf32>
    %56 = arith.addf %33, %55 : vector<6x128xf32>
    %57 = vector.extract_strided_slice %32 {offsets = [0, 32], sizes = [6, 32], strides = [1, 1]} : vector<6x128xf32> to vector<6x32xf32>
    %58 = arith.truncf %57 : vector<6x32xf32> to vector<6x32xbf16>
    %59 = vector.extract_strided_slice %27 {offsets = [0, 32], sizes = [8, 32], strides = [1, 1]} : vector<8x128xf32> to vector<8x32xf32>
    %60 = arith.truncf %59 : vector<8x32xf32> to vector<8x32xbf16>
    %61 = vector.extract_strided_slice %30 {offsets = [0, 32], sizes = [8, 32], strides = [1, 1]} : vector<8x128xf32> to vector<8x32xf32>
    %62 = arith.truncf %61 : vector<8x32xf32> to vector<8x32xbf16>
    "tpu.trace_start"() <{level = 10 : i32, message = "qd,kd->qk"}> : () -> ()
    %cst_46 = arith.constant dense<0.000000e+00> : vector<6x8xf32>
    %63 = tpu.matmul %58, %60, %cst_46 {dimension_numbers = #tpu.dot_dimension_numbers<[1], [1], [0], [0], [0, 0, 1, 0], [], []>} : vector<6x32xbf16>, vector<8x32xbf16>, vector<6x8xf32> -> vector<6x8xf32>
    "tpu.trace_stop"() : () -> ()
    %cst_47 = arith.constant dense<0xFF800000> : vector<6xf32>
    %64 = vector.multi_reduction <maximumf>, %63, %cst_47 [1] : vector<6x8xf32> to vector<6xf32>
    %65 = vector.shape_cast %64 : vector<6xf32> to vector<6x1xf32>
    %66 = vector.broadcast %65 : vector<6x1xf32> to vector<6x8xf32>
    %67 = arith.subf %63, %66 : vector<6x8xf32>
    %68 = math.exp %67 : vector<6x8xf32>
    %cst_48 = arith.constant dense<0.000000e+00> : vector<6xf32>
    %69 = vector.multi_reduction <add>, %68, %cst_48 [1] : vector<6x8xf32> to vector<6xf32>
    %70 = vector.shape_cast %69 : vector<6xf32> to vector<6x1xf32>
    %71 = tpu.reciprocal %70 {approx = true} : vector<6x1xf32> -> vector<6x1xf32>
    %72 = vector.broadcast %71 : vector<6x1xf32> to vector<6x8xf32>
    %73 = arith.mulf %68, %72 : vector<6x8xf32>
    %74 = arith.truncf %73 : vector<6x8xf32> to vector<6x8xbf16>
    %cst_49 = arith.constant dense<0.000000e+00> : vector<6x32xf32>
    %75 = tpu.matmul %74, %62, %cst_49 {dimension_numbers = #tpu.dot_dimension_numbers<[1], [0], [0], [1], [0, 0, 1, 1], [], []>} : vector<6x8xbf16>, vector<8x32xbf16>, vector<6x32xf32> -> vector<6x32xf32>
    %76 = arith.truncf %75 : vector<6x32xf32> to vector<6x32xbf16>
    %77 = vector.extract_strided_slice %10 {offsets = [32, 0], sizes = [32, 128], strides = [1, 1]} : vector<128x128xbf16> to vector<32x128xbf16>
    %cst_50 = arith.constant dense<0.000000e+00> : vector<6x128xf32>
    %78 = tpu.matmul %76, %77, %cst_50 {dimension_numbers = #tpu.dot_dimension_numbers<[1], [0], [0], [1], [0, 0, 1, 1], [], []>} : vector<6x32xbf16>, vector<32x128xbf16>, vector<6x128xf32> -> vector<6x128xf32>
    %79 = arith.addf %56, %78 : vector<6x128xf32>
    %80 = vector.extract_strided_slice %32 {offsets = [0, 64], sizes = [6, 32], strides = [1, 1]} : vector<6x128xf32> to vector<6x32xf32>
    %81 = arith.truncf %80 : vector<6x32xf32> to vector<6x32xbf16>
    %82 = vector.extract_strided_slice %27 {offsets = [0, 64], sizes = [8, 32], strides = [1, 1]} : vector<8x128xf32> to vector<8x32xf32>
    %83 = arith.truncf %82 : vector<8x32xf32> to vector<8x32xbf16>
    %84 = vector.extract_strided_slice %30 {offsets = [0, 64], sizes = [8, 32], strides = [1, 1]} : vector<8x128xf32> to vector<8x32xf32>
    %85 = arith.truncf %84 : vector<8x32xf32> to vector<8x32xbf16>
    "tpu.trace_start"() <{level = 10 : i32, message = "qd,kd->qk"}> : () -> ()
    %cst_51 = arith.constant dense<0.000000e+00> : vector<6x8xf32>
    %86 = tpu.matmul %81, %83, %cst_51 {dimension_numbers = #tpu.dot_dimension_numbers<[1], [1], [0], [0], [0, 0, 1, 0], [], []>} : vector<6x32xbf16>, vector<8x32xbf16>, vector<6x8xf32> -> vector<6x8xf32>
    "tpu.trace_stop"() : () -> ()
    %cst_52 = arith.constant dense<0xFF800000> : vector<6xf32>
    %87 = vector.multi_reduction <maximumf>, %86, %cst_52 [1] : vector<6x8xf32> to vector<6xf32>
    %88 = vector.shape_cast %87 : vector<6xf32> to vector<6x1xf32>
    %89 = vector.broadcast %88 : vector<6x1xf32> to vector<6x8xf32>
    %90 = arith.subf %86, %89 : vector<6x8xf32>
    %91 = math.exp %90 : vector<6x8xf32>
    %cst_53 = arith.constant dense<0.000000e+00> : vector<6xf32>
    %92 = vector.multi_reduction <add>, %91, %cst_53 [1] : vector<6x8xf32> to vector<6xf32>
    %93 = vector.shape_cast %92 : vector<6xf32> to vector<6x1xf32>
    %94 = tpu.reciprocal %93 {approx = true} : vector<6x1xf32> -> vector<6x1xf32>
    %95 = vector.broadcast %94 : vector<6x1xf32> to vector<6x8xf32>
    %96 = arith.mulf %91, %95 : vector<6x8xf32>
    %97 = arith.truncf %96 : vector<6x8xf32> to vector<6x8xbf16>
    %cst_54 = arith.constant dense<0.000000e+00> : vector<6x32xf32>
    %98 = tpu.matmul %97, %85, %cst_54 {dimension_numbers = #tpu.dot_dimension_numbers<[1], [0], [0], [1], [0, 0, 1, 1], [], []>} : vector<6x8xbf16>, vector<8x32xbf16>, vector<6x32xf32> -> vector<6x32xf32>
    %99 = arith.truncf %98 : vector<6x32xf32> to vector<6x32xbf16>
    %100 = vector.extract_strided_slice %10 {offsets = [64, 0], sizes = [32, 128], strides = [1, 1]} : vector<128x128xbf16> to vector<32x128xbf16>
    %cst_55 = arith.constant dense<0.000000e+00> : vector<6x128xf32>
    %101 = tpu.matmul %99, %100, %cst_55 {dimension_numbers = #tpu.dot_dimension_numbers<[1], [0], [0], [1], [0, 0, 1, 1], [], []>} : vector<6x32xbf16>, vector<32x128xbf16>, vector<6x128xf32> -> vector<6x128xf32>
    %102 = arith.addf %79, %101 : vector<6x128xf32>
    %103 = vector.extract_strided_slice %32 {offsets = [0, 96], sizes = [6, 32], strides = [1, 1]} : vector<6x128xf32> to vector<6x32xf32>
    %104 = arith.truncf %103 : vector<6x32xf32> to vector<6x32xbf16>
    %105 = vector.extract_strided_slice %27 {offsets = [0, 96], sizes = [8, 32], strides = [1, 1]} : vector<8x128xf32> to vector<8x32xf32>
    %106 = arith.truncf %105 : vector<8x32xf32> to vector<8x32xbf16>
    %107 = vector.extract_strided_slice %30 {offsets = [0, 96], sizes = [8, 32], strides = [1, 1]} : vector<8x128xf32> to vector<8x32xf32>
    %108 = arith.truncf %107 : vector<8x32xf32> to vector<8x32xbf16>
    "tpu.trace_start"() <{level = 10 : i32, message = "qd,kd->qk"}> : () -> ()
    %cst_56 = arith.constant dense<0.000000e+00> : vector<6x8xf32>
    %109 = tpu.matmul %104, %106, %cst_56 {dimension_numbers = #tpu.dot_dimension_numbers<[1], [1], [0], [0], [0, 0, 1, 0], [], []>} : vector<6x32xbf16>, vector<8x32xbf16>, vector<6x8xf32> -> vector<6x8xf32>
    "tpu.trace_stop"() : () -> ()
    %cst_57 = arith.constant dense<0xFF800000> : vector<6xf32>
    %110 = vector.multi_reduction <maximumf>, %109, %cst_57 [1] : vector<6x8xf32> to vector<6xf32>
    %111 = vector.shape_cast %110 : vector<6xf32> to vector<6x1xf32>
    %112 = vector.broadcast %111 : vector<6x1xf32> to vector<6x8xf32>
    %113 = arith.subf %109, %112 : vector<6x8xf32>
    %114 = math.exp %113 : vector<6x8xf32>
    %cst_58 = arith.constant dense<0.000000e+00> : vector<6xf32>
    %115 = vector.multi_reduction <add>, %114, %cst_58 [1] : vector<6x8xf32> to vector<6xf32>
    %116 = vector.shape_cast %115 : vector<6xf32> to vector<6x1xf32>
    %117 = tpu.reciprocal %116 {approx = true} : vector<6x1xf32> -> vector<6x1xf32>
    %118 = vector.broadcast %117 : vector<6x1xf32> to vector<6x8xf32>
    %119 = arith.mulf %114, %118 : vector<6x8xf32>
    %120 = arith.truncf %119 : vector<6x8xf32> to vector<6x8xbf16>
    %cst_59 = arith.constant dense<0.000000e+00> : vector<6x32xf32>
    %121 = tpu.matmul %120, %108, %cst_59 {dimension_numbers = #tpu.dot_dimension_numbers<[1], [0], [0], [1], [0, 0, 1, 1], [], []>} : vector<6x8xbf16>, vector<8x32xbf16>, vector<6x32xf32> -> vector<6x32xf32>
    %122 = arith.truncf %121 : vector<6x32xf32> to vector<6x32xbf16>
    %123 = vector.extract_strided_slice %10 {offsets = [96, 0], sizes = [32, 128], strides = [1, 1]} : vector<128x128xbf16> to vector<32x128xbf16>
    %cst_60 = arith.constant dense<0.000000e+00> : vector<6x128xf32>
    %124 = tpu.matmul %122, %123, %cst_60 {dimension_numbers = #tpu.dot_dimension_numbers<[1], [0], [0], [1], [0, 0, 1, 1], [], []>} : vector<6x32xbf16>, vector<32x128xbf16>, vector<6x128xf32> -> vector<6x128xf32>
    %125 = arith.addf %102, %124 : vector<6x128xf32>
    %126 = arith.addf %1, %125 : vector<6x128xf32>
    %127 = vector.broadcast %11 : vector<1x128xf32> to vector<6x128xf32>
    %128 = arith.addf %126, %127 : vector<6x128xf32>
    %cst_61 = arith.constant dense<0.000000e+00> : vector<6xf32>
    %129 = vector.multi_reduction <add>, %128, %cst_61 [1] : vector<6x128xf32> to vector<6xf32>
    %130 = vector.shape_cast %129 : vector<6xf32> to vector<6x1xf32>
    %cst_62 = arith.constant 1.280000e+02 : f32
    %131 = vector.broadcast %cst_62 : f32 to vector<6x1xf32>
    %132 = arith.divf %130, %131 : vector<6x1xf32>
    %133 = vector.broadcast %132 : vector<6x1xf32> to vector<6x128xf32>
    %134 = arith.subf %128, %133 : vector<6x128xf32>
    %135 = arith.mulf %134, %134 : vector<6x128xf32>
    %cst_63 = arith.constant dense<0.000000e+00> : vector<6xf32>
    %136 = vector.multi_reduction <add>, %135, %cst_63 [1] : vector<6x128xf32> to vector<6xf32>
    %137 = vector.shape_cast %136 : vector<6xf32> to vector<6x1xf32>
    %cst_64 = arith.constant 1.280000e+02 : f32
    %138 = vector.broadcast %cst_64 : f32 to vector<6x1xf32>
    %139 = arith.divf %137, %138 : vector<6x1xf32>
    %140 = vector.broadcast %132 : vector<6x1xf32> to vector<6x128xf32>
    %141 = arith.subf %128, %140 : vector<6x128xf32>
    %cst_65 = arith.constant 9.99999974E-6 : f32
    %142 = vector.broadcast %cst_65 : f32 to vector<6x1xf32>
    %143 = arith.addf %139, %142 : vector<6x1xf32>
    %144 = math.rsqrt %143 : vector<6x1xf32>
    %145 = vector.broadcast %144 : vector<6x1xf32> to vector<6x128xf32>
    %146 = arith.mulf %141, %145 : vector<6x128xf32>
    %147 = vector.broadcast %12 : vector<1x128xf32> to vector<6x128xf32>
    %148 = arith.mulf %146, %147 : vector<6x128xf32>
    %149 = vector.broadcast %13 : vector<1x128xf32> to vector<6x128xf32>
    %150 = arith.addf %148, %149 : vector<6x128xf32>
    %151 = arith.truncf %150 : vector<6x128xf32> to vector<6x128xbf16>
    %cst_66 = arith.constant dense<0.000000e+00> : vector<6x256xf32>
    %152 = tpu.matmul %151, %14, %cst_66 {dimension_numbers = #tpu.dot_dimension_numbers<[1], [0], [0], [1], [0, 0, 1, 1], [], []>} : vector<6x128xbf16>, vector<128x256xbf16>, vector<6x256xf32> -> vector<6x256xf32>
    %153 = vector.broadcast %15 : vector<1x256xf32> to vector<6x256xf32>
    %154 = arith.addf %152, %153 : vector<6x256xf32>
    %cst_67 = arith.constant 0.000000e+00 : f32
    %155 = vector.broadcast %cst_67 : f32 to vector<6x256xf32>
    %156 = arith.maximumf %154, %155 : vector<6x256xf32>
    %157 = arith.truncf %156 : vector<6x256xf32> to vector<6x256xbf16>
    %cst_68 = arith.constant dense<0.000000e+00> : vector<6x128xf32>
    %158 = tpu.matmul %157, %16, %cst_68 {dimension_numbers = #tpu.dot_dimension_numbers<[1], [0], [0], [1], [0, 0, 1, 1], [], []>} : vector<6x256xbf16>, vector<256x128xbf16>, vector<6x128xf32> -> vector<6x128xf32>
    %159 = vector.broadcast %17 : vector<1x128xf32> to vector<6x128xf32>
    %160 = arith.addf %158, %159 : vector<6x128xf32>
    %161 = arith.addf %150, %160 : vector<6x128xf32>
    %cst_69 = arith.constant dense<0.000000e+00> : vector<6xf32>
    %162 = vector.multi_reduction <add>, %161, %cst_69 [1] : vector<6x128xf32> to vector<6xf32>
    %163 = vector.shape_cast %162 : vector<6xf32> to vector<6x1xf32>
    %cst_70 = arith.constant 1.280000e+02 : f32
    %164 = vector.broadcast %cst_70 : f32 to vector<6x1xf32>
    %165 = arith.divf %163, %164 : vector<6x1xf32>
    %166 = vector.broadcast %165 : vector<6x1xf32> to vector<6x128xf32>
    %167 = arith.subf %161, %166 : vector<6x128xf32>
    %168 = arith.mulf %167, %167 : vector<6x128xf32>
    %cst_71 = arith.constant dense<0.000000e+00> : vector<6xf32>
    %169 = vector.multi_reduction <add>, %168, %cst_71 [1] : vector<6x128xf32> to vector<6xf32>
    %170 = vector.shape_cast %169 : vector<6xf32> to vector<6x1xf32>
    %cst_72 = arith.constant 1.280000e+02 : f32
    %171 = vector.broadcast %cst_72 : f32 to vector<6x1xf32>
    %172 = arith.divf %170, %171 : vector<6x1xf32>
    %173 = vector.broadcast %165 : vector<6x1xf32> to vector<6x128xf32>
    %174 = arith.subf %161, %173 : vector<6x128xf32>
    %cst_73 = arith.constant 9.99999974E-6 : f32
    %175 = vector.broadcast %cst_73 : f32 to vector<6x1xf32>
    %176 = arith.addf %172, %175 : vector<6x1xf32>
    %177 = math.rsqrt %176 : vector<6x1xf32>
    %178 = vector.broadcast %177 : vector<6x1xf32> to vector<6x128xf32>
    %179 = arith.mulf %174, %178 : vector<6x128xf32>
    %180 = vector.broadcast %18 : vector<1x128xf32> to vector<6x128xf32>
    %181 = arith.mulf %179, %180 : vector<6x128xf32>
    %182 = vector.broadcast %19 : vector<1x128xf32> to vector<6x128xf32>
    %183 = arith.addf %181, %182 : vector<6x128xf32>
    %184 = arith.truncf %183 : vector<6x128xf32> to vector<6x128xbf16>
    %c0_74 = arith.constant 0 : index
    %c0_75 = arith.constant 0 : index
    %185 = vector.load %arg19[%c0_74, %c0_75] : memref<128x4xbf16, #tpu.memory_space<vmem>>, vector<128x4xbf16>
    %cst_76 = arith.constant dense<0.000000e+00> : vector<6x4xf32>
    %186 = tpu.matmul %184, %185, %cst_76 {dimension_numbers = #tpu.dot_dimension_numbers<[1], [0], [0], [1], [0, 0, 1, 1], [], []>} : vector<6x128xbf16>, vector<128x4xbf16>, vector<6x4xf32> -> vector<6x4xf32>
    %c0_77 = arith.constant 0 : index
    %c0_78 = arith.constant 0 : index
    %187 = vector.load %arg20[%c0_77, %c0_78] : memref<1x4xf32, #tpu.memory_space<vmem>>, vector<1x4xf32>
    %188 = vector.broadcast %187 : vector<1x4xf32> to vector<6x4xf32>
    %189 = arith.addf %186, %188 : vector<6x4xf32>
    %c0_79 = arith.constant 0 : index
    %c0_80 = arith.constant 0 : index
    %c0_81 = arith.constant 0 : index
    %190 = vector.load %arg21[%c0_79, %c0_80, %c0_81] : memref<1x6x4xf32, #tpu.memory_space<vmem>>, vector<1x6x4xf32>
    %191 = vector.shape_cast %190 : vector<1x6x4xf32> to vector<6x4xf32>
    %192 = vector.shape_cast %189 : vector<6x4xf32> to vector<1x6x4xf32>
    tpu.vector_store %arg21[%c0_79, %c0_80, %c0_81], %192 {strides = array<i32>} : memref<1x6x4xf32, #tpu.memory_space<vmem>>, vector<1x6x4xf32>,
    return
  }
  func.func @transform_0(%arg0: i32) -> (i32, i32, i32) {
    %c0_i32 = arith.constant 0 : i32
    %c0_i32_0 = arith.constant 0 : i32
    %c0_i32_1 = arith.constant 0 : i32
    return %arg0, %c0_i32, %c0_i32_0 : i32, i32, i32
  }
  func.func @transform_1(%arg0: i32) -> (i32, i32, i32) {
    %c0_i32 = arith.constant 0 : i32
    %c0_i32_0 = arith.constant 0 : i32
    %c0_i32_1 = arith.constant 0 : i32
    return %arg0, %c0_i32, %c0_i32_0 : i32, i32, i32
  }
  func.func @transform_2(%arg0: i32) -> (i32, i32) {
    %c0_i32 = arith.constant 0 : i32
    %c0_i32_0 = arith.constant 0 : i32
    %c0_i32_1 = arith.constant 0 : i32
    return %c0_i32, %c0_i32_0 : i32, i32
  }
  func.func @transform_3(%arg0: i32) -> (i32, i32) {
    %c0_i32 = arith.constant 0 : i32
    %c0_i32_0 = arith.constant 0 : i32
    %c0_i32_1 = arith.constant 0 : i32
    return %c0_i32, %c0_i32_0 : i32, i32
  }
  func.func @transform_4(%arg0: i32) -> (i32, i32) {
    %c0_i32 = arith.constant 0 : i32
    %c0_i32_0 = arith.constant 0 : i32
    %c0_i32_1 = arith.constant 0 : i32
    return %c0_i32, %c0_i32_0 : i32, i32
  }
  func.func @transform_5(%arg0: i32) -> (i32, i32) {
    %c0_i32 = arith.constant 0 : i32
    %c0_i32_0 = arith.constant 0 : i32
    %c0_i32_1 = arith.constant 0 : i32
    return %c0_i32, %c0_i32_0 : i32, i32
  }
  func.func @transform_6(%arg0: i32) -> (i32, i32) {
    %c0_i32 = arith.constant 0 : i32
    %c0_i32_0 = arith.constant 0 : i32
    %c0_i32_1 = arith.constant 0 : i32
    return %c0_i32, %c0_i32_0 : i32, i32
  }
  func.func @transform_7(%arg0: i32) -> (i32, i32) {
    %c0_i32 = arith.constant 0 : i32
    %c0_i32_0 = arith.constant 0 : i32
    %c0_i32_1 = arith.constant 0 : i32
    return %c0_i32, %c0_i32_0 : i32, i32
  }
  func.func @transform_8(%arg0: i32) -> (i32, i32) {
    %c0_i32 = arith.constant 0 : i32
    %c0_i32_0 = arith.constant 0 : i32
    %c0_i32_1 = arith.constant 0 : i32
    return %c0_i32, %c0_i32_0 : i32, i32
  }
  func.func @transform_9(%arg0: i32) -> (i32, i32) {
    %c0_i32 = arith.constant 0 : i32
    %c0_i32_0 = arith.constant 0 : i32
    %c0_i32_1 = arith.constant 0 : i32
    return %c0_i32, %c0_i32_0 : i32, i32
  }
  func.func @transform_10(%arg0: i32) -> (i32, i32) {
    %c0_i32 = arith.constant 0 : i32
    %c0_i32_0 = arith.constant 0 : i32
    %c0_i32_1 = arith.constant 0 : i32
    return %c0_i32, %c0_i32_0 : i32, i32
  }
  func.func @transform_11(%arg0: i32) -> (i32, i32) {
    %c0_i32 = arith.constant 0 : i32
    %c0_i32_0 = arith.constant 0 : i32
    %c0_i32_1 = arith.constant 0 : i32
    return %c0_i32, %c0_i32_0 : i32, i32
  }
  func.func @transform_12(%arg0: i32) -> (i32, i32) {
    %c0_i32 = arith.constant 0 : i32
    %c0_i32_0 = arith.constant 0 : i32
    %c0_i32_1 = arith.constant 0 : i32
    return %c0_i32, %c0_i32_0 : i32, i32
  }
  func.func @transform_13(%arg0: i32) -> (i32, i32) {
    %c0_i32 = arith.constant 0 : i32
    %c0_i32_0 = arith.constant 0 : i32
    %c0_i32_1 = arith.constant 0 : i32
    return %c0_i32, %c0_i32_0 : i32, i32
  }
  func.func @transform_14(%arg0: i32) -> (i32, i32) {
    %c0_i32 = arith.constant 0 : i32
    %c0_i32_0 = arith.constant 0 : i32
    %c0_i32_1 = arith.constant 0 : i32
    return %c0_i32, %c0_i32_0 : i32, i32
  }
  func.func @transform_15(%arg0: i32) -> (i32, i32) {
    %c0_i32 = arith.constant 0 : i32
    %c0_i32_0 = arith.constant 0 : i32
    %c0_i32_1 = arith.constant 0 : i32
    return %c0_i32, %c0_i32_0 : i32, i32
  }
  func.func @transform_16(%arg0: i32) -> (i32, i32) {
    %c0_i32 = arith.constant 0 : i32
    %c0_i32_0 = arith.constant 0 : i32
    %c0_i32_1 = arith.constant 0 : i32
    return %c0_i32, %c0_i32_0 : i32, i32
  }
  func.func @transform_17(%arg0: i32) -> (i32, i32) {
    %c0_i32 = arith.constant 0 : i32
    %c0_i32_0 = arith.constant 0 : i32
    %c0_i32_1 = arith.constant 0 : i32
    return %c0_i32, %c0_i32_0 : i32, i32
  }
  func.func @transform_18(%arg0: i32) -> (i32, i32) {
    %c0_i32 = arith.constant 0 : i32
    %c0_i32_0 = arith.constant 0 : i32
    %c0_i32_1 = arith.constant 0 : i32
    return %c0_i32, %c0_i32_0 : i32, i32
  }
  func.func @transform_19(%arg0: i32) -> (i32, i32) {
    %c0_i32 = arith.constant 0 : i32
    %c0_i32_0 = arith.constant 0 : i32
    %c0_i32_1 = arith.constant 0 : i32
    return %c0_i32, %c0_i32_0 : i32, i32
  }
  func.func @transform_20(%arg0: i32) -> (i32, i32, i32) {
    %c0_i32 = arith.constant 0 : i32
    %c0_i32_0 = arith.constant 0 : i32
    %c0_i32_1 = arith.constant 0 : i32
    return %arg0, %c0_i32, %c0_i32_0 : i32, i32, i32
  }
}

module attributes {stable_mosaic.version = 11 : i64} {
  func.func @decoder_layer_kernel(%arg0: i32, %arg1: memref<1x6x128xf32, #tpu.memory_space<vmem>>, %arg2: memref<1x8x128xf32, #tpu.memory_space<vmem>>, %arg3: memref<128x128xbf16, #tpu.memory_space<vmem>>, %arg4: memref<1x128xf32, #tpu.memory_space<vmem>>, %arg5: memref<128x128xbf16, #tpu.memory_space<vmem>>, %arg6: memref<1x128xf32, #tpu.memory_space<vmem>>, %arg7: memref<128x128xbf16, #tpu.memory_space<vmem>>, %arg8: memref<1x128xf32, #tpu.memory_space<vmem>>, %arg9: memref<128x128xbf16, #tpu.memory_space<vmem>>, %arg10: memref<1x128xf32, #tpu.memory_space<vmem>>, %arg11: memref<1x128xf32, #tpu.memory_space<vmem>>, %arg12: memref<1x128xf32, #tpu.memory_space<vmem>>, %arg13: memref<128x256xbf16, #tpu.memory_space<vmem>>, %arg14: memref<1x256xf32, #tpu.memory_space<vmem>>, %arg15: memref<256x128xbf16, #tpu.memory_space<vmem>>, %arg16: memref<1x128xf32, #tpu.memory_space<vmem>>, %arg17: memref<1x128xf32, #tpu.memory_space<vmem>>, %arg18: memref<1x128xf32, #tpu.memory_space<vmem>>, %arg19: memref<1x6x128xf32, #tpu.memory_space<vmem>>) attributes {dimension_semantics = [#tpu.dimension_semantics<parallel>], iteration_bounds = array<i64: 2>, scalar_prefetch = 0 : i64, scratch_operands = 0 : i64, tpu.core_type = #tpu.core_type<tc>, window_params = [{transform_indices = @transform_0, window_bounds = array<i64: 1, 6, 128>}, {transform_indices = @transform_1, window_bounds = array<i64: 1, 8, 128>}, {pipeline_mode = #tpu.pipeline_mode<synchronous>, transform_indices = @transform_2, window_bounds = array<i64: 128, 128>}, {pipeline_mode = #tpu.pipeline_mode<synchronous>, transform_indices = @transform_3, window_bounds = array<i64: 1, 128>}, {pipeline_mode = #tpu.pipeline_mode<synchronous>, transform_indices = @transform_4, window_bounds = array<i64: 128, 128>}, {pipeline_mode = #tpu.pipeline_mode<synchronous>, transform_indices = @transform_5, window_bounds = array<i64: 1, 128>}, {pipeline_mode = #tpu.pipeline_mode<synchronous>, transform_indices = @transform_6, window_bounds = array<i64: 128, 128>}, {pipeline_mode = #tpu.pipeline_mode<synchronous>, transform_indices = @transform_7, window_bounds = array<i64: 1, 128>}, {pipeline_mode = #tpu.pipeline_mode<synchronous>, transform_indices = @transform_8, window_bounds = array<i64: 128, 128>}, {pipeline_mode = #tpu.pipeline_mode<synchronous>, transform_indices = @transform_9, window_bounds = array<i64: 1, 128>}, {pipeline_mode = #tpu.pipeline_mode<synchronous>, transform_indices = @transform_10, window_bounds = array<i64: 1, 128>}, {pipeline_mode = #tpu.pipeline_mode<synchronous>, transform_indices = @transform_11, window_bounds = array<i64: 1, 128>}, {pipeline_mode = #tpu.pipeline_mode<synchronous>, transform_indices = @transform_12, window_bounds = array<i64: 128, 256>}, {pipeline_mode = #tpu.pipeline_mode<synchronous>, transform_indices = @transform_13, window_bounds = array<i64: 1, 256>}, {pipeline_mode = #tpu.pipeline_mode<synchronous>, transform_indices = @transform_14, window_bounds = array<i64: 256, 128>}, {pipeline_mode = #tpu.pipeline_mode<synchronous>, transform_indices = @transform_15, window_bounds = array<i64: 1, 128>}, {pipeline_mode = #tpu.pipeline_mode<synchronous>, transform_indices = @transform_16, window_bounds = array<i64: 1, 128>}, {pipeline_mode = #tpu.pipeline_mode<synchronous>, transform_indices = @transform_17, window_bounds = array<i64: 1, 128>}, {transform_indices = @transform_18, window_bounds = array<i64: 1, 6, 128>}]} {
    %c0 = arith.constant 0 : index
    %c0_0 = arith.constant 0 : index
    %c0_1 = arith.constant 0 : index
    %0 = vector.load %arg1[%c0, %c0_0, %c0_1] : memref<1x6x128xf32, #tpu.memory_space<vmem>>, vector<1x6x128xf32>
    %1 = vector.shape_cast %0 : vector<1x6x128xf32> to vector<6x128xf32>
    %c0_2 = arith.constant 0 : index
    %c0_3 = arith.constant 0 : index
    %c0_4 = arith.constant 0 : index
    %2 = vector.load %arg2[%c0_2, %c0_3, %c0_4] : memref<1x8x128xf32, #tpu.memory_space<vmem>>, vector<1x8x128xf32>
    %3 = vector.shape_cast %2 : vector<1x8x128xf32> to vector<8x128xf32>
    %c0_5 = arith.constant 0 : index
    %c0_6 = arith.constant 0 : index
    %4 = vector.load %arg3[%c0_5, %c0_6] : memref<128x128xbf16, #tpu.memory_space<vmem>>, vector<128x128xbf16>
    %c0_7 = arith.constant 0 : index
    %c0_8 = arith.constant 0 : index
    %5 = vector.load %arg4[%c0_7, %c0_8] : memref<1x128xf32, #tpu.memory_space<vmem>>, vector<1x128xf32>
    %c0_9 = arith.constant 0 : index
    %c0_10 = arith.constant 0 : index
    %6 = vector.load %arg5[%c0_9, %c0_10] : memref<128x128xbf16, #tpu.memory_space<vmem>>, vector<128x128xbf16>
    %c0_11 = arith.constant 0 : index
    %c0_12 = arith.constant 0 : index
    %7 = vector.load %arg6[%c0_11, %c0_12] : memref<1x128xf32, #tpu.memory_space<vmem>>, vector<1x128xf32>
    %c0_13 = arith.constant 0 : index
    %c0_14 = arith.constant 0 : index
    %8 = vector.load %arg7[%c0_13, %c0_14] : memref<128x128xbf16, #tpu.memory_space<vmem>>, vector<128x128xbf16>
    %c0_15 = arith.constant 0 : index
    %c0_16 = arith.constant 0 : index
    %9 = vector.load %arg8[%c0_15, %c0_16] : memref<1x128xf32, #tpu.memory_space<vmem>>, vector<1x128xf32>
    %c0_17 = arith.constant 0 : index
    %c0_18 = arith.constant 0 : index
    %10 = vector.load %arg9[%c0_17, %c0_18] : memref<128x128xbf16, #tpu.memory_space<vmem>>, vector<128x128xbf16>
    %c0_19 = arith.constant 0 : index
    %c0_20 = arith.constant 0 : index
    %11 = vector.load %arg10[%c0_19, %c0_20] : memref<1x128xf32, #tpu.memory_space<vmem>>, vector<1x128xf32>
    %c0_21 = arith.constant 0 : index
    %c0_22 = arith.constant 0 : index
    %12 = vector.load %arg11[%c0_21, %c0_22] : memref<1x128xf32, #tpu.memory_space<vmem>>, vector<1x128xf32>
    %c0_23 = arith.constant 0 : index
    %c0_24 = arith.constant 0 : index
    %13 = vector.load %arg12[%c0_23, %c0_24] : memref<1x128xf32, #tpu.memory_space<vmem>>, vector<1x128xf32>
    %c0_25 = arith.constant 0 : index
    %c0_26 = arith.constant 0 : index
    %14 = vector.load %arg13[%c0_25, %c0_26] : memref<128x256xbf16, #tpu.memory_space<vmem>>, vector<128x256xbf16>
    %c0_27 = arith.constant 0 : index
    %c0_28 = arith.constant 0 : index
    %15 = vector.load %arg14[%c0_27, %c0_28] : memref<1x256xf32, #tpu.memory_space<vmem>>, vector<1x256xf32>
    %c0_29 = arith.constant 0 : index
    %c0_30 = arith.constant 0 : index
    %16 = vector.load %arg15[%c0_29, %c0_30] : memref<256x128xbf16, #tpu.memory_space<vmem>>, vector<256x128xbf16>
    %c0_31 = arith.constant 0 : index
    %c0_32 = arith.constant 0 : index
    %17 = vector.load %arg16[%c0_31, %c0_32] : memref<1x128xf32, #tpu.memory_space<vmem>>, vector<1x128xf32>
    %c0_33 = arith.constant 0 : index
    %c0_34 = arith.constant 0 : index
    %18 = vector.load %arg17[%c0_33, %c0_34] : memref<1x128xf32, #tpu.memory_space<vmem>>, vector<1x128xf32>
    %c0_35 = arith.constant 0 : index
    %c0_36 = arith.constant 0 : index
    %19 = vector.load %arg18[%c0_35, %c0_36] : memref<1x128xf32, #tpu.memory_space<vmem>>, vector<1x128xf32>
    %20 = arith.truncf %1 : vector<6x128xf32> to vector<6x128xbf16>
    %21 = arith.truncf %3 : vector<8x128xf32> to vector<8x128xbf16>
    %cst = arith.constant dense<0.000000e+00> : vector<6x128xf32>
    %22 = tpu.matmul %20, %4, %cst {dimension_numbers = #tpu.dot_dimension_numbers<[1], [0], [0], [1], [0, 0, 1, 1], [], []>} : vector<6x128xbf16>, vector<128x128xbf16>, vector<6x128xf32> -> vector<6x128xf32>
    %23 = vector.broadcast %5 : vector<1x128xf32> to vector<6x128xf32>
    %24 = arith.addf %22, %23 : vector<6x128xf32>
    %cst_37 = arith.constant dense<0.000000e+00> : vector<8x128xf32>
    %25 = tpu.matmul %21, %6, %cst_37 {dimension_numbers = #tpu.dot_dimension_numbers<[1], [0], [0], [1], [0, 0, 1, 1], [], []>} : vector<8x128xbf16>, vector<128x128xbf16>, vector<8x128xf32> -> vector<8x128xf32>
    %26 = vector.broadcast %7 : vector<1x128xf32> to vector<8x128xf32>
    %27 = arith.addf %25, %26 : vector<8x128xf32>
    %cst_38 = arith.constant dense<0.000000e+00> : vector<8x128xf32>
    %28 = tpu.matmul %21, %8, %cst_38 {dimension_numbers = #tpu.dot_dimension_numbers<[1], [0], [0], [1], [0, 0, 1, 1], [], []>} : vector<8x128xbf16>, vector<128x128xbf16>, vector<8x128xf32> -> vector<8x128xf32>
    %29 = vector.broadcast %9 : vector<1x128xf32> to vector<8x128xf32>
    %30 = arith.addf %28, %29 : vector<8x128xf32>
    %cst_39 = arith.constant 0.176776692 : f32
    %31 = vector.broadcast %cst_39 : f32 to vector<6x128xf32>
    %32 = arith.mulf %24, %31 : vector<6x128xf32>
    %cst_40 = arith.constant 0.000000e+00 : f32
    %33 = vector.broadcast %cst_40 : f32 to vector<6x128xf32>
    %34 = vector.extract_strided_slice %32 {offsets = [0, 0], sizes = [6, 32], strides = [1, 1]} : vector<6x128xf32> to vector<6x32xf32>
    %35 = arith.truncf %34 : vector<6x32xf32> to vector<6x32xbf16>
    %36 = vector.extract_strided_slice %27 {offsets = [0, 0], sizes = [8, 32], strides = [1, 1]} : vector<8x128xf32> to vector<8x32xf32>
    %37 = arith.truncf %36 : vector<8x32xf32> to vector<8x32xbf16>
    %38 = vector.extract_strided_slice %30 {offsets = [0, 0], sizes = [8, 32], strides = [1, 1]} : vector<8x128xf32> to vector<8x32xf32>
    %39 = arith.truncf %38 : vector<8x32xf32> to vector<8x32xbf16>
    "tpu.trace_start"() <{level = 10 : i32, message = "qd,kd->qk"}> : () -> ()
    %cst_41 = arith.constant dense<0.000000e+00> : vector<6x8xf32>
    %40 = tpu.matmul %35, %37, %cst_41 {dimension_numbers = #tpu.dot_dimension_numbers<[1], [1], [0], [0], [0, 0, 1, 0], [], []>} : vector<6x32xbf16>, vector<8x32xbf16>, vector<6x8xf32> -> vector<6x8xf32>
    "tpu.trace_stop"() : () -> ()
    %cst_42 = arith.constant dense<0xFF800000> : vector<6xf32>
    %41 = vector.multi_reduction <maximumf>, %40, %cst_42 [1] : vector<6x8xf32> to vector<6xf32>
    %42 = vector.shape_cast %41 : vector<6xf32> to vector<6x1xf32>
    %43 = vector.broadcast %42 : vector<6x1xf32> to vector<6x8xf32>
    %44 = arith.subf %40, %43 : vector<6x8xf32>
    %45 = math.exp %44 : vector<6x8xf32>
    %cst_43 = arith.constant dense<0.000000e+00> : vector<6xf32>
    %46 = vector.multi_reduction <add>, %45, %cst_43 [1] : vector<6x8xf32> to vector<6xf32>
    %47 = vector.shape_cast %46 : vector<6xf32> to vector<6x1xf32>
    %48 = tpu.reciprocal %47 {approx = true} : vector<6x1xf32> -> vector<6x1xf32>
    %49 = vector.broadcast %48 : vector<6x1xf32> to vector<6x8xf32>
    %50 = arith.mulf %45, %49 : vector<6x8xf32>
    %51 = arith.truncf %50 : vector<6x8xf32> to vector<6x8xbf16>
    %cst_44 = arith.constant dense<0.000000e+00> : vector<6x32xf32>
    %52 = tpu.matmul %51, %39, %cst_44 {dimension_numbers = #tpu.dot_dimension_numbers<[1], [0], [0], [1], [0, 0, 1, 1], [], []>} : vector<6x8xbf16>, vector<8x32xbf16>, vector<6x32xf32> -> vector<6x32xf32>
    %53 = arith.truncf %52 : vector<6x32xf32> to vector<6x32xbf16>
    %54 = vector.extract_strided_slice %10 {offsets = [0, 0], sizes = [32, 128], strides = [1, 1]} : vector<128x128xbf16> to vector<32x128xbf16>
    %cst_45 = arith.constant dense<0.000000e+00> : vector<6x128xf32>
    %55 = tpu.matmul %53, %54, %cst_45 {dimension_numbers = #tpu.dot_dimension_numbers<[1], [0], [0], [1], [0, 0, 1, 1], [], []>} : vector<6x32xbf16>, vector<32x128xbf16>, vector<6x128xf32> -> vector<6x128xf32>
    %56 = arith.addf %33, %55 : vector<6x128xf32>
    %57 = vector.extract_strided_slice %32 {offsets = [0, 32], sizes = [6, 32], strides = [1, 1]} : vector<6x128xf32> to vector<6x32xf32>
    %58 = arith.truncf %57 : vector<6x32xf32> to vector<6x32xbf16>
    %59 = vector.extract_strided_slice %27 {offsets = [0, 32], sizes = [8, 32], strides = [1, 1]} : vector<8x128xf32> to vector<8x32xf32>
    %60 = arith.truncf %59 : vector<8x32xf32> to vector<8x32xbf16>
    %61 = vector.extract_strided_slice %30 {offsets = [0, 32], sizes = [8, 32], strides = [1, 1]} : vector<8x128xf32> to vector<8x32xf32>
    %62 = arith.truncf %61 : vector<8x32xf32> to vector<8x32xbf16>
    "tpu.trace_start"() <{level = 10 : i32, message = "qd,kd->qk"}> : () -> ()
    %cst_46 = arith.constant dense<0.000000e+00> : vector<6x8xf32>
    %63 = tpu.matmul %58, %60, %cst_46 {dimension_numbers = #tpu.dot_dimension_numbers<[1], [1], [0], [0], [0, 0, 1, 0], [], []>} : vector<6x32xbf16>, vector<8x32xbf16>, vector<6x8xf32> -> vector<6x8xf32>
    "tpu.trace_stop"() : () -> ()
    %cst_47 = arith.constant dense<0xFF800000> : vector<6xf32>
    %64 = vector.multi_reduction <maximumf>, %63, %cst_47 [1] : vector<6x8xf32> to vector<6xf32>
    %65 = vector.shape_cast %64 : vector<6xf32> to vector<6x1xf32>
    %66 = vector.broadcast %65 : vector<6x1xf32> to vector<6x8xf32>
    %67 = arith.subf %63, %66 : vector<6x8xf32>
    %68 = math.exp %67 : vector<6x8xf32>
    %cst_48 = arith.constant dense<0.000000e+00> : vector<6xf32>
    %69 = vector.multi_reduction <add>, %68, %cst_48 [1] : vector<6x8xf32> to vector<6xf32>
    %70 = vector.shape_cast %69 : vector<6xf32> to vector<6x1xf32>
    %71 = tpu.reciprocal %70 {approx = true} : vector<6x1xf32> -> vector<6x1xf32>
    %72 = vector.broadcast %71 : vector<6x1xf32> to vector<6x8xf32>
    %73 = arith.mulf %68, %72 : vector<6x8xf32>
    %74 = arith.truncf %73 : vector<6x8xf32> to vector<6x8xbf16>
    %cst_49 = arith.constant dense<0.000000e+00> : vector<6x32xf32>
    %75 = tpu.matmul %74, %62, %cst_49 {dimension_numbers = #tpu.dot_dimension_numbers<[1], [0], [0], [1], [0, 0, 1, 1], [], []>} : vector<6x8xbf16>, vector<8x32xbf16>, vector<6x32xf32> -> vector<6x32xf32>
    %76 = arith.truncf %75 : vector<6x32xf32> to vector<6x32xbf16>
    %77 = vector.extract_strided_slice %10 {offsets = [32, 0], sizes = [32, 128], strides = [1, 1]} : vector<128x128xbf16> to vector<32x128xbf16>
    %cst_50 = arith.constant dense<0.000000e+00> : vector<6x128xf32>
    %78 = tpu.matmul %76, %77, %cst_50 {dimension_numbers = #tpu.dot_dimension_numbers<[1], [0], [0], [1], [0, 0, 1, 1], [], []>} : vector<6x32xbf16>, vector<32x128xbf16>, vector<6x128xf32> -> vector<6x128xf32>
    %79 = arith.addf %56, %78 : vector<6x128xf32>
    %80 = vector.extract_strided_slice %32 {offsets = [0, 64], sizes = [6, 32], strides = [1, 1]} : vector<6x128xf32> to vector<6x32xf32>
    %81 = arith.truncf %80 : vector<6x32xf32> to vector<6x32xbf16>
    %82 = vector.extract_strided_slice %27 {offsets = [0, 64], sizes = [8, 32], strides = [1, 1]} : vector<8x128xf32> to vector<8x32xf32>
    %83 = arith.truncf %82 : vector<8x32xf32> to vector<8x32xbf16>
    %84 = vector.extract_strided_slice %30 {offsets = [0, 64], sizes = [8, 32], strides = [1, 1]} : vector<8x128xf32> to vector<8x32xf32>
    %85 = arith.truncf %84 : vector<8x32xf32> to vector<8x32xbf16>
    "tpu.trace_start"() <{level = 10 : i32, message = "qd,kd->qk"}> : () -> ()
    %cst_51 = arith.constant dense<0.000000e+00> : vector<6x8xf32>
    %86 = tpu.matmul %81, %83, %cst_51 {dimension_numbers = #tpu.dot_dimension_numbers<[1], [1], [0], [0], [0, 0, 1, 0], [], []>} : vector<6x32xbf16>, vector<8x32xbf16>, vector<6x8xf32> -> vector<6x8xf32>
    "tpu.trace_stop"() : () -> ()
    %cst_52 = arith.constant dense<0xFF800000> : vector<6xf32>
    %87 = vector.multi_reduction <maximumf>, %86, %cst_52 [1] : vector<6x8xf32> to vector<6xf32>
    %88 = vector.shape_cast %87 : vector<6xf32> to vector<6x1xf32>
    %89 = vector.broadcast %88 : vector<6x1xf32> to vector<6x8xf32>
    %90 = arith.subf %86, %89 : vector<6x8xf32>
    %91 = math.exp %90 : vector<6x8xf32>
    %cst_53 = arith.constant dense<0.000000e+00> : vector<6xf32>
    %92 = vector.multi_reduction <add>, %91, %cst_53 [1] : vector<6x8xf32> to vector<6xf32>
    %93 = vector.shape_cast %92 : vector<6xf32> to vector<6x1xf32>
    %94 = tpu.reciprocal %93 {approx = true} : vector<6x1xf32> -> vector<6x1xf32>
    %95 = vector.broadcast %94 : vector<6x1xf32> to vector<6x8xf32>
    %96 = arith.mulf %91, %95 : vector<6x8xf32>
    %97 = arith.truncf %96 : vector<6x8xf32> to vector<6x8xbf16>
    %cst_54 = arith.constant dense<0.000000e+00> : vector<6x32xf32>
    %98 = tpu.matmul %97, %85, %cst_54 {dimension_numbers = #tpu.dot_dimension_numbers<[1], [0], [0], [1], [0, 0, 1, 1], [], []>} : vector<6x8xbf16>, vector<8x32xbf16>, vector<6x32xf32> -> vector<6x32xf32>
    %99 = arith.truncf %98 : vector<6x32xf32> to vector<6x32xbf16>
    %100 = vector.extract_strided_slice %10 {offsets = [64, 0], sizes = [32, 128], strides = [1, 1]} : vector<128x128xbf16> to vector<32x128xbf16>
    %cst_55 = arith.constant dense<0.000000e+00> : vector<6x128xf32>
    %101 = tpu.matmul %99, %100, %cst_55 {dimension_numbers = #tpu.dot_dimension_numbers<[1], [0], [0], [1], [0, 0, 1, 1], [], []>} : vector<6x32xbf16>, vector<32x128xbf16>, vector<6x128xf32> -> vector<6x128xf32>
    %102 = arith.addf %79, %101 : vector<6x128xf32>
    %103 = vector.extract_strided_slice %32 {offsets = [0, 96], sizes = [6, 32], strides = [1, 1]} : vector<6x128xf32> to vector<6x32xf32>
    %104 = arith.truncf %103 : vector<6x32xf32> to vector<6x32xbf16>
    %105 = vector.extract_strided_slice %27 {offsets = [0, 96], sizes = [8, 32], strides = [1, 1]} : vector<8x128xf32> to vector<8x32xf32>
    %106 = arith.truncf %105 : vector<8x32xf32> to vector<8x32xbf16>
    %107 = vector.extract_strided_slice %30 {offsets = [0, 96], sizes = [8, 32], strides = [1, 1]} : vector<8x128xf32> to vector<8x32xf32>
    %108 = arith.truncf %107 : vector<8x32xf32> to vector<8x32xbf16>
    "tpu.trace_start"() <{level = 10 : i32, message = "qd,kd->qk"}> : () -> ()
    %cst_56 = arith.constant dense<0.000000e+00> : vector<6x8xf32>
    %109 = tpu.matmul %104, %106, %cst_56 {dimension_numbers = #tpu.dot_dimension_numbers<[1], [1], [0], [0], [0, 0, 1, 0], [], []>} : vector<6x32xbf16>, vector<8x32xbf16>, vector<6x8xf32> -> vector<6x8xf32>
    "tpu.trace_stop"() : () -> ()
    %cst_57 = arith.constant dense<0xFF800000> : vector<6xf32>
    %110 = vector.multi_reduction <maximumf>, %109, %cst_57 [1] : vector<6x8xf32> to vector<6xf32>
    %111 = vector.shape_cast %110 : vector<6xf32> to vector<6x1xf32>
    %112 = vector.broadcast %111 : vector<6x1xf32> to vector<6x8xf32>
    %113 = arith.subf %109, %112 : vector<6x8xf32>
    %114 = math.exp %113 : vector<6x8xf32>
    %cst_58 = arith.constant dense<0.000000e+00> : vector<6xf32>
    %115 = vector.multi_reduction <add>, %114, %cst_58 [1] : vector<6x8xf32> to vector<6xf32>
    %116 = vector.shape_cast %115 : vector<6xf32> to vector<6x1xf32>
    %117 = tpu.reciprocal %116 {approx = true} : vector<6x1xf32> -> vector<6x1xf32>
    %118 = vector.broadcast %117 : vector<6x1xf32> to vector<6x8xf32>
    %119 = arith.mulf %114, %118 : vector<6x8xf32>
    %120 = arith.truncf %119 : vector<6x8xf32> to vector<6x8xbf16>
    %cst_59 = arith.constant dense<0.000000e+00> : vector<6x32xf32>
    %121 = tpu.matmul %120, %108, %cst_59 {dimension_numbers = #tpu.dot_dimension_numbers<[1], [0], [0], [1], [0, 0, 1, 1], [], []>} : vector<6x8xbf16>, vector<8x32xbf16>, vector<6x32xf32> -> vector<6x32xf32>
    %122 = arith.truncf %121 : vector<6x32xf32> to vector<6x32xbf16>
    %123 = vector.extract_strided_slice %10 {offsets = [96, 0], sizes = [32, 128], strides = [1, 1]} : vector<128x128xbf16> to vector<32x128xbf16>
    %cst_60 = arith.constant dense<0.000000e+00> : vector<6x128xf32>
    %124 = tpu.matmul %122, %123, %cst_60 {dimension_numbers = #tpu.dot_dimension_numbers<[1], [0], [0], [1], [0, 0, 1, 1], [], []>} : vector<6x32xbf16>, vector<32x128xbf16>, vector<6x128xf32> -> vector<6x128xf32>
    %125 = arith.addf %102, %124 : vector<6x128xf32>
    %126 = arith.addf %1, %125 : vector<6x128xf32>
    %127 = vector.broadcast %11 : vector<1x128xf32> to vector<6x128xf32>
    %128 = arith.addf %126, %127 : vector<6x128xf32>
    %cst_61 = arith.constant dense<0.000000e+00> : vector<6xf32>
    %129 = vector.multi_reduction <add>, %128, %cst_61 [1] : vector<6x128xf32> to vector<6xf32>
    %130 = vector.shape_cast %129 : vector<6xf32> to vector<6x1xf32>
    %cst_62 = arith.constant 1.280000e+02 : f32
    %131 = vector.broadcast %cst_62 : f32 to vector<6x1xf32>
    %132 = arith.divf %130, %131 : vector<6x1xf32>
    %133 = vector.broadcast %132 : vector<6x1xf32> to vector<6x128xf32>
    %134 = arith.subf %128, %133 : vector<6x128xf32>
    %135 = arith.mulf %134, %134 : vector<6x128xf32>
    %cst_63 = arith.constant dense<0.000000e+00> : vector<6xf32>
    %136 = vector.multi_reduction <add>, %135, %cst_63 [1] : vector<6x128xf32> to vector<6xf32>
    %137 = vector.shape_cast %136 : vector<6xf32> to vector<6x1xf32>
    %cst_64 = arith.constant 1.280000e+02 : f32
    %138 = vector.broadcast %cst_64 : f32 to vector<6x1xf32>
    %139 = arith.divf %137, %138 : vector<6x1xf32>
    %140 = vector.broadcast %132 : vector<6x1xf32> to vector<6x128xf32>
    %141 = arith.subf %128, %140 : vector<6x128xf32>
    %cst_65 = arith.constant 9.99999974E-6 : f32
    %142 = vector.broadcast %cst_65 : f32 to vector<6x1xf32>
    %143 = arith.addf %139, %142 : vector<6x1xf32>
    %144 = math.rsqrt %143 : vector<6x1xf32>
    %145 = vector.broadcast %144 : vector<6x1xf32> to vector<6x128xf32>
    %146 = arith.mulf %141, %145 : vector<6x128xf32>
    %147 = vector.broadcast %12 : vector<1x128xf32> to vector<6x128xf32>
    %148 = arith.mulf %146, %147 : vector<6x128xf32>
    %149 = vector.broadcast %13 : vector<1x128xf32> to vector<6x128xf32>
    %150 = arith.addf %148, %149 : vector<6x128xf32>
    %151 = arith.truncf %150 : vector<6x128xf32> to vector<6x128xbf16>
    %cst_66 = arith.constant dense<0.000000e+00> : vector<6x256xf32>
    %152 = tpu.matmul %151, %14, %cst_66 {dimension_numbers = #tpu.dot_dimension_numbers<[1], [0], [0], [1], [0, 0, 1, 1], [], []>} : vector<6x128xbf16>, vector<128x256xbf16>, vector<6x256xf32> -> vector<6x256xf32>
    %153 = vector.broadcast %15 : vector<1x256xf32> to vector<6x256xf32>
    %154 = arith.addf %152, %153 : vector<6x256xf32>
    %cst_67 = arith.constant 0.000000e+00 : f32
    %155 = vector.broadcast %cst_67 : f32 to vector<6x256xf32>
    %156 = arith.maximumf %154, %155 : vector<6x256xf32>
    %157 = arith.truncf %156 : vector<6x256xf32> to vector<6x256xbf16>
    %cst_68 = arith.constant dense<0.000000e+00> : vector<6x128xf32>
    %158 = tpu.matmul %157, %16, %cst_68 {dimension_numbers = #tpu.dot_dimension_numbers<[1], [0], [0], [1], [0, 0, 1, 1], [], []>} : vector<6x256xbf16>, vector<256x128xbf16>, vector<6x128xf32> -> vector<6x128xf32>
    %159 = vector.broadcast %17 : vector<1x128xf32> to vector<6x128xf32>
    %160 = arith.addf %158, %159 : vector<6x128xf32>
    %161 = arith.addf %150, %160 : vector<6x128xf32>
    %cst_69 = arith.constant dense<0.000000e+00> : vector<6xf32>
    %162 = vector.multi_reduction <add>, %161, %cst_69 [1] : vector<6x128xf32> to vector<6xf32>
    %163 = vector.shape_cast %162 : vector<6xf32> to vector<6x1xf32>
    %cst_70 = arith.constant 1.280000e+02 : f32
    %164 = vector.broadcast %cst_70 : f32 to vector<6x1xf32>
    %165 = arith.divf %163, %164 : vector<6x1xf32>
    %166 = vector.broadcast %165 : vector<6x1xf32> to vector<6x128xf32>
    %167 = arith.subf %161, %166 : vector<6x128xf32>
    %168 = arith.mulf %167, %167 : vector<6x128xf32>
    %cst_71 = arith.constant dense<0.000000e+00> : vector<6xf32>
    %169 = vector.multi_reduction <add>, %168, %cst_71 [1] : vector<6x128xf32> to vector<6xf32>
    %170 = vector.shape_cast %169 : vector<6xf32> to vector<6x1xf32>
    %cst_72 = arith.constant 1.280000e+02 : f32
    %171 = vector.broadcast %cst_72 : f32 to vector<6x1xf32>
    %172 = arith.divf %170, %171 : vector<6x1xf32>
    %173 = vector.broadcast %165 : vector<6x1xf32> to vector<6x128xf32>
    %174 = arith.subf %161, %173 : vector<6x128xf32>
    %cst_73 = arith.constant 9.99999974E-6 : f32
    %175 = vector.broadcast %cst_73 : f32 to vector<6x1xf32>
    %176 = arith.addf %172, %175 : vector<6x1xf32>
    %177 = math.rsqrt %176 : vector<6x1xf32>
    %178 = vector.broadcast %177 : vector<6x1xf32> to vector<6x128xf32>
    %179 = arith.mulf %174, %178 : vector<6x128xf32>
    %180 = vector.broadcast %18 : vector<1x128xf32> to vector<6x128xf32>
    %181 = arith.mulf %179, %180 : vector<6x128xf32>
    %182 = vector.broadcast %19 : vector<1x128xf32> to vector<6x128xf32>
    %183 = arith.addf %181, %182 : vector<6x128xf32>
    %c0_74 = arith.constant 0 : index
    %c0_75 = arith.constant 0 : index
    %c0_76 = arith.constant 0 : index
    %184 = vector.load %arg19[%c0_74, %c0_75, %c0_76] : memref<1x6x128xf32, #tpu.memory_space<vmem>>, vector<1x6x128xf32>
    %185 = vector.shape_cast %184 : vector<1x6x128xf32> to vector<6x128xf32>
    %186 = vector.shape_cast %183 : vector<6x128xf32> to vector<1x6x128xf32>
    tpu.vector_store %arg19[%c0_74, %c0_75, %c0_76], %186 {strides = array<i32>} : memref<1x6x128xf32, #tpu.memory_space<vmem>>, vector<1x6x128xf32>,
    return
  }
  func.func @transform_0(%arg0: i32) -> (i32, i32, i32) {
    %c0_i32 = arith.constant 0 : i32
    %c0_i32_0 = arith.constant 0 : i32
    %c0_i32_1 = arith.constant 0 : i32
    return %arg0, %c0_i32, %c0_i32_0 : i32, i32, i32
  }
  func.func @transform_1(%arg0: i32) -> (i32, i32, i32) {
    %c0_i32 = arith.constant 0 : i32
    %c0_i32_0 = arith.constant 0 : i32
    %c0_i32_1 = arith.constant 0 : i32
    return %arg0, %c0_i32, %c0_i32_0 : i32, i32, i32
  }
  func.func @transform_2(%arg0: i32) -> (i32, i32) {
    %c0_i32 = arith.constant 0 : i32
    %c0_i32_0 = arith.constant 0 : i32
    %c0_i32_1 = arith.constant 0 : i32
    return %c0_i32, %c0_i32_0 : i32, i32
  }
  func.func @transform_3(%arg0: i32) -> (i32, i32) {
    %c0_i32 = arith.constant 0 : i32
    %c0_i32_0 = arith.constant 0 : i32
    %c0_i32_1 = arith.constant 0 : i32
    return %c0_i32, %c0_i32_0 : i32, i32
  }
  func.func @transform_4(%arg0: i32) -> (i32, i32) {
    %c0_i32 = arith.constant 0 : i32
    %c0_i32_0 = arith.constant 0 : i32
    %c0_i32_1 = arith.constant 0 : i32
    return %c0_i32, %c0_i32_0 : i32, i32
  }
  func.func @transform_5(%arg0: i32) -> (i32, i32) {
    %c0_i32 = arith.constant 0 : i32
    %c0_i32_0 = arith.constant 0 : i32
    %c0_i32_1 = arith.constant 0 : i32
    return %c0_i32, %c0_i32_0 : i32, i32
  }
  func.func @transform_6(%arg0: i32) -> (i32, i32) {
    %c0_i32 = arith.constant 0 : i32
    %c0_i32_0 = arith.constant 0 : i32
    %c0_i32_1 = arith.constant 0 : i32
    return %c0_i32, %c0_i32_0 : i32, i32
  }
  func.func @transform_7(%arg0: i32) -> (i32, i32) {
    %c0_i32 = arith.constant 0 : i32
    %c0_i32_0 = arith.constant 0 : i32
    %c0_i32_1 = arith.constant 0 : i32
    return %c0_i32, %c0_i32_0 : i32, i32
  }
  func.func @transform_8(%arg0: i32) -> (i32, i32) {
    %c0_i32 = arith.constant 0 : i32
    %c0_i32_0 = arith.constant 0 : i32
    %c0_i32_1 = arith.constant 0 : i32
    return %c0_i32, %c0_i32_0 : i32, i32
  }
  func.func @transform_9(%arg0: i32) -> (i32, i32) {
    %c0_i32 = arith.constant 0 : i32
    %c0_i32_0 = arith.constant 0 : i32
    %c0_i32_1 = arith.constant 0 : i32
    return %c0_i32, %c0_i32_0 : i32, i32
  }
  func.func @transform_10(%arg0: i32) -> (i32, i32) {
    %c0_i32 = arith.constant 0 : i32
    %c0_i32_0 = arith.constant 0 : i32
    %c0_i32_1 = arith.constant 0 : i32
    return %c0_i32, %c0_i32_0 : i32, i32
  }
  func.func @transform_11(%arg0: i32) -> (i32, i32) {
    %c0_i32 = arith.constant 0 : i32
    %c0_i32_0 = arith.constant 0 : i32
    %c0_i32_1 = arith.constant 0 : i32
    return %c0_i32, %c0_i32_0 : i32, i32
  }
  func.func @transform_12(%arg0: i32) -> (i32, i32) {
    %c0_i32 = arith.constant 0 : i32
    %c0_i32_0 = arith.constant 0 : i32
    %c0_i32_1 = arith.constant 0 : i32
    return %c0_i32, %c0_i32_0 : i32, i32
  }
  func.func @transform_13(%arg0: i32) -> (i32, i32) {
    %c0_i32 = arith.constant 0 : i32
    %c0_i32_0 = arith.constant 0 : i32
    %c0_i32_1 = arith.constant 0 : i32
    return %c0_i32, %c0_i32_0 : i32, i32
  }
  func.func @transform_14(%arg0: i32) -> (i32, i32) {
    %c0_i32 = arith.constant 0 : i32
    %c0_i32_0 = arith.constant 0 : i32
    %c0_i32_1 = arith.constant 0 : i32
    return %c0_i32, %c0_i32_0 : i32, i32
  }
  func.func @transform_15(%arg0: i32) -> (i32, i32) {
    %c0_i32 = arith.constant 0 : i32
    %c0_i32_0 = arith.constant 0 : i32
    %c0_i32_1 = arith.constant 0 : i32
    return %c0_i32, %c0_i32_0 : i32, i32
  }
  func.func @transform_16(%arg0: i32) -> (i32, i32) {
    %c0_i32 = arith.constant 0 : i32
    %c0_i32_0 = arith.constant 0 : i32
    %c0_i32_1 = arith.constant 0 : i32
    return %c0_i32, %c0_i32_0 : i32, i32
  }
  func.func @transform_17(%arg0: i32) -> (i32, i32) {
    %c0_i32 = arith.constant 0 : i32
    %c0_i32_0 = arith.constant 0 : i32
    %c0_i32_1 = arith.constant 0 : i32
    return %c0_i32, %c0_i32_0 : i32, i32
  }
  func.func @transform_18(%arg0: i32) -> (i32, i32, i32) {
    %c0_i32 = arith.constant 0 : i32
    %c0_i32_0 = arith.constant 0 : i32
    %c0_i32_1 = arith.constant 0 : i32
    return %arg0, %c0_i32, %c0_i32_0 : i32, i32, i32
  }
}

</mosaic_0001>

<llo_original>
// kernel: transformer_decoder_forward.2
$region0: #{transformer_decoder_forward.2}
  #allocation0 [shape = 'u32[]', space=smem, size = 0x4, offset = 0x4, fixed_abs, tag = 'smem constant byte address 0x4 - core index']
  #allocation1 [shape = 'u32[144,128]{1,0:T(1,128)}', space=vmem, size = 0x12000, scoped, tag = 'internal scratch']
  %s0 = inlined_call_operand.vmem [shape: f32[2,6,128], index: 0, kind: input, shape index: {}]
  %s1 = inlined_call_operand.vmem [shape: f32[2,8,128], index: 1, kind: input, shape index: {}]
  %s2 = inlined_call_operand.hbm [shape: bf16[128,128], index: 2, kind: input, shape index: {}]
  %s3 = inlined_call_operand.vmem [shape: f32[1,128], index: 3, kind: input, shape index: {}]
  %s4 = inlined_call_operand.hbm [shape: bf16[128,128], index: 4, kind: input, shape index: {}]
  %s5 = inlined_call_operand.vmem [shape: f32[1,128], index: 5, kind: input, shape index: {}]
  %s6 = inlined_call_operand.hbm [shape: bf16[128,128], index: 6, kind: input, shape index: {}]
  %s7 = inlined_call_operand.vmem [shape: f32[1,128], index: 7, kind: input, shape index: {}]
  %s8 = inlined_call_operand.hbm [shape: bf16[128,128], index: 8, kind: input, shape index: {}]
  %s9 = inlined_call_operand.vmem [shape: f32[1,128], index: 9, kind: input, shape index: {}]
  %s10 = inlined_call_operand.vmem [shape: f32[1,128], index: 10, kind: input, shape index: {}]
  %s11 = inlined_call_operand.vmem [shape: f32[1,128], index: 11, kind: input, shape index: {}]
  %s12 = inlined_call_operand.hbm [shape: bf16[128,256], index: 12, kind: input, shape index: {}]
  %s13 = inlined_call_operand.vmem [shape: f32[1,256], index: 13, kind: input, shape index: {}]
  %s14 = inlined_call_operand.hbm [shape: bf16[256,128], index: 14, kind: input, shape index: {}]
  %s15 = inlined_call_operand.vmem [shape: f32[1,128], index: 15, kind: input, shape index: {}]
  %s16 = inlined_call_operand.vmem [shape: f32[1,128], index: 16, kind: input, shape index: {}]
  %s17 = inlined_call_operand.vmem [shape: f32[1,128], index: 17, kind: input, shape index: {}]
  %s18 = inlined_call_operand.vmem [shape: f32[2,6,128], index: 18, kind: output, shape index: {}]
  %s19 = sld [smem:[#allocation0]]
  $region129: #{transformer_decoder_forward.2} parent=0
    _
  %s21 = ssub.s32 1, %s19
  %s22 = scalar_select 0, %s21, %s19
  $region1: #{transformer_decoder_forward.2} parent=0
    #allocation2 [shape = 'u8[32768]{0}', space=vmem, size = 0x8000, scoped, tag = 'input window, operand 2, single buffered']
    #allocation3 [shape = 's32[2]{0}', space=sflag, size = 0x8, scoped, tag = 'scoped memory for transformer_decoder_forward.2']
    #allocation4 [shape = 'u8[32768]{0}', space=vmem, size = 0x8000, scoped, tag = 'input window, operand 4, single buffered']
    #allocation5 [shape = 's32[1]{0}', space=sflag, size = 0x4, scoped, tag = 'scoped memory for transformer_decoder_forward.2']
    #allocation6 [shape = 'u8[32768]{0}', space=vmem, size = 0x8000, scoped, tag = 'input window, operand 6, single buffered']
    #allocation7 [shape = 'u8[32768]{0}', space=vmem, size = 0x8000, scoped, tag = 'input window, operand 8, single buffered']
    #allocation8 [shape = 's32[1]{0}', space=sflag, size = 0x4, scoped, tag = 'scoped memory for transformer_decoder_forward.2']
    #allocation9 [shape = 'u8[65536]{0}', space=vmem, size = 0x10000, scoped, tag = 'input window, operand 12, single buffered']
    #allocation10 [shape = 'u8[65536]{0}', space=vmem, size = 0x10000, scoped, tag = 'input window, operand 14, single buffered']
    #allocation11 [shape = 's32[1]{0}', space=sflag, size = 0x4, scoped, tag = 'scoped memory for transformer_decoder_forward.2']
    %23 = vsyncpa [#allocation3], 0
    %24 = vsyncpa [#allocation5], 0
    %25 = vsyncpa [#allocation8], 0
    %26 = vsyncpa [#allocation11], 0
    loop: start=0, step=1, limit=4
    $region2: #{transformer_decoder_forward.2} parent=1 // loop_pre_header
      _
    $region3: #{transformer_decoder_forward.2} parent=1 // loop_header
      %s28 = sphi 0, %s32
      %p29 = scmp.ge.s32.totalorder %s28, 4
      %s38 = sphi 0, %s40
      %s41 = sphi 0, %s38
      %s42 = sphi 0, %s41
      %s58 = sphi 0, %s42
      %s64 = sphi 0, %s66
      %s67 = sphi 0, %s64
      %s68 = sphi 0, %s67
      %s84 = sphi 0, %s68
      %s88 = sphi 0, %s88
      %s90 = sphi 0, %s88
      %s91 = sphi 0, %s90
      %s105 = sphi 0, %s91
      %s109 = sphi 0, %s109
      %s111 = sphi 0, %s109
      %s112 = sphi 0, %s111
      %s126 = sphi 0, %s112
      %s130 = sphi 0, %s130
      %s132 = sphi 0, %s130
      %s133 = sphi 0, %s132
      %s147 = sphi 0, %s133
      %s151 = sphi 0, %s151
      %s153 = sphi 0, %s151
      %s154 = sphi 0, %s153
      %s168 = sphi 0, %s154
      %s172 = sphi 0, %s172
      %s174 = sphi 0, %s172
      %s175 = sphi 0, %s174
      %s189 = sphi 0, %s175
      %s193 = sphi 0, %s193
      %s195 = sphi 0, %s193
      %s196 = sphi 0, %s195
      %s210 = sphi 0, %s196
      %s214 = sphi 0, %s214
      %s216 = sphi 0, %s214
      %s217 = sphi 0, %s216
      %s231 = sphi 0, %s217
      %s235 = sphi 0, %s235
      %s237 = sphi 0, %s235
      %s238 = sphi 0, %s237
      %s252 = sphi 0, %s238
      %s256 = sphi 0, %s256
      %s258 = sphi 0, %s256
      %s259 = sphi 0, %s258
      %s273 = sphi 0, %s259
      %s277 = sphi 0, %s277
      %s279 = sphi 0, %s277
      %s280 = sphi 0, %s279
      %s294 = sphi 0, %s280
      %s298 = sphi 0, %s298
      %s300 = sphi 0, %s298
      %s301 = sphi 0, %s300
      %s315 = sphi 0, %s301
      %s319 = sphi 0, %s319
      %s321 = sphi 0, %s319
      %s322 = sphi 0, %s321
      %s336 = sphi 0, %s322
      %s340 = sphi 0, %s340
      %s342 = sphi 0, %s340
      %s343 = sphi 0, %s342
      %s357 = sphi 0, %s343
      %s361 = sphi 0, %s361
      %s363 = sphi 0, %s361
      %s364 = sphi 0, %s363
      %s378 = sphi 0, %s364
      %s382 = sphi 0, %s382
      %s384 = sphi 0, %s382
      %s385 = sphi 0, %s384
      %s399 = sphi 0, %s385
      %s403 = sphi 0, %s403
      %s405 = sphi 0, %s403
      %s406 = sphi 0, %s405
      %s420 = sphi 0, %s406
      %s426 = sphi 0, %s428
      %s429 = sphi 0, %s426
      %s430 = sphi 0, %s429
      %s446 = sphi 0, %s430
    $region4: #{transformer_decoder_forward.2} parent=1 // loop_header_branch
      %31 = sbr.rel (%p29) target = $region8
    $region5: #{transformer_decoder_forward.2} parent=1 // loop_body
      %s33 = ssub.s32 %s28, 1
      %s34 = ssub.s32 %s28, 2
      %s35 = sadd.s32 %s28, 1
      %s36 = ssub.s32 %s28, %s35
      %p37 = scmp.eq.s32.totalorder %s36, 0
      %s39 = sadd.s32 %s38, 1
      %s40 = scalar_select %p37, %s38, %s39
      %p43 = pneg %p37
      %p44 = scmp.eq.s32.totalorder %s28, 1
      %p45 = por %p43, %p44
      %p46 = scmp.ne.s32.totalorder %s38, %s41
      %p47 = scmp.eq.s32.totalorder %s28, 0
      %p48 = por %p46, %p47
      %p49 = scmp.ne.s32.totalorder %s38, %s41
      %p50 = scmp.eq.s32.totalorder %s33, 1
      %p51 = por %p49, %p50
      %p52 = scmp.ne.s32.totalorder %s41, %s42
      %p53 = scmp.eq.s32.totalorder %s33, 0
      %p54 = por %p52, %p53
      %p55 = scmp.ne.s32.totalorder %s41, %s42
      %p56 = scmp.eq.s32.totalorder %s34, 1
      %p57 = por %p55, %p56
      %p59 = scmp.ne.s32.totalorder %s42, %s58
      %p60 = scmp.eq.s32.totalorder %s34, 0
      %p61 = por %p59, %p60
      %s62 = ssub.s32 %s28, %s35
      %p63 = scmp.eq.s32.totalorder %s62, 0
      %s65 = sadd.s32 %s64, 1
      %s66 = scalar_select %p63, %s64, %s65
      %p69 = pneg %p63
      %p70 = scmp.eq.s32.totalorder %s28, 1
      %p71 = por %p69, %p70
      %p72 = scmp.ne.s32.totalorder %s64, %s67
      %p73 = scmp.eq.s32.totalorder %s28, 0
      %p74 = por %p72, %p73
      %p75 = scmp.ne.s32.totalorder %s64, %s67
      %p76 = scmp.eq.s32.totalorder %s33, 1
      %p77 = por %p75, %p76
      %p78 = scmp.ne.s32.totalorder %s67, %s68
      %p79 = scmp.eq.s32.totalorder %s33, 0
      %p80 = por %p78, %p79
      %p81 = scmp.ne.s32.totalorder %s67, %s68
      %p82 = scmp.eq.s32.totalorder %s34, 1
      %p83 = por %p81, %p82
      %p85 = scmp.ne.s32.totalorder %s68, %s84
      %p86 = scmp.eq.s32.totalorder %s34, 0
      %p87 = por %p85, %p86
      %s89 = sadd.s32 %s88, 1
      %p92 = scmp.eq.s32.totalorder %s28, 1
      %p93 = scmp.ne.s32.totalorder %s88, %s90
      %p94 = scmp.eq.s32.totalorder %s28, 0
      %p95 = por %p93, %p94
      %p96 = scmp.ne.s32.totalorder %s88, %s90
      %p97 = scmp.eq.s32.totalorder %s33, 1
      %p98 = por %p96, %p97
      %p99 = scmp.ne.s32.totalorder %s90, %s91
      %p100 = scmp.eq.s32.totalorder %s33, 0
      %p101 = por %p99, %p100
      %p102 = scmp.ne.s32.totalorder %s90, %s91
      %p103 = scmp.eq.s32.totalorder %s34, 1
      %p104 = por %p102, %p103
      %p106 = scmp.ne.s32.totalorder %s91, %s105
      %p107 = scmp.eq.s32.totalorder %s34, 0
      %p108 = por %p106, %p107
      %s110 = sadd.s32 %s109, 1
      %p113 = scmp.eq.s32.totalorder %s28, 1
      %p114 = scmp.ne.s32.totalorder %s109, %s111
      %p115 = scmp.eq.s32.totalorder %s28, 0
      %p116 = por %p114, %p115
      %p117 = scmp.ne.s32.totalorder %s109, %s111
      %p118 = scmp.eq.s32.totalorder %s33, 1
      %p119 = por %p117, %p118
      %p120 = scmp.ne.s32.totalorder %s111, %s112
      %p121 = scmp.eq.s32.totalorder %s33, 0
      %p122 = por %p120, %p121
      %p123 = scmp.ne.s32.totalorder %s111, %s112
      %p124 = scmp.eq.s32.totalorder %s34, 1
      %p125 = por %p123, %p124
      %p127 = scmp.ne.s32.totalorder %s112, %s126
      %p128 = scmp.eq.s32.totalorder %s34, 0
      %p129 = por %p127, %p128
      %s131 = sadd.s32 %s130, 1
      %p134 = scmp.eq.s32.totalorder %s28, 1
      %p135 = scmp.ne.s32.totalorder %s130, %s132
      %p136 = scmp.eq.s32.totalorder %s28, 0
      %p137 = por %p135, %p136
      %p138 = scmp.ne.s32.totalorder %s130, %s132
      %p139 = scmp.eq.s32.totalorder %s33, 1
      %p140 = por %p138, %p139
      %p141 = scmp.ne.s32.totalorder %s132, %s133
      %p142 = scmp.eq.s32.totalorder %s33, 0
      %p143 = por %p141, %p142
      %p144 = scmp.ne.s32.totalorder %s132, %s133
      %p145 = scmp.eq.s32.totalorder %s34, 1
      %p146 = por %p144, %p145
      %p148 = scmp.ne.s32.totalorder %s133, %s147
      %p149 = scmp.eq.s32.totalorder %s34, 0
      %p150 = por %p148, %p149
      %s152 = sadd.s32 %s151, 1
      %p155 = scmp.eq.s32.totalorder %s28, 1
      %p156 = scmp.ne.s32.totalorder %s151, %s153
      %p157 = scmp.eq.s32.totalorder %s28, 0
      %p158 = por %p156, %p157
      %p159 = scmp.ne.s32.totalorder %s151, %s153
      %p160 = scmp.eq.s32.totalorder %s33, 1
      %p161 = por %p159, %p160
      %p162 = scmp.ne.s32.totalorder %s153, %s154
      %p163 = scmp.eq.s32.totalorder %s33, 0
      %p164 = por %p162, %p163
      %p165 = scmp.ne.s32.totalorder %s153, %s154
      %p166 = scmp.eq.s32.totalorder %s34, 1
      %p167 = por %p165, %p166
      %p169 = scmp.ne.s32.totalorder %s154, %s168
      %p170 = scmp.eq.s32.totalorder %s34, 0
      %p171 = por %p169, %p170
      %s173 = sadd.s32 %s172, 1
      %p176 = scmp.eq.s32.totalorder %s28, 1
      %p177 = scmp.ne.s32.totalorder %s172, %s174
      %p178 = scmp.eq.s32.totalorder %s28, 0
      %p179 = por %p177, %p178
      %p180 = scmp.ne.s32.totalorder %s172, %s174
      %p181 = scmp.eq.s32.totalorder %s33, 1
      %p182 = por %p180, %p181
      %p183 = scmp.ne.s32.totalorder %s174, %s175
      %p184 = scmp.eq.s32.totalorder %s33, 0
      %p185 = por %p183, %p184
      %p186 = scmp.ne.s32.totalorder %s174, %s175
      %p187 = scmp.eq.s32.totalorder %s34, 1
      %p188 = por %p186, %p187
      %p190 = scmp.ne.s32.totalorder %s175, %s189
      %p191 = scmp.eq.s32.totalorder %s34, 0
      %p192 = por %p190, %p191
      %s194 = sadd.s32 %s193, 1
      %p197 = scmp.eq.s32.totalorder %s28, 1
      %p198 = scmp.ne.s32.totalorder %s193, %s195
      %p199 = scmp.eq.s32.totalorder %s28, 0
      %p200 = por %p198, %p199
      %p201 = scmp.ne.s32.totalorder %s193, %s195
      %p202 = scmp.eq.s32.totalorder %s33, 1
      %p203 = por %p201, %p202
      %p204 = scmp.ne.s32.totalorder %s195, %s196
      %p205 = scmp.eq.s32.totalorder %s33, 0
      %p206 = por %p204, %p205
      %p207 = scmp.ne.s32.totalorder %s195, %s196
      %p208 = scmp.eq.s32.totalorder %s34, 1
      %p209 = por %p207, %p208
      %p211 = scmp.ne.s32.totalorder %s196, %s210
      %p212 = scmp.eq.s32.totalorder %s34, 0
      %p213 = por %p211, %p212
      %s215 = sadd.s32 %s214, 1
      %p218 = scmp.eq.s32.totalorder %s28, 1
      %p219 = scmp.ne.s32.totalorder %s214, %s216
      %p220 = scmp.eq.s32.totalorder %s28, 0
      %p221 = por %p219, %p220
      %p222 = scmp.ne.s32.totalorder %s214, %s216
      %p223 = scmp.eq.s32.totalorder %s33, 1
      %p224 = por %p222, %p223
      %p225 = scmp.ne.s32.totalorder %s216, %s217
      %p226 = scmp.eq.s32.totalorder %s33, 0
      %p227 = por %p225, %p226
      %p228 = scmp.ne.s32.totalorder %s216, %s217
      %p229 = scmp.eq.s32.totalorder %s34, 1
      %p230 = por %p228, %p229
      %p232 = scmp.ne.s32.totalorder %s217, %s231
      %p233 = scmp.eq.s32.totalorder %s34, 0
      %p234 = por %p232, %p233
      %s236 = sadd.s32 %s235, 1
      %p239 = scmp.eq.s32.totalorder %s28, 1
      %p240 = scmp.ne.s32.totalorder %s235, %s237
      %p241 = scmp.eq.s32.totalorder %s28, 0
      %p242 = por %p240, %p241
      %p243 = scmp.ne.s32.totalorder %s235, %s237
      %p244 = scmp.eq.s32.totalorder %s33, 1
      %p245 = por %p243, %p244
      %p246 = scmp.ne.s32.totalorder %s237, %s238
      %p247 = scmp.eq.s32.totalorder %s33, 0
      %p248 = por %p246, %p247
      %p249 = scmp.ne.s32.totalorder %s237, %s238
      %p250 = scmp.eq.s32.totalorder %s34, 1
      %p251 = por %p249, %p250
      %p253 = scmp.ne.s32.totalorder %s238, %s252
      %p254 = scmp.eq.s32.totalorder %s34, 0
      %p255 = por %p253, %p254
      %s257 = sadd.s32 %s256, 1
      %p260 = scmp.eq.s32.totalorder %s28, 1
      %p261 = scmp.ne.s32.totalorder %s256, %s258
      %p262 = scmp.eq.s32.totalorder %s28, 0
      %p263 = por %p261, %p262
      %p264 = scmp.ne.s32.totalorder %s256, %s258
      %p265 = scmp.eq.s32.totalorder %s33, 1
      %p266 = por %p264, %p265
      %p267 = scmp.ne.s32.totalorder %s258, %s259
      %p268 = scmp.eq.s32.totalorder %s33, 0
      %p269 = por %p267, %p268
      %p270 = scmp.ne.s32.totalorder %s258, %s259
      %p271 = scmp.eq.s32.totalorder %s34, 1
      %p272 = por %p270, %p271
      %p274 = scmp.ne.s32.totalorder %s259, %s273
      %p275 = scmp.eq.s32.totalorder %s34, 0
      %p276 = por %p274, %p275
      %s278 = sadd.s32 %s277, 1
      %p281 = scmp.eq.s32.totalorder %s28, 1
      %p282 = scmp.ne.s32.totalorder %s277, %s279
      %p283 = scmp.eq.s32.totalorder %s28, 0
      %p284 = por %p282, %p283
      %p285 = scmp.ne.s32.totalorder %s277, %s279
      %p286 = scmp.eq.s32.totalorder %s33, 1
      %p287 = por %p285, %p286
      %p288 = scmp.ne.s32.totalorder %s279, %s280
      %p289 = scmp.eq.s32.totalorder %s33, 0
      %p290 = por %p288, %p289
      %p291 = scmp.ne.s32.totalorder %s279, %s280
      %p292 = scmp.eq.s32.totalorder %s34, 1
      %p293 = por %p291, %p292
      %p295 = scmp.ne.s32.totalorder %s280, %s294
      %p296 = scmp.eq.s32.totalorder %s34, 0
      %p297 = por %p295, %p296
      %s299 = sadd.s32 %s298, 1
      %p302 = scmp.eq.s32.totalorder %s28, 1
      %p303 = scmp.ne.s32.totalorder %s298, %s300
      %p304 = scmp.eq.s32.totalorder %s28, 0
      %p305 = por %p303, %p304
      %p306 = scmp.ne.s32.totalorder %s298, %s300
      %p307 = scmp.eq.s32.totalorder %s33, 1
      %p308 = por %p306, %p307
      %p309 = scmp.ne.s32.totalorder %s300, %s301
      %p310 = scmp.eq.s32.totalorder %s33, 0
      %p311 = por %p309, %p310
      %p312 = scmp.ne.s32.totalorder %s300, %s301
      %p313 = scmp.eq.s32.totalorder %s34, 1
      %p314 = por %p312, %p313
      %p316 = scmp.ne.s32.totalorder %s301, %s315
      %p317 = scmp.eq.s32.totalorder %s34, 0
      %p318 = por %p316, %p317
      %s320 = sadd.s32 %s319, 1
      %p323 = scmp.eq.s32.totalorder %s28, 1
      %p324 = scmp.ne.s32.totalorder %s319, %s321
      %p325 = scmp.eq.s32.totalorder %s28, 0
      %p326 = por %p324, %p325
      %p327 = scmp.ne.s32.totalorder %s319, %s321
      %p328 = scmp.eq.s32.totalorder %s33, 1
      %p329 = por %p327, %p328
      %p330 = scmp.ne.s32.totalorder %s321, %s322
      %p331 = scmp.eq.s32.totalorder %s33, 0
      %p332 = por %p330, %p331
      %p333 = scmp.ne.s32.totalorder %s321, %s322
      %p334 = scmp.eq.s32.totalorder %s34, 1
      %p335 = por %p333, %p334
      %p337 = scmp.ne.s32.totalorder %s322, %s336
      %p338 = scmp.eq.s32.totalorder %s34, 0
      %p339 = por %p337, %p338
      %s341 = sadd.s32 %s340, 1
      %p344 = scmp.eq.s32.totalorder %s28, 1
      %p345 = scmp.ne.s32.totalorder %s340, %s342
      %p346 = scmp.eq.s32.totalorder %s28, 0
      %p347 = por %p345, %p346
      %p348 = scmp.ne.s32.totalorder %s340, %s342
      %p349 = scmp.eq.s32.totalorder %s33, 1
      %p350 = por %p348, %p349
      %p351 = scmp.ne.s32.totalorder %s342, %s343
      %p352 = scmp.eq.s32.totalorder %s33, 0
      %p353 = por %p351, %p352
      %p354 = scmp.ne.s32.totalorder %s342, %s343
      %p355 = scmp.eq.s32.totalorder %s34, 1
      %p356 = por %p354, %p355
      %p358 = scmp.ne.s32.totalorder %s343, %s357
      %p359 = scmp.eq.s32.totalorder %s34, 0
      %p360 = por %p358, %p359
      %s362 = sadd.s32 %s361, 1
      %p365 = scmp.eq.s32.totalorder %s28, 1
      %p366 = scmp.ne.s32.totalorder %s361, %s363
      %p367 = scmp.eq.s32.totalorder %s28, 0
      %p368 = por %p366, %p367
      %p369 = scmp.ne.s32.totalorder %s361, %s363
      %p370 = scmp.eq.s32.totalorder %s33, 1
      %p371 = por %p369, %p370
      %p372 = scmp.ne.s32.totalorder %s363, %s364
      %p373 = scmp.eq.s32.totalorder %s33, 0
      %p374 = por %p372, %p373
      %p375 = scmp.ne.s32.totalorder %s363, %s364
      %p376 = scmp.eq.s32.totalorder %s34, 1
      %p377 = por %p375, %p376
      %p379 = scmp.ne.s32.totalorder %s364, %s378
      %p380 = scmp.eq.s32.totalorder %s34, 0
      %p381 = por %p379, %p380
      %s383 = sadd.s32 %s382, 1
      %p386 = scmp.eq.s32.totalorder %s28, 1
      %p387 = scmp.ne.s32.totalorder %s382, %s384
      %p388 = scmp.eq.s32.totalorder %s28, 0
      %p389 = por %p387, %p388
      %p390 = scmp.ne.s32.totalorder %s382, %s384
      %p391 = scmp.eq.s32.totalorder %s33, 1
      %p392 = por %p390, %p391
      %p393 = scmp.ne.s32.totalorder %s384, %s385
      %p394 = scmp.eq.s32.totalorder %s33, 0
      %p395 = por %p393, %p394
      %p396 = scmp.ne.s32.totalorder %s384, %s385
      %p397 = scmp.eq.s32.totalorder %s34, 1
      %p398 = por %p396, %p397
      %p400 = scmp.ne.s32.totalorder %s385, %s399
      %p401 = scmp.eq.s32.totalorder %s34, 0
      %p402 = por %p400, %p401
      %s404 = sadd.s32 %s403, 1
      %p407 = scmp.eq.s32.totalorder %s28, 1
      %p408 = scmp.ne.s32.totalorder %s403, %s405
      %p409 = scmp.eq.s32.totalorder %s28, 0
      %p410 = por %p408, %p409
      %p411 = scmp.ne.s32.totalorder %s403, %s405
      %p412 = scmp.eq.s32.totalorder %s33, 1
      %p413 = por %p411, %p412
      %p414 = scmp.ne.s32.totalorder %s405, %s406
      %p415 = scmp.eq.s32.totalorder %s33, 0
      %p416 = por %p414, %p415
      %p417 = scmp.ne.s32.totalorder %s405, %s406
      %p418 = scmp.eq.s32.totalorder %s34, 1
      %p419 = por %p417, %p418
      %p421 = scmp.ne.s32.totalorder %s406, %s420
      %p422 = scmp.eq.s32.totalorder %s34, 0
      %p423 = por %p421, %p422
      %s424 = ssub.s32 %s28, %s35
      %p425 = scmp.eq.s32.totalorder %s424, 0
      %s427 = sadd.s32 %s426, 1
      %s428 = scalar_select %p425, %s426, %s427
      %p431 = pneg %p425
      %p432 = scmp.eq.s32.totalorder %s28, 1
      %p433 = por %p431, %p432
      %p434 = scmp.ne.s32.totalorder %s426, %s429
      %p435 = scmp.eq.s32.totalorder %s28, 0
      %p436 = por %p434, %p435
      %p437 = scmp.ne.s32.totalorder %s426, %s429
      %p438 = scmp.eq.s32.totalorder %s33, 1
      %p439 = por %p437, %p438
      %p440 = scmp.ne.s32.totalorder %s429, %s430
      %p441 = scmp.eq.s32.totalorder %s33, 0
      %p442 = por %p440, %p441
      %p443 = scmp.ne.s32.totalorder %s429, %s430
      %p444 = scmp.eq.s32.totalorder %s34, 1
      %p445 = por %p443, %p444
      %p447 = scmp.ne.s32.totalorder %s430, %s446
      %p448 = scmp.eq.s32.totalorder %s34, 0
      %p449 = por %p447, %p448
      %p450 = scmp.le.s32.totalorder 1, %s28
      %p451 = scmp.lt.s32.totalorder %s28, 3
      %p452 = pnand %p450, %p451
      %p453 = pneg %p452
      // Predicated region
      $region9: #{transformer_decoder_forward.2} parent=5 // pred_check
        _
      $region10: #{transformer_decoder_forward.2} parent=5 // pred_check_branch
        %455 = sbr.rel (%p452) target = $region12
      $region11: #{transformer_decoder_forward.2} parent=5 // pred_region
        %s456 = ssub.s32 %s28, 1
        // Predicated region
        $region13: #{transformer_decoder_forward.2} parent=11 // pred_check
          %p457 = pneg %p101
        $region14: #{transformer_decoder_forward.2} parent=11 // pred_check_branch
          %459 = sbr.rel (%p457) target = $region16
        $region15: #{transformer_decoder_forward.2} parent=11 // pred_region
          %s461 = ssub.s32 1024, 1024
          %462 = vsyncadd [#allocation3], %s461
          %s463 = sshll.u32 [#allocation2], 4
          %s464 = int_to_ptr.vmem [resolvable:$true] %s463
          %469 = dma.hbm_to_vmem [thread:$0]  %s2, 1024, %s464, [#allocation3], 64, 64, 4
        $region16: #{transformer_decoder_forward.2} parent=11 // pred_fallthru
          _
        // Predicated region
        $region17: #{transformer_decoder_forward.2} parent=11 // pred_check
          %p470 = pneg %p122
        $region18: #{transformer_decoder_forward.2} parent=11 // pred_check_branch
          %472 = sbr.rel (%p470) target = $region20
        $region19: #{transformer_decoder_forward.2} parent=11 // pred_region
          _
        $region20: #{transformer_decoder_forward.2} parent=11 // pred_fallthru
          _
        // Predicated region
        $region21: #{transformer_decoder_forward.2} parent=11 // pred_check
          %p473 = pneg %p143
        $region22: #{transformer_decoder_forward.2} parent=11 // pred_check_branch
          %475 = sbr.rel (%p473) target = $region24
        $region23: #{transformer_decoder_forward.2} parent=11 // pred_region
          %s477 = ssub.s32 1024, 1024
          %478 = vsyncadd [#allocation5], %s477
          %s479 = sshll.u32 [#allocation4], 4
          %s480 = int_to_ptr.vmem [resolvable:$true] %s479
          %485 = dma.hbm_to_vmem [thread:$0]  %s4, 1024, %s480, [#allocation5], 64, 64, 4
        $region24: #{transformer_decoder_forward.2} parent=11 // pred_fallthru
          _
        // Predicated region
        $region25: #{transformer_decoder_forward.2} parent=11 // pred_check
          %p486 = pneg %p164
        $region26: #{transformer_decoder_forward.2} parent=11 // pred_check_branch
          %488 = sbr.rel (%p486) target = $region28
        $region27: #{transformer_decoder_forward.2} parent=11 // pred_region
          _
        $region28: #{transformer_decoder_forward.2} parent=11 // pred_fallthru
          _
        // Predicated region
        $region29: #{transformer_decoder_forward.2} parent=11 // pred_check
          %p489 = pneg %p185
        $region30: #{transformer_decoder_forward.2} parent=11 // pred_check_branch
          %491 = sbr.rel (%p489) target = $region32
        $region31: #{transformer_decoder_forward.2} parent=11 // pred_region
          %s493 = ssub.s32 1024, 1024
          %494 = vsyncadd [#allocation5], %s493
          %s495 = sshll.u32 [#allocation6], 4
          %s496 = int_to_ptr.vmem [resolvable:$true] %s495
          %501 = dma.hbm_to_vmem [thread:$0]  %s6, 1024, %s496, [#allocation5], 64, 64, 4
        $region32: #{transformer_decoder_forward.2} parent=11 // pred_fallthru
          _
        // Predicated region
        $region33: #{transformer_decoder_forward.2} parent=11 // pred_check
          %p502 = pneg %p206
        $region34: #{transformer_decoder_forward.2} parent=11 // pred_check_branch
          %504 = sbr.rel (%p502) target = $region36
        $region35: #{transformer_decoder_forward.2} parent=11 // pred_region
          _
        $region36: #{transformer_decoder_forward.2} parent=11 // pred_fallthru
          _
        // Predicated region
        $region37: #{transformer_decoder_forward.2} parent=11 // pred_check
          %p505 = pneg %p227
        $region38: #{transformer_decoder_forward.2} parent=11 // pred_check_branch
          %507 = sbr.rel (%p505) target = $region40
        $region39: #{transformer_decoder_forward.2} parent=11 // pred_region
          %s509 = ssub.s32 1024, 1024
          %510 = vsyncadd [#allocation8], %s509
          %s511 = sshll.u32 [#allocation7], 4
          %s512 = int_to_ptr.vmem [resolvable:$true] %s511
          %517 = dma.hbm_to_vmem [thread:$0]  %s8, 1024, %s512, [#allocation8], 64, 64, 4
        $region40: #{transformer_decoder_forward.2} parent=11 // pred_fallthru
          _
        // Predicated region
        $region41: #{transformer_decoder_forward.2} parent=11 // pred_check
          %p518 = pneg %p248
        $region42: #{transformer_decoder_forward.2} parent=11 // pred_check_branch
          %520 = sbr.rel (%p518) target = $region44
        $region43: #{transformer_decoder_forward.2} parent=11 // pred_region
          _
        $region44: #{transformer_decoder_forward.2} parent=11 // pred_fallthru
          _
        // Predicated region
        $region45: #{transformer_decoder_forward.2} parent=11 // pred_check
          %p521 = pneg %p269
        $region46: #{transformer_decoder_forward.2} parent=11 // pred_check_branch
          %523 = sbr.rel (%p521) target = $region48
        $region47: #{transformer_decoder_forward.2} parent=11 // pred_region
          _
        $region48: #{transformer_decoder_forward.2} parent=11 // pred_fallthru
          _
        // Predicated region
        $region49: #{transformer_decoder_forward.2} parent=11 // pred_check
          %p524 = pneg %p290
        $region50: #{transformer_decoder_forward.2} parent=11 // pred_check_branch
          %526 = sbr.rel (%p524) target = $region52
        $region51: #{transformer_decoder_forward.2} parent=11 // pred_region
          _
        $region52: #{transformer_decoder_forward.2} parent=11 // pred_fallthru
          _
        // Predicated region
        $region53: #{transformer_decoder_forward.2} parent=11 // pred_check
          %p527 = pneg %p311
        $region54: #{transformer_decoder_forward.2} parent=11 // pred_check_branch
          %529 = sbr.rel (%p527) target = $region56
        $region55: #{transformer_decoder_forward.2} parent=11 // pred_region
          %s531 = ssub.s32 2048, 2048
          %532 = vsyncadd [#allocation8], %s531
          %s533 = sshll.u32 [#allocation9], 4
          %s534 = int_to_ptr.vmem [resolvable:$true] %s533
          %539 = dma.hbm_to_vmem [thread:$0]  %s12, 2048, %s534, [#allocation8], 128, 128, 8
        $region56: #{transformer_decoder_forward.2} parent=11 // pred_fallthru
          _
        // Predicated region
        $region57: #{transformer_decoder_forward.2} parent=11 // pred_check
          %p540 = pneg %p332
        $region58: #{transformer_decoder_forward.2} parent=11 // pred_check_branch
          %542 = sbr.rel (%p540) target = $region60
        $region59: #{transformer_decoder_forward.2} parent=11 // pred_region
          _
        $region60: #{transformer_decoder_forward.2} parent=11 // pred_fallthru
          _
        // Predicated region
        $region61: #{transformer_decoder_forward.2} parent=11 // pred_check
          %p543 = pneg %p353
        $region62: #{transformer_decoder_forward.2} parent=11 // pred_check_branch
          %545 = sbr.rel (%p543) target = $region64
        $region63: #{transformer_decoder_forward.2} parent=11 // pred_region
          %s547 = ssub.s32 2048, 2048
          %548 = vsyncadd [#allocation11], %s547
          %s549 = sshll.u32 [#allocation10], 4
          %s550 = int_to_ptr.vmem [resolvable:$true] %s549
          %555 = dma.hbm_to_vmem [thread:$0]  %s14, 2048, %s550, [#allocation11], 64, 64, 4
        $region64: #{transformer_decoder_forward.2} parent=11 // pred_fallthru
          _
        // Predicated region
        $region65: #{transformer_decoder_forward.2} parent=11 // pred_check
          %p556 = pneg %p374
        $region66: #{transformer_decoder_forward.2} parent=11 // pred_check_branch
          %558 = sbr.rel (%p556) target = $region68
        $region67: #{transformer_decoder_forward.2} parent=11 // pred_region
          _
        $region68: #{transformer_decoder_forward.2} parent=11 // pred_fallthru
          _
        // Predicated region
        $region69: #{transformer_decoder_forward.2} parent=11 // pred_check
          %p559 = pneg %p395
        $region70: #{transformer_decoder_forward.2} parent=11 // pred_check_branch
          %561 = sbr.rel (%p559) target = $region72
        $region71: #{transformer_decoder_forward.2} parent=11 // pred_region
          _
        $region72: #{transformer_decoder_forward.2} parent=11 // pred_fallthru
          _
        // Predicated region
        $region73: #{transformer_decoder_forward.2} parent=11 // pred_check
          %p562 = pneg %p416
        $region74: #{transformer_decoder_forward.2} parent=11 // pred_check_branch
          %564 = sbr.rel (%p562) target = $region76
        $region75: #{transformer_decoder_forward.2} parent=11 // pred_region
          _
        $region76: #{transformer_decoder_forward.2} parent=11 // pred_fallthru
          _
      $region12: #{transformer_decoder_forward.2} parent=5 // pred_fallthru
        _
      %p565 = scmp.lt.s32.totalorder %s28, 2
      // Predicated region
      $region77: #{transformer_decoder_forward.2} parent=5 // pred_check
        %p566 = pneg %p565
      $region78: #{transformer_decoder_forward.2} parent=5 // pred_check_branch
        %568 = sbr.rel (%p566) target = $region80
      $region79: #{transformer_decoder_forward.2} parent=5 // pred_region
        // Predicated region
        $region81: #{transformer_decoder_forward.2} parent=79 // pred_check
          %p569 = pneg %p48
        $region82: #{transformer_decoder_forward.2} parent=79 // pred_check_branch
          %571 = sbr.rel (%p569) target = $region84
        $region83: #{transformer_decoder_forward.2} parent=79 // pred_region
          %p572 = scmp.lt.s32.totalorder %s28, 1
          %s573 = scalar_select %p572, %s28, 1
          %s574 = smul.addr %s573, 8
          %s575 = scalar_lea.vmem %s0, %s574
        $region84: #{transformer_decoder_forward.2} parent=79 // pred_fallthru
          _
        // Predicated region
        $region85: #{transformer_decoder_forward.2} parent=79 // pred_check
          %p576 = pneg %p74
        $region86: #{transformer_decoder_forward.2} parent=79 // pred_check_branch
          %578 = sbr.rel (%p576) target = $region88
        $region87: #{transformer_decoder_forward.2} parent=79 // pred_region
          %p579 = scmp.lt.s32.totalorder %s28, 1
          %s580 = scalar_select %p579, %s28, 1
          %s581 = smul.addr %s580, 8
          %s582 = scalar_lea.vmem %s1, %s581
        $region88: #{transformer_decoder_forward.2} parent=79 // pred_fallthru
          _
      $region80: #{transformer_decoder_forward.2} parent=5 // pred_fallthru
        _
      %p583 = scmp.le.s32.totalorder 1, %s28
      %p584 = scmp.lt.s32.totalorder %s28, 3
      %p585 = pnand %p583, %p584
      %p586 = pneg %p585
      // Predicated region
      $region89: #{transformer_decoder_forward.2} parent=5 // pred_check
        _
      $region90: #{transformer_decoder_forward.2} parent=5 // pred_check_branch
        %588 = sbr.rel (%p585) target = $region92
      $region91: #{transformer_decoder_forward.2} parent=5 // pred_region
        %s589 = ssub.s32 %s28, 1
        // Predicated region
        $region93: #{transformer_decoder_forward.2} parent=91 // pred_check
          %p590 = pneg %p101
        $region94: #{transformer_decoder_forward.2} parent=91 // pred_check_branch
          %592 = sbr.rel (%p590) target = $region96
        $region95: #{transformer_decoder_forward.2} parent=91 // pred_region
          %593 = dma.done [#allocation3], 1024
        $region96: #{transformer_decoder_forward.2} parent=91 // pred_fallthru
          _
        // Predicated region
        $region97: #{transformer_decoder_forward.2} parent=91 // pred_check
          %p594 = pneg %p143
        $region98: #{transformer_decoder_forward.2} parent=91 // pred_check_branch
          %596 = sbr.rel (%p594) target = $region100
        $region99: #{transformer_decoder_forward.2} parent=91 // pred_region
          %597 = dma.done [#allocation5], 1024
        $region100: #{transformer_decoder_forward.2} parent=91 // pred_fallthru
          _
        // Predicated region
        $region101: #{transformer_decoder_forward.2} parent=91 // pred_check
          %p598 = pneg %p185
        $region102: #{transformer_decoder_forward.2} parent=91 // pred_check_branch
          %600 = sbr.rel (%p598) target = $region104
        $region103: #{transformer_decoder_forward.2} parent=91 // pred_region
          %601 = dma.done [#allocation5], 1024
        $region104: #{transformer_decoder_forward.2} parent=91 // pred_fallthru
          _
        // Predicated region
        $region105: #{transformer_decoder_forward.2} parent=91 // pred_check
          %p602 = pneg %p227
        $region106: #{transformer_decoder_forward.2} parent=91 // pred_check_branch
          %604 = sbr.rel (%p602) target = $region108
        $region107: #{transformer_decoder_forward.2} parent=91 // pred_region
          %605 = dma.done [#allocation8], 1024
        $region108: #{transformer_decoder_forward.2} parent=91 // pred_fallthru
          _
        // Predicated region
        $region109: #{transformer_decoder_forward.2} parent=91 // pred_check
          %p606 = pneg %p311
        $region110: #{transformer_decoder_forward.2} parent=91 // pred_check_branch
          %608 = sbr.rel (%p606) target = $region112
        $region111: #{transformer_decoder_forward.2} parent=91 // pred_region
          %609 = dma.done [#allocation8], 2048
        $region112: #{transformer_decoder_forward.2} parent=91 // pred_fallthru
          _
        // Predicated region
        $region113: #{transformer_decoder_forward.2} parent=91 // pred_check
          %p610 = pneg %p353
        $region114: #{transformer_decoder_forward.2} parent=91 // pred_check_branch
          %612 = sbr.rel (%p610) target = $region116
        $region115: #{transformer_decoder_forward.2} parent=91 // pred_region
          %613 = dma.done [#allocation11], 2048
        $region116: #{transformer_decoder_forward.2} parent=91 // pred_fallthru
          _
        %p614 = scmp.lt.s32.totalorder %s33, 1
        %s615 = scalar_select %p614, %s33, 1
        %s616 = smul.addr %s615, 8
        %s617 = scalar_lea.vmem %s0, %s616
        %p618 = pneg %p54
        %p619 = pneg %p51
        %p620 = scmp.lt.s32.totalorder %s33, 1
        %s621 = scalar_select %p620, %s33, 1
        %s622 = smul.addr %s621, 8
        %s623 = scalar_lea.vmem %s1, %s622
        %p624 = pneg %p80
        %p625 = pneg %p77
        %p626 = pneg %p101
        %p627 = pneg %p98
        %p628 = pneg %p122
        %p629 = pneg %p119
        %p630 = pneg %p143
        %p631 = pneg %p140
        %p632 = pneg %p164
        %p633 = pneg %p161
        %p634 = pneg %p185
        %p635 = pneg %p182
        %p636 = pneg %p206
        %p637 = pneg %p203
        %p638 = pneg %p227
        %p639 = pneg %p224
        %p640 = pneg %p248
        %p641 = pneg %p245
        %p642 = pneg %p269
        %p643 = pneg %p266
        %p644 = pneg %p290
        %p645 = pneg %p287
        %p646 = pneg %p311
        %p647 = pneg %p308
        %p648 = pneg %p332
        %p649 = pneg %p329
        %p650 = pneg %p353
        %p651 = pneg %p350
        %p652 = pneg %p374
        %p653 = pneg %p371
        %p654 = pneg %p395
        %p655 = pneg %p392
        %p656 = pneg %p416
        %p657 = pneg %p413
        %p658 = pneg %p442
        %p659 = pneg %p439
        %p660 = scmp.lt.s32.totalorder %s33, 1
        %s661 = scalar_select %p660, %s33, 1
        %s662 = smul.addr %s661, 8
        %s663 = scalar_lea.vmem %s18, %s662
        %p664 = scmp.lt.s32.totalorder %s33, 1
        %s665 = scalar_select %p664, %s33, 1
        %s666 = smul.addr %s665, 8
        %s667 = scalar_lea.vmem %s0, %s666
        %p668 = scmp.lt.s32.totalorder %s33, 1
        %s669 = scalar_select %p668, %s33, 1
        %s670 = smul.addr %s669, 8
        %s671 = scalar_lea.vmem %s1, %s670
        %p672 = scmp.lt.s32.totalorder %s33, 1
        %s673 = scalar_select %p672, %s33, 1
        %s674 = smul.addr %s673, 8
        %s675 = scalar_lea.vmem %s18, %s674
        %v677 = vld [vmem:[%s667] sm:$0x3f]
        %v678 = vld [vmem:[%s671] sm:$0xff]
        %v679 = vld [vmem:[#allocation2] sm:$0xf]
        %v680 = vld [vmem:[#allocation2 + $0x4] sm:$0xf]
        %v681 = vld [vmem:[#allocation2 + $0x8] sm:$0xf]
        %v682 = vld [vmem:[#allocation2 + $0xc] sm:$0xf]
        %v683 = vld [vmem:[#allocation2 + $0x10] sm:$0xf]
        %v684 = vld [vmem:[#allocation2 + $0x14] sm:$0xf]
        %v685 = vld [vmem:[#allocation2 + $0x18] sm:$0xf]
        %v686 = vld [vmem:[#allocation2 + $0x1c] sm:$0xf]
        %v687 = vld [vmem:[#allocation2 + $0x20] sm:$0xf]
        %v688 = vld [vmem:[#allocation2 + $0x24] sm:$0xf]
        %v689 = vld [vmem:[#allocation2 + $0x28] sm:$0xf]
        %v690 = vld [vmem:[#allocation2 + $0x2c] sm:$0xf]
        %v691 = vld [vmem:[#allocation2 + $0x30] sm:$0xf]
        %v692 = vld [vmem:[#allocation2 + $0x34] sm:$0xf]
        %v693 = vld [vmem:[#allocation2 + $0x38] sm:$0xf]
        %v694 = vld [vmem:[#allocation2 + $0x3c] sm:$0xf]
        %v695 = vld [vmem:[%s3] sm:$0x1]
        %v696 = vld [vmem:[#allocation4] sm:$0xf]
        %v697 = vld [vmem:[#allocation4 + $0x4] sm:$0xf]
        %v698 = vld [vmem:[#allocation4 + $0x8] sm:$0xf]
        %v699 = vld [vmem:[#allocation4 + $0xc] sm:$0xf]
        %v700 = vld [vmem:[#allocation4 + $0x10] sm:$0xf]
        %v701 = vld [vmem:[#allocation4 + $0x14] sm:$0xf]
        %v702 = vld [vmem:[#allocation4 + $0x18] sm:$0xf]
        %v703 = vld [vmem:[#allocation4 + $0x1c] sm:$0xf]
        %v704 = vld [vmem:[#allocation4 + $0x20] sm:$0xf]
        %v705 = vld [vmem:[#allocation4 + $0x24] sm:$0xf]
        %v706 = vld [vmem:[#allocation4 + $0x28] sm:$0xf]
        %v707 = vld [vmem:[#allocation4 + $0x2c] sm:$0xf]
        %v708 = vld [vmem:[#allocation4 + $0x30] sm:$0xf]
        %v709 = vld [vmem:[#allocation4 + $0x34] sm:$0xf]
        %v710 = vld [vmem:[#allocation4 + $0x38] sm:$0xf]
        %v711 = vld [vmem:[#allocation4 + $0x3c] sm:$0xf]
        %v712 = vld [vmem:[%s5] sm:$0x1]
        %v713 = vld [vmem:[#allocation6] sm:$0xf]
        %v714 = vld [vmem:[#allocation6 + $0x4] sm:$0xf]
        %v715 = vld [vmem:[#allocation6 + $0x8] sm:$0xf]
        %v716 = vld [vmem:[#allocation6 + $0xc] sm:$0xf]
        %v717 = vld [vmem:[#allocation6 + $0x10] sm:$0xf]
        %v718 = vld [vmem:[#allocation6 + $0x14] sm:$0xf]
        %v719 = vld [vmem:[#allocation6 + $0x18] sm:$0xf]
        %v720 = vld [vmem:[#allocation6 + $0x1c] sm:$0xf]
        %v721 = vld [vmem:[#allocation6 + $0x20] sm:$0xf]
        %v722 = vld [vmem:[#allocation6 + $0x24] sm:$0xf]
        %v723 = vld [vmem:[#allocation6 + $0x28] sm:$0xf]
        %v724 = vld [vmem:[#allocation6 + $0x2c] sm:$0xf]
        %v725 = vld [vmem:[#allocation6 + $0x30] sm:$0xf]
        %v726 = vld [vmem:[#allocation6 + $0x34] sm:$0xf]
        %v727 = vld [vmem:[#allocation6 + $0x38] sm:$0xf]
        %v728 = vld [vmem:[#allocation6 + $0x3c] sm:$0xf]
        %v729 = vld [vmem:[%s7] sm:$0x1]
        %v730 = vld [vmem:[#allocation7] sm:$0xf]
        %v731 = vld [vmem:[#allocation7 + $0x4] sm:$0xf]
        %v732 = vld [vmem:[#allocation7 + $0x8] sm:$0xf]
        %v733 = vld [vmem:[#allocation7 + $0xc] sm:$0xf]
        %v734 = vld [vmem:[#allocation7 + $0x10] sm:$0xf]
        %v735 = vld [vmem:[#allocation7 + $0x14] sm:$0xf]
        %v736 = vld [vmem:[#allocation7 + $0x18] sm:$0xf]
        %v737 = vld [vmem:[#allocation7 + $0x1c] sm:$0xf]
        %v738 = vld [vmem:[#allocation7 + $0x20] sm:$0xf]
        %v739 = vld [vmem:[#allocation7 + $0x24] sm:$0xf]
        %v740 = vld [vmem:[#allocation7 + $0x28] sm:$0xf]
        %v741 = vld [vmem:[#allocation7 + $0x2c] sm:$0xf]
        %v742 = vld [vmem:[#allocation7 + $0x30] sm:$0xf]
        %v743 = vld [vmem:[#allocation7 + $0x34] sm:$0xf]
        %v744 = vld [vmem:[#allocation7 + $0x38] sm:$0xf]
        %v745 = vld [vmem:[#allocation7 + $0x3c] sm:$0xf]
        %v746 = vld [vmem:[%s9] sm:$0x1]
        %v747 = vld [vmem:[%s10] sm:$0x1]
        %v748 = vld [vmem:[%s11] sm:$0x1]
        %v749 = vld [vmem:[#allocation9] sm:$0xff]
        %v750 = vld [vmem:[#allocation9 + $0x8] sm:$0xff]
        %v751 = vld [vmem:[#allocation9 + $0x10] sm:$0xff]
        %v752 = vld [vmem:[#allocation9 + $0x18] sm:$0xff]
        %v753 = vld [vmem:[#allocation9 + $0x20] sm:$0xff]
        %v754 = vld [vmem:[#allocation9 + $0x28] sm:$0xff]
        %v755 = vld [vmem:[#allocation9 + $0x30] sm:$0xff]
        %v756 = vld [vmem:[#allocation9 + $0x38] sm:$0xff]
        %v757 = vld [vmem:[#allocation9 + $0x40] sm:$0xff]
        %v758 = vld [vmem:[#allocation9 + $0x48] sm:$0xff]
        %v759 = vld [vmem:[#allocation9 + $0x50] sm:$0xff]
        %v760 = vld [vmem:[#allocation9 + $0x58] sm:$0xff]
        %v761 = vld [vmem:[#allocation9 + $0x60] sm:$0xff]
        %v762 = vld [vmem:[#allocation9 + $0x68] sm:$0xff]
        %v763 = vld [vmem:[#allocation9 + $0x70] sm:$0xff]
        %v764 = vld [vmem:[#allocation9 + $0x78] sm:$0xff]
        %v765 = vld [vmem:[%s13] sm:$0x3]
        %v766 = vld [vmem:[#allocation10] sm:$0xf]
        %v767 = vld [vmem:[#allocation10 + $0x4] sm:$0xf]
        %v768 = vld [vmem:[#allocation10 + $0x8] sm:$0xf]
        %v769 = vld [vmem:[#allocation10 + $0xc] sm:$0xf]
        %v770 = vld [vmem:[#allocation10 + $0x10] sm:$0xf]
        %v771 = vld [vmem:[#allocation10 + $0x14] sm:$0xf]
        %v772 = vld [vmem:[#allocation10 + $0x18] sm:$0xf]
        %v773 = vld [vmem:[#allocation10 + $0x1c] sm:$0xf]
        %v774 = vld [vmem:[#allocation10 + $0x20] sm:$0xf]
        %v775 = vld [vmem:[#allocation10 + $0x24] sm:$0xf]
        %v776 = vld [vmem:[#allocation10 + $0x28] sm:$0xf]
        %v777 = vld [vmem:[#allocation10 + $0x2c] sm:$0xf]
        %v778 = vld [vmem:[#allocation10 + $0x30] sm:$0xf]
        %v779 = vld [vmem:[#allocation10 + $0x34] sm:$0xf]
        %v780 = vld [vmem:[#allocation10 + $0x38] sm:$0xf]
        %v781 = vld [vmem:[#allocation10 + $0x3c] sm:$0xf]
        %v782 = vld [vmem:[#allocation10 + $0x40] sm:$0xf]
        %v783 = vld [vmem:[#allocation10 + $0x44] sm:$0xf]
        %v784 = vld [vmem:[#allocation10 + $0x48] sm:$0xf]
        %v785 = vld [vmem:[#allocation10 + $0x4c] sm:$0xf]
        %v786 = vld [vmem:[#allocation10 + $0x50] sm:$0xf]
        %v787 = vld [vmem:[#allocation10 + $0x54] sm:$0xf]
        %v788 = vld [vmem:[#allocation10 + $0x58] sm:$0xf]
        %v789 = vld [vmem:[#allocation10 + $0x5c] sm:$0xf]
        %v790 = vld [vmem:[#allocation10 + $0x60] sm:$0xf]
        %v791 = vld [vmem:[#allocation10 + $0x64] sm:$0xf]
        %v792 = vld [vmem:[#allocation10 + $0x68] sm:$0xf]
        %v793 = vld [vmem:[#allocation10 + $0x6c] sm:$0xf]
        %v794 = vld [vmem:[#allocation10 + $0x70] sm:$0xf]
        %v795 = vld [vmem:[#allocation10 + $0x74] sm:$0xf]
        %v796 = vld [vmem:[#allocation10 + $0x78] sm:$0xf]
        %v797 = vld [vmem:[#allocation10 + $0x7c] sm:$0xf]
        %v798 = vld [vmem:[%s15] sm:$0x1]
        %v799 = vld [vmem:[%s16] sm:$0x1]
        %v800 = vld [vmem:[%s17] sm:$0x1]
        %v801 = vpack.c.bf16 %v677, %v677
        %v802 = vpack.c.bf16 %v678, %v678
        %v804 = vlaneseq
        %v805 = vshrl.u32 %v804, 7
        %v806 = vsub.s32 0, %v805
        %v807 = vrot.slane %v695, %v806
        %v825 = vunpack.c.l.b16 %v679
        %v826 = vunpack.c.l.b16 %v680
        %v827 = vunpack.c.l.b16 %v681
        %v828 = vunpack.c.l.b16 %v682
        %v829 = vunpack.c.l.b16 %v683
        %v830 = vunpack.c.l.b16 %v684
        %v831 = vunpack.c.l.b16 %v685
        %v832 = vunpack.c.l.b16 %v686
        %v833 = vunpack.c.l.b16 %v687
        %v834 = vunpack.c.l.b16 %v688
        %v835 = vunpack.c.l.b16 %v689
        %v836 = vunpack.c.l.b16 %v690
        %v837 = vunpack.c.l.b16 %v691
        %v838 = vunpack.c.l.b16 %v692
        %v839 = vunpack.c.l.b16 %v693
        %v840 = vunpack.c.l.b16 %v694
        %v841 = vpack.c.b16 %v826, %v825
        %v842 = vpack.c.b16 %v828, %v827
        %v843 = vpack.c.b16 %v830, %v829
        %v844 = vpack.c.b16 %v832, %v831
        %v845 = vpack.c.b16 %v834, %v833
        %v846 = vpack.c.b16 %v836, %v835
        %v847 = vpack.c.b16 %v838, %v837
        %v848 = vpack.c.b16 %v840, %v839
        %857 = vmatprep.subr.bf16.mxu0 0
        %858 = vmatpush1.bf16.msra.mxu0 %v848
        %859 = vmatprep.subr.bf16.mxu0 0
        %860 = vmatpush1.bf16.msra.mxu0 %v847
        %861 = vmatprep.subr.bf16.mxu0 0
        %862 = vmatpush1.bf16.msra.mxu0 %v846
        %863 = vmatprep.subr.bf16.mxu0 0
        %864 = vmatpush1.bf16.msra.mxu0 %v845
        %865 = vmatprep.subr.bf16.mxu0 0
        %866 = vmatpush1.bf16.msra.mxu0 %v844
        %867 = vmatprep.subr.bf16.mxu0 0
        %868 = vmatpush1.bf16.msra.mxu0 %v843
        %869 = vmatprep.subr.bf16.mxu0 0
        %870 = vmatpush1.bf16.msra.mxu0 %v842
        %871 = vmatprep.subr.bf16.mxu0 0
        %872 = vmatpush1.bf16.msra.mxu0 %v841
        %873 = vmatprep.subr.bf16.mxu0 0
        %874 = vmatpush2.bf16.msra.mxu0 0
        %875 = vmatprep.subr.bf16.mxu0 0
        %876 = vmatpush2.bf16.msra.mxu0 0
        %877 = vmatprep.subr.bf16.mxu0 0
        %878 = vmatpush2.bf16.msra.mxu0 0
        %879 = vmatprep.subr.bf16.mxu0 0
        %880 = vmatpush2.bf16.msra.mxu0 0
        %881 = vmatprep.subr.bf16.mxu0 0
        %882 = vmatpush2.bf16.msra.mxu0 0
        %883 = vmatprep.subr.bf16.mxu0 0
        %884 = vmatpush2.bf16.msra.mxu0 0
        %885 = vmatprep.subr.bf16.mxu0 0
        %886 = vmatpush2.bf16.msra.mxu0 0
        %887 = vmatprep.subr.bf16.mxu0 0
        %888 = vmatpush2.bf16.msra.mxu0 0
        %889 = vmatprep.mubr.bf16.mxu0 0
        %890 = vmatmul.mubr.bf16.gmra.mxu0 %v801
        %v891 = vpop.f32.mrf.mxu0
        %v892 = vadd.f32 %v807, %v891
        %v893 = vpop.f32.mrf.mxu0
        %v894 = vpop.f32.mrf.mxu0
        %v895 = vpop.f32.mrf.mxu0
        %896 = vdwg.mxu0
        %v898 = vlaneseq
        %v899 = vshrl.u32 %v898, 7
        %v900 = vsub.s32 0, %v899
        %v901 = vrot.slane %v712, %v900
        %v919 = vunpack.c.l.b16 %v696
        %v920 = vunpack.c.l.b16 %v697
        %v921 = vunpack.c.l.b16 %v698
        %v922 = vunpack.c.l.b16 %v699
        %v923 = vunpack.c.l.b16 %v700
        %v924 = vunpack.c.l.b16 %v701
        %v925 = vunpack.c.l.b16 %v702
        %v926 = vunpack.c.l.b16 %v703
        %v927 = vunpack.c.l.b16 %v704
        %v928 = vunpack.c.l.b16 %v705
        %v929 = vunpack.c.l.b16 %v706
        %v930 = vunpack.c.l.b16 %v707
        %v931 = vunpack.c.l.b16 %v708
        %v932 = vunpack.c.l.b16 %v709
        %v933 = vunpack.c.l.b16 %v710
        %v934 = vunpack.c.l.b16 %v711
        %v935 = vpack.c.b16 %v920, %v919
        %v936 = vpack.c.b16 %v922, %v921
        %v937 = vpack.c.b16 %v924, %v923
        %v938 = vpack.c.b16 %v926, %v925
        %v939 = vpack.c.b16 %v928, %v927
        %v940 = vpack.c.b16 %v930, %v929
        %v941 = vpack.c.b16 %v932, %v931
        %v942 = vpack.c.b16 %v934, %v933
        %951 = vmatprep.subr.bf16.mxu0 0
        %952 = vmatpush1.bf16.msra.mxu0 %v942
        %953 = vmatprep.subr.bf16.mxu0 0
        %954 = vmatpush1.bf16.msra.mxu0 %v941
        %955 = vmatprep.subr.bf16.mxu0 0
        %956 = vmatpush1.bf16.msra.mxu0 %v940
        %957 = vmatprep.subr.bf16.mxu0 0
        %958 = vmatpush1.bf16.msra.mxu0 %v939
        %959 = vmatprep.subr.bf16.mxu0 0
        %960 = vmatpush1.bf16.msra.mxu0 %v938
        %961 = vmatprep.subr.bf16.mxu0 0
        %962 = vmatpush1.bf16.msra.mxu0 %v937
        %963 = vmatprep.subr.bf16.mxu0 0
        %964 = vmatpush1.bf16.msra.mxu0 %v936
        %965 = vmatprep.subr.bf16.mxu0 0
        %966 = vmatpush1.bf16.msra.mxu0 %v935
        %967 = vmatprep.subr.bf16.mxu0 0
        %968 = vmatpush2.bf16.msra.mxu0 0
        %969 = vmatprep.subr.bf16.mxu0 0
        %970 = vmatpush2.bf16.msra.mxu0 0
        %971 = vmatprep.subr.bf16.mxu0 0
        %972 = vmatpush2.bf16.msra.mxu0 0
        %973 = vmatprep.subr.bf16.mxu0 0
        %974 = vmatpush2.bf16.msra.mxu0 0
        %975 = vmatprep.subr.bf16.mxu0 0
        %976 = vmatpush2.bf16.msra.mxu0 0
        %977 = vmatprep.subr.bf16.mxu0 0
        %978 = vmatpush2.bf16.msra.mxu0 0
        %979 = vmatprep.subr.bf16.mxu0 0
        %980 = vmatpush2.bf16.msra.mxu0 0
        %981 = vmatprep.subr.bf16.mxu0 0
        %982 = vmatpush2.bf16.msra.mxu0 0
        %983 = vmatprep.mubr.bf16.mxu0 0
        %984 = vmatmul.mubr.bf16.gmra.mxu0 %v802
        %v985 = vpop.f32.mrf.mxu0
        %v986 = vadd.f32 %v901, %v985
        %v987 = vpop.f32.mrf.mxu0
        %v988 = vpop.f32.mrf.mxu0
        %v989 = vpop.f32.mrf.mxu0
        %990 = vdwg.mxu0
        %v992 = vlaneseq
        %v993 = vshrl.u32 %v992, 7
        %v994 = vsub.s32 0, %v993
        %v995 = vrot.slane %v729, %v994
        %v1013 = vunpack.c.l.b16 %v713
        %v1014 = vunpack.c.l.b16 %v714
        %v1015 = vunpack.c.l.b16 %v715
        %v1016 = vunpack.c.l.b16 %v716
        %v1017 = vunpack.c.l.b16 %v717
        %v1018 = vunpack.c.l.b16 %v718
        %v1019 = vunpack.c.l.b16 %v719
        %v1020 = vunpack.c.l.b16 %v720
        %v1021 = vunpack.c.l.b16 %v721
        %v1022 = vunpack.c.l.b16 %v722
        %v1023 = vunpack.c.l.b16 %v723
        %v1024 = vunpack.c.l.b16 %v724
        %v1025 = vunpack.c.l.b16 %v725
        %v1026 = vunpack.c.l.b16 %v726
        %v1027 = vunpack.c.l.b16 %v727
        %v1028 = vunpack.c.l.b16 %v728
        %v1029 = vpack.c.b16 %v1014, %v1013
        %v1030 = vpack.c.b16 %v1016, %v1015
        %v1031 = vpack.c.b16 %v1018, %v1017
        %v1032 = vpack.c.b16 %v1020, %v1019
        %v1033 = vpack.c.b16 %v1022, %v1021
        %v1034 = vpack.c.b16 %v1024, %v1023
        %v1035 = vpack.c.b16 %v1026, %v1025
        %v1036 = vpack.c.b16 %v1028, %v1027
        %1045 = vmatprep.subr.bf16.mxu0 0
        %1046 = vmatpush1.bf16.msra.mxu0 %v1036
        %1047 = vmatprep.subr.bf16.mxu0 0
        %1048 = vmatpush1.bf16.msra.mxu0 %v1035
        %1049 = vmatprep.subr.bf16.mxu0 0
        %1050 = vmatpush1.bf16.msra.mxu0 %v1034
        %1051 = vmatprep.subr.bf16.mxu0 0
        %1052 = vmatpush1.bf16.msra.mxu0 %v1033
        %1053 = vmatprep.subr.bf16.mxu0 0
        %1054 = vmatpush1.bf16.msra.mxu0 %v1032
        %1055 = vmatprep.subr.bf16.mxu0 0
        %1056 = vmatpush1.bf16.msra.mxu0 %v1031
        %1057 = vmatprep.subr.bf16.mxu0 0
        %1058 = vmatpush1.bf16.msra.mxu0 %v1030
        %1059 = vmatprep.subr.bf16.mxu0 0
        %1060 = vmatpush1.bf16.msra.mxu0 %v1029
        %1061 = vmatprep.subr.bf16.mxu0 0
        %1062 = vmatpush2.bf16.msra.mxu0 0
        %1063 = vmatprep.subr.bf16.mxu0 0
        %1064 = vmatpush2.bf16.msra.mxu0 0
        %1065 = vmatprep.subr.bf16.mxu0 0
        %1066 = vmatpush2.bf16.msra.mxu0 0
        %1067 = vmatprep.subr.bf16.mxu0 0
        %1068 = vmatpush2.bf16.msra.mxu0 0
        %1069 = vmatprep.subr.bf16.mxu0 0
        %1070 = vmatpush2.bf16.msra.mxu0 0
        %1071 = vmatprep.subr.bf16.mxu0 0
        %1072 = vmatpush2.bf16.msra.mxu0 0
        %1073 = vmatprep.subr.bf16.mxu0 0
        %1074 = vmatpush2.bf16.msra.mxu0 0
        %1075 = vmatprep.subr.bf16.mxu0 0
        %1076 = vmatpush2.bf16.msra.mxu0 0
        %1077 = vmatprep.mubr.bf16.mxu0 0
        %1078 = vmatmul.mubr.bf16.gmra.mxu0 %v802
        %v1079 = vpop.f32.mrf.mxu0
        %v1080 = vadd.f32 %v995, %v1079
        %v1081 = vpop.f32.mrf.mxu0
        %v1082 = vpop.f32.mrf.mxu0
        %v1083 = vpop.f32.mrf.mxu0
        %1084 = vdwg.mxu0
        %v1085 = vmul.f32 %v892, 0.17677669
        %v1086 = vpack.c.bf16 %v1085, %v1085
        %v1087 = vpack.c.bf16 %v986, %v986
        %v1088 = vpack.c.bf16 %v1080, %v1080
        %vm1089 = vcmask 261120
        %v1091 = vsel %vm1089, %v1086, 0
        %v1094 = vsel %vm1089, %v1087, 0
        %1096 = vmatprep.subr.bf16.mxu0 0
        %1097 = vmatpush1.bf16.xpose.msra.mxu0 0
        %1098 = vmatprep.subr.bf16.mxu0 0
        %1099 = vmatpush1.bf16.xpose.msra.mxu0 0
        %1100 = vmatprep.subr.bf16.mxu0 0
        %1101 = vmatpush1.bf16.xpose.msra.mxu0 0
        %1102 = vmatprep.subr.bf16.mxu0 0
        %1103 = vmatpush1.bf16.xpose.msra.mxu0 0
        %1104 = vmatprep.subr.bf16.mxu0 0
        %1105 = vmatpush1.bf16.xpose.msra.mxu0 0
        %1106 = vmatprep.subr.bf16.mxu0 0
        %1107 = vmatpush1.bf16.xpose.msra.mxu0 0
        %1108 = vmatprep.subr.bf16.mxu0 0
        %1109 = vmatpush1.bf16.xpose.msra.mxu0 0
        %1110 = vmatprep.subr.bf16.mxu0 0
        %1111 = vmatpush1.bf16.xpose.msra.mxu0 %v1094
        %1112 = vmatprep.subr.bf16.mxu0 0
        %1113 = vmatpush2.bf16.xpose.msra.mxu0 0
        %1114 = vmatprep.subr.bf16.mxu0 0
        %1115 = vmatpush2.bf16.xpose.msra.mxu0 0
        %1116 = vmatprep.subr.bf16.mxu0 0
        %1117 = vmatpush2.bf16.xpose.msra.mxu0 0
        %1118 = vmatprep.subr.bf16.mxu0 0
        %1119 = vmatpush2.bf16.xpose.msra.mxu0 0
        %1120 = vmatprep.subr.bf16.mxu0 0
        %1121 = vmatpush2.bf16.xpose.msra.mxu0 0
        %1122 = vmatprep.subr.bf16.mxu0 0
        %1123 = vmatpush2.bf16.xpose.msra.mxu0 0
        %1124 = vmatprep.subr.bf16.mxu0 0
        %1125 = vmatpush2.bf16.xpose.msra.mxu0 0
        %1126 = vmatprep.subr.bf16.mxu0 0
        %1127 = vmatpush2.bf16.xpose.msra.mxu0 0
        %1128 = vmatprep.mubr.bf16.mxu0 0
        %1129 = vmatmul.mubr.bf16.gmra.mxu0 %v1091
        %v1130 = vpop.f32.mrf.mxu0
        %v1131 = vadd.f32 0.0, %v1130
        %v1132 = vpop.f32.mrf.mxu0
        %v1133 = vpop.f32.mrf.mxu0
        %v1134 = vpop.f32.mrf.mxu0
        %1135 = vdwg.mxu0
        %vm1136 = vcmask 62464
        %v1137 = vsel %vm1136, %v1131, -inf
        %1138 = vmax.xlane.f32.xlu0 %v1137
        %v1139 = vpop.xlane.xlu0 %1138
        %v1140 = vsub.f32 %v1131, %v1139
        %v1141 = vmul.f32 %v1140, 1.442695
        %v1142 = vpow.pop %v1141
        %v1143 = vsel %vm1136, %v1142, 0.0
        %1144 = vadd.xlane.f32.xlu0 %v1143
        %v1145 = vpop.xlane.xlu0 %1144
        %v1146 = vrcp.pop %v1145
        %v1147 = vmul.f32 %v1142, %v1146
        %v1148 = vpack.c.bf16 %v1147, %v1147
        %vm1149 = vcmask 64512
        %v1151 = vsel %vm1149, %v1148, 0
        %vm1153 = vcmask 1043456
        %v1155 = vsel %vm1153, %v1088, 0
        %1157 = vmatprep.subr.bf16.mxu0 0
        %1158 = vmatpush1.bf16.msra.mxu0 0
        %1159 = vmatprep.subr.bf16.mxu0 0
        %1160 = vmatpush1.bf16.msra.mxu0 0
        %1161 = vmatprep.subr.bf16.mxu0 0
        %1162 = vmatpush1.bf16.msra.mxu0 0
        %1163 = vmatprep.subr.bf16.mxu0 0
        %1164 = vmatpush1.bf16.msra.mxu0 0
        %1165 = vmatprep.subr.bf16.mxu0 0
        %1166 = vmatpush1.bf16.msra.mxu0 0
        %1167 = vmatprep.subr.bf16.mxu0 0
        %1168 = vmatpush1.bf16.msra.mxu0 0
        %1169 = vmatprep.subr.bf16.mxu0 0
        %1170 = vmatpush1.bf16.msra.mxu0 0
        %1171 = vmatprep.subr.bf16.mxu0 0
        %1172 = vmatpush1.bf16.msra.mxu0 %v1155
        %1173 = vmatprep.subr.bf16.mxu0 0
        %1174 = vmatpush2.bf16.msra.mxu0 0
        %1175 = vmatprep.subr.bf16.mxu0 0
        %1176 = vmatpush2.bf16.msra.mxu0 0
        %1177 = vmatprep.subr.bf16.mxu0 0
        %1178 = vmatpush2.bf16.msra.mxu0 0
        %1179 = vmatprep.subr.bf16.mxu0 0
        %1180 = vmatpush2.bf16.msra.mxu0 0
        %1181 = vmatprep.subr.bf16.mxu0 0
        %1182 = vmatpush2.bf16.msra.mxu0 0
        %1183 = vmatprep.subr.bf16.mxu0 0
        %1184 = vmatpush2.bf16.msra.mxu0 0
        %1185 = vmatprep.subr.bf16.mxu0 0
        %1186 = vmatpush2.bf16.msra.mxu0 0
        %1187 = vmatprep.subr.bf16.mxu0 0
        %1188 = vmatpush2.bf16.msra.mxu0 0
        %1189 = vmatprep.mubr.bf16.mxu0 0
        %1190 = vmatmul.mubr.bf16.gmra.mxu0 %v1151
        %v1191 = vpop.f32.mrf.mxu0
        %v1192 = vadd.f32 0.0, %v1191
        %v1193 = vpop.f32.mrf.mxu0
        %v1194 = vpop.f32.mrf.mxu0
        %v1195 = vpop.f32.mrf.mxu0
        %1196 = vdwg.mxu0
        %v1197 = vpack.c.bf16 %v1192, %v1192
        %1199 = vrot.lane.b32.xlu0 %v1086, 96
        %v1200 = vpop.permute.xlu0 %1199
        %1202 = vrot.lane.b32.xlu0 %v1087, 96
        %v1203 = vpop.permute.xlu0 %1202
        %v1205 = vsel %vm1089, %v1200, 0
        %v1208 = vsel %vm1089, %v1203, 0
        %1210 = vmatprep.subr.bf16.mxu0 0
        %1211 = vmatpush1.bf16.xpose.msra.mxu0 0
        %1212 = vmatprep.subr.bf16.mxu0 0
        %1213 = vmatpush1.bf16.xpose.msra.mxu0 0
        %1214 = vmatprep.subr.bf16.mxu0 0
        %1215 = vmatpush1.bf16.xpose.msra.mxu0 0
        %1216 = vmatprep.subr.bf16.mxu0 0
        %1217 = vmatpush1.bf16.xpose.msra.mxu0 0
        %1218 = vmatprep.subr.bf16.mxu0 0
        %1219 = vmatpush1.bf16.xpose.msra.mxu0 0
        %1220 = vmatprep.subr.bf16.mxu0 0
        %1221 = vmatpush1.bf16.xpose.msra.mxu0 0
        %1222 = vmatprep.subr.bf16.mxu0 0
        %1223 = vmatpush1.bf16.xpose.msra.mxu0 0
        %1224 = vmatprep.subr.bf16.mxu0 0
        %1225 = vmatpush1.bf16.xpose.msra.mxu0 %v1208
        %1226 = vmatprep.subr.bf16.mxu0 0
        %1227 = vmatpush2.bf16.xpose.msra.mxu0 0
        %1228 = vmatprep.subr.bf16.mxu0 0
        %1229 = vmatpush2.bf16.xpose.msra.mxu0 0
        %1230 = vmatprep.subr.bf16.mxu0 0
        %1231 = vmatpush2.bf16.xpose.msra.mxu0 0
        %1232 = vmatprep.subr.bf16.mxu0 0
        %1233 = vmatpush2.bf16.xpose.msra.mxu0 0
        %1234 = vmatprep.subr.bf16.mxu0 0
        %1235 = vmatpush2.bf16.xpose.msra.mxu0 0
        %1236 = vmatprep.subr.bf16.mxu0 0
        %1237 = vmatpush2.bf16.xpose.msra.mxu0 0
        %1238 = vmatprep.subr.bf16.mxu0 0
        %1239 = vmatpush2.bf16.xpose.msra.mxu0 0
        %1240 = vmatprep.subr.bf16.mxu0 0
        %1241 = vmatpush2.bf16.xpose.msra.mxu0 0
        %1242 = vmatprep.mubr.bf16.mxu0 0
        %1243 = vmatmul.mubr.bf16.gmra.mxu0 %v1205
        %v1244 = vpop.f32.mrf.mxu0
        %v1245 = vadd.f32 0.0, %v1244
        %v1246 = vpop.f32.mrf.mxu0
        %v1247 = vpop.f32.mrf.mxu0
        %v1248 = vpop.f32.mrf.mxu0
        %1249 = vdwg.mxu0
        %v1250 = vsel %vm1136, %v1245, -inf
        %1251 = vmax.xlane.f32.xlu0 %v1250
        %v1252 = vpop.xlane.xlu0 %1251
        %v1253 = vsub.f32 %v1245, %v1252
        %v1254 = vmul.f32 %v1253, 1.442695
        %v1255 = vpow.pop %v1254
        %v1256 = vsel %vm1136, %v1255, 0.0
        %1257 = vadd.xlane.f32.xlu0 %v1256
        %v1258 = vpop.xlane.xlu0 %1257
        %v1259 = vrcp.pop %v1258
        %v1260 = vmul.f32 %v1255, %v1259
        %v1261 = vpack.c.bf16 %v1260, %v1260
        %1263 = vrot.lane.b32.xlu0 %v1088, 96
        %v1264 = vpop.permute.xlu0 %1263
        %v1266 = vsel %vm1149, %v1261, 0
        %v1269 = vsel %vm1153, %v1264, 0
        %1271 = vmatprep.subr.bf16.mxu0 0
        %1272 = vmatpush1.bf16.msra.mxu0 0
        %1273 = vmatprep.subr.bf16.mxu0 0
        %1274 = vmatpush1.bf16.msra.mxu0 0
        %1275 = vmatprep.subr.bf16.mxu0 0
        %1276 = vmatpush1.bf16.msra.mxu0 0
        %1277 = vmatprep.subr.bf16.mxu0 0
        %1278 = vmatpush1.bf16.msra.mxu0 0
        %1279 = vmatprep.subr.bf16.mxu0 0
        %1280 = vmatpush1.bf16.msra.mxu0 0
        %1281 = vmatprep.subr.bf16.mxu0 0
        %1282 = vmatpush1.bf16.msra.mxu0 0
        %1283 = vmatprep.subr.bf16.mxu0 0
        %1284 = vmatpush1.bf16.msra.mxu0 0
        %1285 = vmatprep.subr.bf16.mxu0 0
        %1286 = vmatpush1.bf16.msra.mxu0 %v1269
        %1287 = vmatprep.subr.bf16.mxu0 0
        %1288 = vmatpush2.bf16.msra.mxu0 0
        %1289 = vmatprep.subr.bf16.mxu0 0
        %1290 = vmatpush2.bf16.msra.mxu0 0
        %1291 = vmatprep.subr.bf16.mxu0 0
        %1292 = vmatpush2.bf16.msra.mxu0 0
        %1293 = vmatprep.subr.bf16.mxu0 0
        %1294 = vmatpush2.bf16.msra.mxu0 0
        %1295 = vmatprep.subr.bf16.mxu0 0
        %1296 = vmatpush2.bf16.msra.mxu0 0
        %1297 = vmatprep.subr.bf16.mxu0 0
        %1298 = vmatpush2.bf16.msra.mxu0 0
        %1299 = vmatprep.subr.bf16.mxu0 0
        %1300 = vmatpush2.bf16.msra.mxu0 0
        %1301 = vmatprep.subr.bf16.mxu0 0
        %1302 = vmatpush2.bf16.msra.mxu0 0
        %1303 = vmatprep.mubr.bf16.mxu0 0
        %1304 = vmatmul.mubr.bf16.gmra.mxu0 %v1266
        %v1305 = vpop.f32.mrf.mxu0
        %v1306 = vadd.f32 0.0, %v1305
        %v1307 = vpop.f32.mrf.mxu0
        %v1308 = vpop.f32.mrf.mxu0
        %v1309 = vpop.f32.mrf.mxu0
        %1310 = vdwg.mxu0
        %v1311 = vpack.c.bf16 %v1306, %v1306
        %v1316 = vunpack.c.l.b16 %v734
        %v1317 = vunpack.c.l.b16 %v735
        %v1318 = vunpack.c.l.b16 %v736
        %v1319 = vunpack.c.l.b16 %v737
        %v1320 = vpack.c.b16 %v1317, %v1316
        %v1321 = vpack.c.b16 %v1319, %v1318
        %v1325 = vsel %vm1089, %v1311, 0
        %1327 = vmatprep.subr.bf16.mxu0 0
        %1328 = vmatpush1.bf16.msra.mxu0 0
        %1329 = vmatprep.subr.bf16.mxu0 0
        %1330 = vmatpush1.bf16.msra.mxu0 0
        %1331 = vmatprep.subr.bf16.mxu0 0
        %1332 = vmatpush1.bf16.msra.mxu0 0
        %1333 = vmatprep.subr.bf16.mxu0 0
        %1334 = vmatpush1.bf16.msra.mxu0 0
        %1335 = vmatprep.subr.bf16.mxu0 0
        %1336 = vmatpush1.bf16.msra.mxu0 0
        %1337 = vmatprep.subr.bf16.mxu0 0
        %1338 = vmatpush1.bf16.msra.mxu0 0
        %1339 = vmatprep.subr.bf16.mxu0 0
        %1340 = vmatpush1.bf16.msra.mxu0 %v1321
        %1341 = vmatprep.subr.bf16.mxu0 0
        %1342 = vmatpush1.bf16.msra.mxu0 %v1320
        %1343 = vmatprep.subr.bf16.mxu0 0
        %1344 = vmatpush2.bf16.msra.mxu0 0
        %1345 = vmatprep.subr.bf16.mxu0 0
        %1346 = vmatpush2.bf16.msra.mxu0 0
        %1347 = vmatprep.subr.bf16.mxu0 0
        %1348 = vmatpush2.bf16.msra.mxu0 0
        %1349 = vmatprep.subr.bf16.mxu0 0
        %1350 = vmatpush2.bf16.msra.mxu0 0
        %1351 = vmatprep.subr.bf16.mxu0 0
        %1352 = vmatpush2.bf16.msra.mxu0 0
        %1353 = vmatprep.subr.bf16.mxu0 0
        %1354 = vmatpush2.bf16.msra.mxu0 0
        %1355 = vmatprep.subr.bf16.mxu0 0
        %1356 = vmatpush2.bf16.msra.mxu0 0
        %1357 = vmatprep.subr.bf16.mxu0 0
        %1358 = vmatpush2.bf16.msra.mxu0 0
        %1359 = vmatprep.mubr.bf16.mxu0 0
        %1360 = vmatmul.mubr.bf16.gmra.mxu0 %v1325
        %v1361 = vpop.f32.mrf.mxu0
        %v1362 = vadd.f32 0.0, %v1361
        %v1363 = vpop.f32.mrf.mxu0
        %v1364 = vpop.f32.mrf.mxu0
        %v1365 = vpop.f32.mrf.mxu0
        %1366 = vdwg.mxu0
        %v1371 = vunpack.c.l.b16 %v730
        %v1372 = vunpack.c.l.b16 %v731
        %v1373 = vunpack.c.l.b16 %v732
        %v1374 = vunpack.c.l.b16 %v733
        %v1375 = vpack.c.b16 %v1372, %v1371
        %v1376 = vpack.c.b16 %v1374, %v1373
        %v1380 = vsel %vm1089, %v1197, 0
        %1382 = vmatprep.subr.bf16.mxu0 0
        %1383 = vmatpush1.bf16.msra.mxu0 0
        %1384 = vmatprep.subr.bf16.mxu0 0
        %1385 = vmatpush1.bf16.msra.mxu0 0
        %1386 = vmatprep.subr.bf16.mxu0 0
        %1387 = vmatpush1.bf16.msra.mxu0 0
        %1388 = vmatprep.subr.bf16.mxu0 0
        %1389 = vmatpush1.bf16.msra.mxu0 0
        %1390 = vmatprep.subr.bf16.mxu0 0
        %1391 = vmatpush1.bf16.msra.mxu0 0
        %1392 = vmatprep.subr.bf16.mxu0 0
        %1393 = vmatpush1.bf16.msra.mxu0 0
        %1394 = vmatprep.subr.bf16.mxu0 0
        %1395 = vmatpush1.bf16.msra.mxu0 %v1376
        %1396 = vmatprep.subr.bf16.mxu0 0
        %1397 = vmatpush1.bf16.msra.mxu0 %v1375
        %1398 = vmatprep.subr.bf16.mxu0 0
        %1399 = vmatpush2.bf16.msra.mxu0 0
        %1400 = vmatprep.subr.bf16.mxu0 0
        %1401 = vmatpush2.bf16.msra.mxu0 0
        %1402 = vmatprep.subr.bf16.mxu0 0
        %1403 = vmatpush2.bf16.msra.mxu0 0
        %1404 = vmatprep.subr.bf16.mxu0 0
        %1405 = vmatpush2.bf16.msra.mxu0 0
        %1406 = vmatprep.subr.bf16.mxu0 0
        %1407 = vmatpush2.bf16.msra.mxu0 0
        %1408 = vmatprep.subr.bf16.mxu0 0
        %1409 = vmatpush2.bf16.msra.mxu0 0
        %1410 = vmatprep.subr.bf16.mxu0 0
        %1411 = vmatpush2.bf16.msra.mxu0 0
        %1412 = vmatprep.subr.bf16.mxu0 0
        %1413 = vmatpush2.bf16.msra.mxu0 0
        %1414 = vmatprep.mubr.bf16.mxu0 0
        %1415 = vmatmul.mubr.bf16.gmra.mxu0 %v1380
        %v1416 = vpop.f32.mrf.mxu0
        %v1417 = vadd.f32 %v1362, %v1416
        %v1418 = vpop.f32.mrf.mxu0
        %v1419 = vpop.f32.mrf.mxu0
        %v1420 = vpop.f32.mrf.mxu0
        %1421 = vdwg.mxu0
        %1422 = vrot.lane.b32.xlu0 %v1086, 64
        %v1423 = vpop.permute.xlu0 %1422
        %1424 = vrot.lane.b32.xlu0 %v1087, 64
        %v1425 = vpop.permute.xlu0 %1424
        %v1427 = vsel %vm1089, %v1423, 0
        %v1430 = vsel %vm1089, %v1425, 0
        %1432 = vmatprep.subr.bf16.mxu0 0
        %1433 = vmatpush1.bf16.xpose.msra.mxu0 0
        %1434 = vmatprep.subr.bf16.mxu0 0
        %1435 = vmatpush1.bf16.xpose.msra.mxu0 0
        %1436 = vmatprep.subr.bf16.mxu0 0
        %1437 = vmatpush1.bf16.xpose.msra.mxu0 0
        %1438 = vmatprep.subr.bf16.mxu0 0
        %1439 = vmatpush1.bf16.xpose.msra.mxu0 0
        %1440 = vmatprep.subr.bf16.mxu0 0
        %1441 = vmatpush1.bf16.xpose.msra.mxu0 0
        %1442 = vmatprep.subr.bf16.mxu0 0
        %1443 = vmatpush1.bf16.xpose.msra.mxu0 0
        %1444 = vmatprep.subr.bf16.mxu0 0
        %1445 = vmatpush1.bf16.xpose.msra.mxu0 0
        %1446 = vmatprep.subr.bf16.mxu0 0
        %1447 = vmatpush1.bf16.xpose.msra.mxu0 %v1430
        %1448 = vmatprep.subr.bf16.mxu0 0
        %1449 = vmatpush2.bf16.xpose.msra.mxu0 0
        %1450 = vmatprep.subr.bf16.mxu0 0
        %1451 = vmatpush2.bf16.xpose.msra.mxu0 0
        %1452 = vmatprep.subr.bf16.mxu0 0
        %1453 = vmatpush2.bf16.xpose.msra.mxu0 0
        %1454 = vmatprep.subr.bf16.mxu0 0
        %1455 = vmatpush2.bf16.xpose.msra.mxu0 0
        %1456 = vmatprep.subr.bf16.mxu0 0
        %1457 = vmatpush2.bf16.xpose.msra.mxu0 0
        %1458 = vmatprep.subr.bf16.mxu0 0
        %1459 = vmatpush2.bf16.xpose.msra.mxu0 0
        %1460 = vmatprep.subr.bf16.mxu0 0
        %1461 = vmatpush2.bf16.xpose.msra.mxu0 0
        %1462 = vmatprep.subr.bf16.mxu0 0
        %1463 = vmatpush2.bf16.xpose.msra.mxu0 0
        %1464 = vmatprep.mubr.bf16.mxu0 0
        %1465 = vmatmul.mubr.bf16.gmra.mxu0 %v1427
        %v1466 = vpop.f32.mrf.mxu0
        %v1467 = vadd.f32 0.0, %v1466
        %v1468 = vpop.f32.mrf.mxu0
        %v1469 = vpop.f32.mrf.mxu0
        %v1470 = vpop.f32.mrf.mxu0
        %1471 = vdwg.mxu0
        %v1472 = vsel %vm1136, %v1467, -inf
        %1473 = vmax.xlane.f32.xlu0 %v1472
        %v1474 = vpop.xlane.xlu0 %1473
        %v1475 = vsub.f32 %v1467, %v1474
        %v1476 = vmul.f32 %v1475, 1.442695
        %v1477 = vpow.pop %v1476
        %v1478 = vsel %vm1136, %v1477, 0.0
        %1479 = vadd.xlane.f32.xlu0 %v1478
        %v1480 = vpop.xlane.xlu0 %1479
        %v1481 = vrcp.pop %v1480
        %v1482 = vmul.f32 %v1477, %v1481
        %v1483 = vpack.c.bf16 %v1482, %v1482
        %1484 = vrot.lane.b32.xlu0 %v1088, 64
        %v1485 = vpop.permute.xlu0 %1484
        %v1487 = vsel %vm1149, %v1483, 0
        %v1490 = vsel %vm1153, %v1485, 0
        %1492 = vmatprep.subr.bf16.mxu0 0
        %1493 = vmatpush1.bf16.msra.mxu0 0
        %1494 = vmatprep.subr.bf16.mxu0 0
        %1495 = vmatpush1.bf16.msra.mxu0 0
        %1496 = vmatprep.subr.bf16.mxu0 0
        %1497 = vmatpush1.bf16.msra.mxu0 0
        %1498 = vmatprep.subr.bf16.mxu0 0
        %1499 = vmatpush1.bf16.msra.mxu0 0
        %1500 = vmatprep.subr.bf16.mxu0 0
        %1501 = vmatpush1.bf16.msra.mxu0 0
        %1502 = vmatprep.subr.bf16.mxu0 0
        %1503 = vmatpush1.bf16.msra.mxu0 0
        %1504 = vmatprep.subr.bf16.mxu0 0
        %1505 = vmatpush1.bf16.msra.mxu0 0
        %1506 = vmatprep.subr.bf16.mxu0 0
        %1507 = vmatpush1.bf16.msra.mxu0 %v1490
        %1508 = vmatprep.subr.bf16.mxu0 0
        %1509 = vmatpush2.bf16.msra.mxu0 0
        %1510 = vmatprep.subr.bf16.mxu0 0
        %1511 = vmatpush2.bf16.msra.mxu0 0
        %1512 = vmatprep.subr.bf16.mxu0 0
        %1513 = vmatpush2.bf16.msra.mxu0 0
        %1514 = vmatprep.subr.bf16.mxu0 0
        %1515 = vmatpush2.bf16.msra.mxu0 0
        %1516 = vmatprep.subr.bf16.mxu0 0
        %1517 = vmatpush2.bf16.msra.mxu0 0
        %1518 = vmatprep.subr.bf16.mxu0 0
        %1519 = vmatpush2.bf16.msra.mxu0 0
        %1520 = vmatprep.subr.bf16.mxu0 0
        %1521 = vmatpush2.bf16.msra.mxu0 0
        %1522 = vmatprep.subr.bf16.mxu0 0
        %1523 = vmatpush2.bf16.msra.mxu0 0
        %1524 = vmatprep.mubr.bf16.mxu0 0
        %1525 = vmatmul.mubr.bf16.gmra.mxu0 %v1487
        %v1526 = vpop.f32.mrf.mxu0
        %v1527 = vadd.f32 0.0, %v1526
        %v1528 = vpop.f32.mrf.mxu0
        %v1529 = vpop.f32.mrf.mxu0
        %v1530 = vpop.f32.mrf.mxu0
        %1531 = vdwg.mxu0
        %v1532 = vpack.c.bf16 %v1527, %v1527
        %v1537 = vunpack.c.l.b16 %v738
        %v1538 = vunpack.c.l.b16 %v739
        %v1539 = vunpack.c.l.b16 %v740
        %v1540 = vunpack.c.l.b16 %v741
        %v1541 = vpack.c.b16 %v1538, %v1537
        %v1542 = vpack.c.b16 %v1540, %v1539
        %v1546 = vsel %vm1089, %v1532, 0
        %1548 = vmatprep.subr.bf16.mxu0 0
        %1549 = vmatpush1.bf16.msra.mxu0 0
        %1550 = vmatprep.subr.bf16.mxu0 0
        %1551 = vmatpush1.bf16.msra.mxu0 0
        %1552 = vmatprep.subr.bf16.mxu0 0
        %1553 = vmatpush1.bf16.msra.mxu0 0
        %1554 = vmatprep.subr.bf16.mxu0 0
        %1555 = vmatpush1.bf16.msra.mxu0 0
        %1556 = vmatprep.subr.bf16.mxu0 0
        %1557 = vmatpush1.bf16.msra.mxu0 0
        %1558 = vmatprep.subr.bf16.mxu0 0
        %1559 = vmatpush1.bf16.msra.mxu0 0
        %1560 = vmatprep.subr.bf16.mxu0 0
        %1561 = vmatpush1.bf16.msra.mxu0 %v1542
        %1562 = vmatprep.subr.bf16.mxu0 0
        %1563 = vmatpush1.bf16.msra.mxu0 %v1541
        %1564 = vmatprep.subr.bf16.mxu0 0
        %1565 = vmatpush2.bf16.msra.mxu0 0
        %1566 = vmatprep.subr.bf16.mxu0 0
        %1567 = vmatpush2.bf16.msra.mxu0 0
        %1568 = vmatprep.subr.bf16.mxu0 0
        %1569 = vmatpush2.bf16.msra.mxu0 0
        %1570 = vmatprep.subr.bf16.mxu0 0
        %1571 = vmatpush2.bf16.msra.mxu0 0
        %1572 = vmatprep.subr.bf16.mxu0 0
        %1573 = vmatpush2.bf16.msra.mxu0 0
        %1574 = vmatprep.subr.bf16.mxu0 0
        %1575 = vmatpush2.bf16.msra.mxu0 0
        %1576 = vmatprep.subr.bf16.mxu0 0
        %1577 = vmatpush2.bf16.msra.mxu0 0
        %1578 = vmatprep.subr.bf16.mxu0 0
        %1579 = vmatpush2.bf16.msra.mxu0 0
        %1580 = vmatprep.mubr.bf16.mxu0 0
        %1581 = vmatmul.mubr.bf16.gmra.mxu0 %v1546
        %v1582 = vpop.f32.mrf.mxu0
        %v1583 = vadd.f32 0.0, %v1582
        %v1584 = vpop.f32.mrf.mxu0
        %v1585 = vpop.f32.mrf.mxu0
        %v1586 = vpop.f32.mrf.mxu0
        %1587 = vdwg.mxu0
        %v1588 = vadd.f32 %v1417, %v1583
        %1589 = vrot.lane.b32.xlu0 %v1086, 32
        %v1590 = vpop.permute.xlu0 %1589
        %1591 = vrot.lane.b32.xlu0 %v1087, 32
        %v1592 = vpop.permute.xlu0 %1591
        %v1594 = vsel %vm1089, %v1590, 0
        %v1597 = vsel %vm1089, %v1592, 0
        %1599 = vmatprep.subr.bf16.mxu0 0
        %1600 = vmatpush1.bf16.xpose.msra.mxu0 0
        %1601 = vmatprep.subr.bf16.mxu0 0
        %1602 = vmatpush1.bf16.xpose.msra.mxu0 0
        %1603 = vmatprep.subr.bf16.mxu0 0
        %1604 = vmatpush1.bf16.xpose.msra.mxu0 0
        %1605 = vmatprep.subr.bf16.mxu0 0
        %1606 = vmatpush1.bf16.xpose.msra.mxu0 0
        %1607 = vmatprep.subr.bf16.mxu0 0
        %1608 = vmatpush1.bf16.xpose.msra.mxu0 0
        %1609 = vmatprep.subr.bf16.mxu0 0
        %1610 = vmatpush1.bf16.xpose.msra.mxu0 0
        %1611 = vmatprep.subr.bf16.mxu0 0
        %1612 = vmatpush1.bf16.xpose.msra.mxu0 0
        %1613 = vmatprep.subr.bf16.mxu0 0
        %1614 = vmatpush1.bf16.xpose.msra.mxu0 %v1597
        %1615 = vmatprep.subr.bf16.mxu0 0
        %1616 = vmatpush2.bf16.xpose.msra.mxu0 0
        %1617 = vmatprep.subr.bf16.mxu0 0
        %1618 = vmatpush2.bf16.xpose.msra.mxu0 0
        %1619 = vmatprep.subr.bf16.mxu0 0
        %1620 = vmatpush2.bf16.xpose.msra.mxu0 0
        %1621 = vmatprep.subr.bf16.mxu0 0
        %1622 = vmatpush2.bf16.xpose.msra.mxu0 0
        %1623 = vmatprep.subr.bf16.mxu0 0
        %1624 = vmatpush2.bf16.xpose.msra.mxu0 0
        %1625 = vmatprep.subr.bf16.mxu0 0
        %1626 = vmatpush2.bf16.xpose.msra.mxu0 0
        %1627 = vmatprep.subr.bf16.mxu0 0
        %1628 = vmatpush2.bf16.xpose.msra.mxu0 0
        %1629 = vmatprep.subr.bf16.mxu0 0
        %1630 = vmatpush2.bf16.xpose.msra.mxu0 0
        %1631 = vmatprep.mubr.bf16.mxu0 0
        %1632 = vmatmul.mubr.bf16.gmra.mxu0 %v1594
        %v1633 = vpop.f32.mrf.mxu0
        %v1634 = vadd.f32 0.0, %v1633
        %v1635 = vpop.f32.mrf.mxu0
        %v1636 = vpop.f32.mrf.mxu0
        %v1637 = vpop.f32.mrf.mxu0
        %1638 = vdwg.mxu0
        %v1639 = vsel %vm1136, %v1634, -inf
        %1640 = vmax.xlane.f32.xlu0 %v1639
        %v1641 = vpop.xlane.xlu0 %1640
        %v1642 = vsub.f32 %v1634, %v1641
        %v1643 = vmul.f32 %v1642, 1.442695
        %v1644 = vpow.pop %v1643
        %v1645 = vsel %vm1136, %v1644, 0.0
        %1646 = vadd.xlane.f32.xlu0 %v1645
        %v1647 = vpop.xlane.xlu0 %1646
        %v1648 = vrcp.pop %v1647
        %v1649 = vmul.f32 %v1644, %v1648
        %v1650 = vpack.c.bf16 %v1649, %v1649
        %1651 = vrot.lane.b32.xlu0 %v1088, 32
        %v1652 = vpop.permute.xlu0 %1651
        %v1654 = vsel %vm1149, %v1650, 0
        %v1657 = vsel %vm1153, %v1652, 0
        %1659 = vmatprep.subr.bf16.mxu0 0
        %1660 = vmatpush1.bf16.msra.mxu0 0
        %1661 = vmatprep.subr.bf16.mxu0 0
        %1662 = vmatpush1.bf16.msra.mxu0 0
        %1663 = vmatprep.subr.bf16.mxu0 0
        %1664 = vmatpush1.bf16.msra.mxu0 0
        %1665 = vmatprep.subr.bf16.mxu0 0
        %1666 = vmatpush1.bf16.msra.mxu0 0
        %1667 = vmatprep.subr.bf16.mxu0 0
        %1668 = vmatpush1.bf16.msra.mxu0 0
        %1669 = vmatprep.subr.bf16.mxu0 0
        %1670 = vmatpush1.bf16.msra.mxu0 0
        %1671 = vmatprep.subr.bf16.mxu0 0
        %1672 = vmatpush1.bf16.msra.mxu0 0
        %1673 = vmatprep.subr.bf16.mxu0 0
        %1674 = vmatpush1.bf16.msra.mxu0 %v1657
        %1675 = vmatprep.subr.bf16.mxu0 0
        %1676 = vmatpush2.bf16.msra.mxu0 0
        %1677 = vmatprep.subr.bf16.mxu0 0
        %1678 = vmatpush2.bf16.msra.mxu0 0
        %1679 = vmatprep.subr.bf16.mxu0 0
        %1680 = vmatpush2.bf16.msra.mxu0 0
        %1681 = vmatprep.subr.bf16.mxu0 0
        %1682 = vmatpush2.bf16.msra.mxu0 0
        %1683 = vmatprep.subr.bf16.mxu0 0
        %1684 = vmatpush2.bf16.msra.mxu0 0
        %1685 = vmatprep.subr.bf16.mxu0 0
        %1686 = vmatpush2.bf16.msra.mxu0 0
        %1687 = vmatprep.subr.bf16.mxu0 0
        %1688 = vmatpush2.bf16.msra.mxu0 0
        %1689 = vmatprep.subr.bf16.mxu0 0
        %1690 = vmatpush2.bf16.msra.mxu0 0
        %1691 = vmatprep.mubr.bf16.mxu0 0
        %1692 = vmatmul.mubr.bf16.gmra.mxu0 %v1654
        %v1693 = vpop.f32.mrf.mxu0
        %v1694 = vadd.f32 0.0, %v1693
        %v1695 = vpop.f32.mrf.mxu0
        %v1696 = vpop.f32.mrf.mxu0
        %v1697 = vpop.f32.mrf.mxu0
        %1698 = vdwg.mxu0
        %v1699 = vpack.c.bf16 %v1694, %v1694
        %v1704 = vunpack.c.l.b16 %v742
        %v1705 = vunpack.c.l.b16 %v743
        %v1706 = vunpack.c.l.b16 %v744
        %v1707 = vunpack.c.l.b16 %v745
        %v1708 = vpack.c.b16 %v1705, %v1704
        %v1709 = vpack.c.b16 %v1707, %v1706
        %v1713 = vsel %vm1089, %v1699, 0
        %1715 = vmatprep.subr.bf16.mxu0 0
        %1716 = vmatpush1.bf16.msra.mxu0 0
        %1717 = vmatprep.subr.bf16.mxu0 0
        %1718 = vmatpush1.bf16.msra.mxu0 0
        %1719 = vmatprep.subr.bf16.mxu0 0
        %1720 = vmatpush1.bf16.msra.mxu0 0
        %1721 = vmatprep.subr.bf16.mxu0 0
        %1722 = vmatpush1.bf16.msra.mxu0 0
        %1723 = vmatprep.subr.bf16.mxu0 0
        %1724 = vmatpush1.bf16.msra.mxu0 0
        %1725 = vmatprep.subr.bf16.mxu0 0
        %1726 = vmatpush1.bf16.msra.mxu0 0
        %1727 = vmatprep.subr.bf16.mxu0 0
        %1728 = vmatpush1.bf16.msra.mxu0 %v1709
        %1729 = vmatprep.subr.bf16.mxu0 0
        %1730 = vmatpush1.bf16.msra.mxu0 %v1708
        %1731 = vmatprep.subr.bf16.mxu0 0
        %1732 = vmatpush2.bf16.msra.mxu0 0
        %1733 = vmatprep.subr.bf16.mxu0 0
        %1734 = vmatpush2.bf16.msra.mxu0 0
        %1735 = vmatprep.subr.bf16.mxu0 0
        %1736 = vmatpush2.bf16.msra.mxu0 0
        %1737 = vmatprep.subr.bf16.mxu0 0
        %1738 = vmatpush2.bf16.msra.mxu0 0
        %1739 = vmatprep.subr.bf16.mxu0 0
        %1740 = vmatpush2.bf16.msra.mxu0 0
        %1741 = vmatprep.subr.bf16.mxu0 0
        %1742 = vmatpush2.bf16.msra.mxu0 0
        %1743 = vmatprep.subr.bf16.mxu0 0
        %1744 = vmatpush2.bf16.msra.mxu0 0
        %1745 = vmatprep.subr.bf16.mxu0 0
        %1746 = vmatpush2.bf16.msra.mxu0 0
        %1747 = vmatprep.mubr.bf16.mxu0 0
        %1748 = vmatmul.mubr.bf16.gmra.mxu0 %v1713
        %v1749 = vpop.f32.mrf.mxu0
        %v1750 = vadd.f32 0.0, %v1749
        %v1751 = vpop.f32.mrf.mxu0
        %v1752 = vpop.f32.mrf.mxu0
        %v1753 = vpop.f32.mrf.mxu0
        %1754 = vdwg.mxu0
        %v1755 = vadd.f32 %v1588, %v1750
        %v1756 = vadd.f32 %v677, %v1755
        %v1758 = vlaneseq
        %v1759 = vshrl.u32 %v1758, 7
        %v1760 = vsub.s32 0, %v1759
        %v1761 = vrot.slane %v746, %v1760
        %v1763 = vadd.f32 %v1756, %v1761
        %vm1764 = vcmask 1045504
        %v1765 = vsel %vm1764, %v1763, 0.0
        %1766 = vadd.xlane.f32.xlu0 %v1765
        %v1767 = vpop.xlane.xlu0 %1766
        %v1768 = vrcp.pop 128.0
        %v1769 = vmul.f32 %v1767, %v1768
        %v1770 = vsub.f32 %v1763, %v1769
        %v1771 = vmul.f32 %v1770, %v1770
        %v1772 = vsel %vm1764, %v1771, 0.0
        %1773 = vadd.xlane.f32.xlu0 %v1772
        %v1774 = vpop.xlane.xlu0 %1773
        %v1775 = vmul.f32 %v1774, %v1768
        %v1776 = vadd.f32 %v1775, 1e-05
        %v1777 = vrsqrt.pop %v1776
        %v1778 = vmul.f32 %v1770, %v1777
        %v1780 = vlaneseq
        %v1781 = vshrl.u32 %v1780, 7
        %v1782 = vsub.s32 0, %v1781
        %v1783 = vrot.slane %v747, %v1782
        %v1785 = vmul.f32 %v1778, %v1783
        %v1787 = vlaneseq
        %v1788 = vshrl.u32 %v1787, 7
        %v1789 = vsub.s32 0, %v1788
        %v1790 = vrot.slane %v748, %v1789
        %v1792 = vadd.f32 %v1785, %v1790
        %v1793 = vpack.c.bf16 %v1792, %v1792
        %v1795 = vlaneseq
        %v1796 = vshrl.u32 %v1795, 7
        %v1797 = vsub.s32 0, %v1796
        %v1798 = vrot.slane %v765, %v1797
        %v1799 = vlaneseq
        %v1800 = vshrl.u32 %v1799, 7
        %v1801 = vsub.s32 1, %v1800
        %v1802 = vrot.slane %v765, %v1801
        %v1821 = vunpack.c.l.b16 %v749
        %v1822 = vunpack.c.h.b16 %v749
        %v1823 = vunpack.c.l.b16 %v750
        %v1824 = vunpack.c.h.b16 %v750
        %v1825 = vunpack.c.l.b16 %v751
        %v1826 = vunpack.c.h.b16 %v751
        %v1827 = vunpack.c.l.b16 %v752
        %v1828 = vunpack.c.h.b16 %v752
        %v1829 = vunpack.c.l.b16 %v753
        %v1830 = vunpack.c.h.b16 %v753
        %v1831 = vunpack.c.l.b16 %v754
        %v1832 = vunpack.c.h.b16 %v754
        %v1833 = vunpack.c.l.b16 %v755
        %v1834 = vunpack.c.h.b16 %v755
        %v1835 = vunpack.c.l.b16 %v756
        %v1836 = vunpack.c.h.b16 %v756
        %v1837 = vunpack.c.l.b16 %v757
        %v1838 = vunpack.c.h.b16 %v757
        %v1839 = vunpack.c.l.b16 %v758
        %v1840 = vunpack.c.h.b16 %v758
        %v1841 = vunpack.c.l.b16 %v759
        %v1842 = vunpack.c.h.b16 %v759
        %v1843 = vunpack.c.l.b16 %v760
        %v1844 = vunpack.c.h.b16 %v760
        %v1845 = vunpack.c.l.b16 %v761
        %v1846 = vunpack.c.h.b16 %v761
        %v1847 = vunpack.c.l.b16 %v762
        %v1848 = vunpack.c.h.b16 %v762
        %v1849 = vunpack.c.l.b16 %v763
        %v1850 = vunpack.c.h.b16 %v763
        %v1851 = vunpack.c.l.b16 %v764
        %v1852 = vunpack.c.h.b16 %v764
        %v1853 = vpack.c.b16 %v1823, %v1821
        %v1854 = vpack.c.b16 %v1824, %v1822
        %v1855 = vpack.c.b16 %v1827, %v1825
        %v1856 = vpack.c.b16 %v1828, %v1826
        %v1857 = vpack.c.b16 %v1831, %v1829
        %v1858 = vpack.c.b16 %v1832, %v1830
        %v1859 = vpack.c.b16 %v1835, %v1833
        %v1860 = vpack.c.b16 %v1836, %v1834
        %v1861 = vpack.c.b16 %v1839, %v1837
        %v1862 = vpack.c.b16 %v1840, %v1838
        %v1863 = vpack.c.b16 %v1843, %v1841
        %v1864 = vpack.c.b16 %v1844, %v1842
        %v1865 = vpack.c.b16 %v1847, %v1845
        %v1866 = vpack.c.b16 %v1848, %v1846
        %v1867 = vpack.c.b16 %v1851, %v1849
        %v1868 = vpack.c.b16 %v1852, %v1850
        %1885 = vmatprep.subr.bf16.mxu0 %v1868
        %1886 = vmatpush1.bf16.msra.mxu0 %v1867
        %1887 = vmatprep.subr.bf16.mxu0 %v1866
        %1888 = vmatpush1.bf16.msra.mxu0 %v1865
        %1889 = vmatprep.subr.bf16.mxu0 %v1864
        %1890 = vmatpush1.bf16.msra.mxu0 %v1863
        %1891 = vmatprep.subr.bf16.mxu0 %v1862
        %1892 = vmatpush1.bf16.msra.mxu0 %v1861
        %1893 = vmatprep.subr.bf16.mxu0 %v1860
        %1894 = vmatpush1.bf16.msra.mxu0 %v1859
        %1895 = vmatprep.subr.bf16.mxu0 %v1858
        %1896 = vmatpush1.bf16.msra.mxu0 %v1857
        %1897 = vmatprep.subr.bf16.mxu0 %v1856
        %1898 = vmatpush1.bf16.msra.mxu0 %v1855
        %1899 = vmatprep.subr.bf16.mxu0 %v1854
        %1900 = vmatpush1.bf16.msra.mxu0 %v1853
        %1901 = vmatprep.subr.bf16.mxu0 0
        %1902 = vmatpush2.bf16.msra.mxu0 0
        %1903 = vmatprep.subr.bf16.mxu0 0
        %1904 = vmatpush2.bf16.msra.mxu0 0
        %1905 = vmatprep.subr.bf16.mxu0 0
        %1906 = vmatpush2.bf16.msra.mxu0 0
        %1907 = vmatprep.subr.bf16.mxu0 0
        %1908 = vmatpush2.bf16.msra.mxu0 0
        %1909 = vmatprep.subr.bf16.mxu0 0
        %1910 = vmatpush2.bf16.msra.mxu0 0
        %1911 = vmatprep.subr.bf16.mxu0 0
        %1912 = vmatpush2.bf16.msra.mxu0 0
        %1913 = vmatprep.subr.bf16.mxu0 0
        %1914 = vmatpush2.bf16.msra.mxu0 0
        %1915 = vmatprep.subr.bf16.mxu0 0
        %1916 = vmatpush2.bf16.msra.mxu0 0
        %1917 = vmatprep.mubr.bf16.mxu0 0
        %1918 = vmatmul.mubr.bf16.gmra.mxu0 %v1793
        %v1919 = vpop.f32.mrf.mxu0
        %v1920 = vadd.f32 %v1798, %v1919
        %v1921 = vpop.f32.mrf.mxu0
        %v1922 = vadd.f32 %v1802, %v1921
        %v1923 = vpop.f32.mrf.mxu0
        %v1924 = vpop.f32.mrf.mxu0
        %1925 = vdwg.mxu0
        %v1926 = vmax.f32 %v1920, 0.0
        %v1927 = vmax.f32 %v1922, 0.0
        %v1928 = vpack.c.bf16 %v1926, %v1926
        %v1929 = vpack.c.bf16 %v1927, %v1927
        %v1931 = vlaneseq
        %v1932 = vshrl.u32 %v1931, 7
        %v1933 = vsub.s32 0, %v1932
        %v1934 = vrot.slane %v798, %v1933
        %v1968 = vunpack.c.l.b16 %v766
        %v1969 = vunpack.c.l.b16 %v767
        %v1970 = vunpack.c.l.b16 %v768
        %v1971 = vunpack.c.l.b16 %v769
        %v1972 = vunpack.c.l.b16 %v770
        %v1973 = vunpack.c.l.b16 %v771
        %v1974 = vunpack.c.l.b16 %v772
        %v1975 = vunpack.c.l.b16 %v773
        %v1976 = vunpack.c.l.b16 %v774
        %v1977 = vunpack.c.l.b16 %v775
        %v1978 = vunpack.c.l.b16 %v776
        %v1979 = vunpack.c.l.b16 %v777
        %v1980 = vunpack.c.l.b16 %v778
        %v1981 = vunpack.c.l.b16 %v779
        %v1982 = vunpack.c.l.b16 %v780
        %v1983 = vunpack.c.l.b16 %v781
        %v1984 = vunpack.c.l.b16 %v782
        %v1985 = vunpack.c.l.b16 %v783
        %v1986 = vunpack.c.l.b16 %v784
        %v1987 = vunpack.c.l.b16 %v785
        %v1988 = vunpack.c.l.b16 %v786
        %v1989 = vunpack.c.l.b16 %v787
        %v1990 = vunpack.c.l.b16 %v788
        %v1991 = vunpack.c.l.b16 %v789
        %v1992 = vunpack.c.l.b16 %v790
        %v1993 = vunpack.c.l.b16 %v791
        %v1994 = vunpack.c.l.b16 %v792
        %v1995 = vunpack.c.l.b16 %v793
        %v1996 = vunpack.c.l.b16 %v794
        %v1997 = vunpack.c.l.b16 %v795
        %v1998 = vunpack.c.l.b16 %v796
        %v1999 = vunpack.c.l.b16 %v797
        %v2000 = vpack.c.b16 %v1969, %v1968
        %v2001 = vpack.c.b16 %v1971, %v1970
        %v2002 = vpack.c.b16 %v1973, %v1972
        %v2003 = vpack.c.b16 %v1975, %v1974
        %v2004 = vpack.c.b16 %v1977, %v1976
        %v2005 = vpack.c.b16 %v1979, %v1978
        %v2006 = vpack.c.b16 %v1981, %v1980
        %v2007 = vpack.c.b16 %v1983, %v1982
        %v2008 = vpack.c.b16 %v1985, %v1984
        %v2009 = vpack.c.b16 %v1987, %v1986
        %v2010 = vpack.c.b16 %v1989, %v1988
        %v2011 = vpack.c.b16 %v1991, %v1990
        %v2012 = vpack.c.b16 %v1993, %v1992
        %v2013 = vpack.c.b16 %v1995, %v1994
        %v2014 = vpack.c.b16 %v1997, %v1996
        %v2015 = vpack.c.b16 %v1999, %v1998
        %2032 = vmatprep.subr.bf16.mxu0 0
        %2033 = vmatpush1.bf16.msra.mxu0 %v2007
        %2034 = vmatprep.subr.bf16.mxu0 0
        %2035 = vmatpush1.bf16.msra.mxu0 %v2006
        %2036 = vmatprep.subr.bf16.mxu0 0
        %2037 = vmatpush1.bf16.msra.mxu0 %v2005
        %2038 = vmatprep.subr.bf16.mxu0 0
        %2039 = vmatpush1.bf16.msra.mxu0 %v2004
        %2040 = vmatprep.subr.bf16.mxu0 0
        %2041 = vmatpush1.bf16.msra.mxu0 %v2003
        %2042 = vmatprep.subr.bf16.mxu0 0
        %2043 = vmatpush1.bf16.msra.mxu0 %v2002
        %2044 = vmatprep.subr.bf16.mxu0 0
        %2045 = vmatpush1.bf16.msra.mxu0 %v2001
        %2046 = vmatprep.subr.bf16.mxu0 0
        %2047 = vmatpush1.bf16.msra.mxu0 %v2000
        %2048 = vmatprep.subr.bf16.mxu0 0
        %2049 = vmatpush2.bf16.msra.mxu0 %v2015
        %2050 = vmatprep.subr.bf16.mxu0 0
        %2051 = vmatpush2.bf16.msra.mxu0 %v2014
        %2052 = vmatprep.subr.bf16.mxu0 0
        %2053 = vmatpush2.bf16.msra.mxu0 %v2013
        %2054 = vmatprep.subr.bf16.mxu0 0
        %2055 = vmatpush2.bf16.msra.mxu0 %v2012
        %2056 = vmatprep.subr.bf16.mxu0 0
        %2057 = vmatpush2.bf16.msra.mxu0 %v2011
        %2058 = vmatprep.subr.bf16.mxu0 0
        %2059 = vmatpush2.bf16.msra.mxu0 %v2010
        %2060 = vmatprep.subr.bf16.mxu0 0
        %2061 = vmatpush2.bf16.msra.mxu0 %v2009
        %2062 = vmatprep.subr.bf16.mxu0 0
        %2063 = vmatpush2.bf16.msra.mxu0 %v2008
        %2064 = vmatprep.mubr.bf16.mxu0 %v1929
        %2065 = vmatmul.mubr.bf16.gmra.mxu0 %v1928
        %v2066 = vpop.f32.mrf.mxu0
        %v2067 = vadd.f32 %v1934, %v2066
        %v2068 = vpop.f32.mrf.mxu0
        %v2069 = vpop.f32.mrf.mxu0
        %v2070 = vpop.f32.mrf.mxu0
        %2071 = vdwg.mxu0
        %v2072 = vadd.f32 %v1792, %v2067
        %v2073 = vsel %vm1764, %v2072, 0.0
        %2074 = vadd.xlane.f32.xlu0 %v2073
        %v2075 = vpop.xlane.xlu0 %2074
        %v2076 = vmul.f32 %v2075, %v1768
        %v2077 = vsub.f32 %v2072, %v2076
        %v2078 = vmul.f32 %v2077, %v2077
        %v2079 = vsel %vm1764, %v2078, 0.0
        %2080 = vadd.xlane.f32.xlu0 %v2079
        %v2081 = vpop.xlane.xlu0 %2080
        %v2082 = vmul.f32 %v2081, %v1768
        %v2083 = vadd.f32 %v2082, 1e-05
        %v2084 = vrsqrt.pop %v2083
        %v2085 = vmul.f32 %v2077, %v2084
        %v2087 = vlaneseq
        %v2088 = vshrl.u32 %v2087, 7
        %v2089 = vsub.s32 0, %v2088
        %v2090 = vrot.slane %v799, %v2089
        %v2092 = vmul.f32 %v2085, %v2090
        %v2094 = vlaneseq
        %v2095 = vshrl.u32 %v2094, 7
        %v2096 = vsub.s32 0, %v2095
        %v2097 = vrot.slane %v800, %v2096
        %v2099 = vadd.f32 %v2092, %v2097
        %2100 = vst [vmem:[%s675] sm:$0x3f] %v2099
        %p2101 = scmp.lt.s32.totalorder %s33, 1
        %s2102 = scalar_select %p2101, %s33, 1
        %s2103 = smul.addr %s2102, 8
        %s2104 = scalar_lea.vmem %s18, %s2103
        // Predicated region
        $region117: #{transformer_decoder_forward.2} parent=91 // pred_check
          %p2105 = pneg %p439
        $region118: #{transformer_decoder_forward.2} parent=91 // pred_check_branch
          %2107 = sbr.rel (%p2105) target = $region120
        $region119: #{transformer_decoder_forward.2} parent=91 // pred_region
          _
        $region120: #{transformer_decoder_forward.2} parent=91 // pred_fallthru
          _
      $region92: #{transformer_decoder_forward.2} parent=5 // pred_fallthru
        _
      %p2108 = scmp.le.s32.totalorder 2, %s28
      // Predicated region
      $region121: #{transformer_decoder_forward.2} parent=5 // pred_check
        %p2109 = pneg %p2108
      $region122: #{transformer_decoder_forward.2} parent=5 // pred_check_branch
        %2111 = sbr.rel (%p2109) target = $region124
      $region123: #{transformer_decoder_forward.2} parent=5 // pred_region
        %s2112 = ssub.s32 %s28, 2
        // Predicated region
        $region125: #{transformer_decoder_forward.2} parent=123 // pred_check
          %p2113 = pneg %p445
        $region126: #{transformer_decoder_forward.2} parent=123 // pred_check_branch
          %2115 = sbr.rel (%p2113) target = $region128
        $region127: #{transformer_decoder_forward.2} parent=123 // pred_region
          %p2116 = scmp.lt.s32.totalorder %s34, 1
          %s2117 = scalar_select %p2116, %s34, 1
          %s2118 = smul.addr %s2117, 8
          %s2119 = scalar_lea.vmem %s18, %s2118
        $region128: #{transformer_decoder_forward.2} parent=123 // pred_fallthru
          _
      $region124: #{transformer_decoder_forward.2} parent=5 // pred_fallthru
        _
    $region6: #{transformer_decoder_forward.2} parent=1 // loop_footer
      %s32 = sadd.s32 1, %s28
    $region7: #{transformer_decoder_forward.2} parent=1 // loop_footer_branch
      %27 = sbr.rel target = $region3
    $region8: #{transformer_decoder_forward.2} parent=1 // loop_exit
      _
    %2120 = vsyncpa [#allocation3], 1
    %s2121 = scalar_lea.sflag [#allocation3], 1
    %2122 = vsyncpa %s2121, 1
    %2123 = vsyncpa [#allocation5], 1
    %2124 = vsyncpa [#allocation8], 1
    %2125 = vsyncpa [#allocation11], 1

// kernel: transformer_decoder_forward.3
$region0: #{transformer_decoder_forward.3}
  #allocation0 [shape = 'u32[]', space=smem, size = 0x4, offset = 0x4, fixed_abs, tag = 'smem constant byte address 0x4 - core index']
  #allocation1 [shape = 'u32[144,128]{1,0:T(1,128)}', space=vmem, size = 0x12000, scoped, tag = 'internal scratch']
  %s0 = inlined_call_operand.vmem [shape: f32[2,6,128], index: 0, kind: input, shape index: {}]
  %s1 = inlined_call_operand.vmem [shape: f32[2,8,128], index: 1, kind: input, shape index: {}]
  %s2 = inlined_call_operand.vmem [shape: bf16[128,128], index: 2, kind: input, shape index: {}]
  %s3 = inlined_call_operand.vmem [shape: f32[1,128], index: 3, kind: input, shape index: {}]
  %s4 = inlined_call_operand.vmem [shape: bf16[128,128], index: 4, kind: input, shape index: {}]
  %s5 = inlined_call_operand.vmem [shape: f32[1,128], index: 5, kind: input, shape index: {}]
  %s6 = inlined_call_operand.vmem [shape: bf16[128,128], index: 6, kind: input, shape index: {}]
  %s7 = inlined_call_operand.vmem [shape: f32[1,128], index: 7, kind: input, shape index: {}]
  %s8 = inlined_call_operand.vmem [shape: bf16[128,128], index: 8, kind: input, shape index: {}]
  %s9 = inlined_call_operand.vmem [shape: f32[1,128], index: 9, kind: input, shape index: {}]
  %s10 = inlined_call_operand.vmem [shape: f32[1,128], index: 10, kind: input, shape index: {}]
  %s11 = inlined_call_operand.vmem [shape: f32[1,128], index: 11, kind: input, shape index: {}]
  %s12 = inlined_call_operand.vmem [shape: bf16[128,256], index: 12, kind: input, shape index: {}]
  %s13 = inlined_call_operand.vmem [shape: f32[1,256], index: 13, kind: input, shape index: {}]
  %s14 = inlined_call_operand.vmem [shape: bf16[256,128], index: 14, kind: input, shape index: {}]
  %s15 = inlined_call_operand.vmem [shape: f32[1,128], index: 15, kind: input, shape index: {}]
  %s16 = inlined_call_operand.vmem [shape: f32[1,128], index: 16, kind: input, shape index: {}]
  %s17 = inlined_call_operand.vmem [shape: f32[1,128], index: 17, kind: input, shape index: {}]
  %s18 = inlined_call_operand.vmem [shape: bf16[128,4], index: 18, kind: input, shape index: {}]
  %s19 = inlined_call_operand.vmem [shape: f32[1,4], index: 19, kind: input, shape index: {}]
  %s20 = inlined_call_operand.vmem [shape: f32[2,6,4], index: 20, kind: output, shape index: {}]
  %s21 = sld [smem:[#allocation0]]
  $region113: #{transformer_decoder_forward.3} parent=0
    _
  %s23 = ssub.s32 1, %s21
  %s24 = scalar_select 0, %s23, %s21
  loop: start=0, step=1, limit=4
  $region2: #{transformer_decoder_forward.3} parent=0 // loop_pre_header
    _
  $region3: #{transformer_decoder_forward.3} parent=0 // loop_header
    %s26 = sphi 0, %s30
    %p27 = scmp.ge.s32.totalorder %s26, 4
    %s36 = sphi 0, %s38
    %s39 = sphi 0, %s36
    %s40 = sphi 0, %s39
    %s56 = sphi 0, %s40
    %s62 = sphi 0, %s64
    %s65 = sphi 0, %s62
    %s66 = sphi 0, %s65
    %s82 = sphi 0, %s66
    %s86 = sphi 0, %s86
    %s88 = sphi 0, %s86
    %s89 = sphi 0, %s88
    %s103 = sphi 0, %s89
    %s107 = sphi 0, %s107
    %s109 = sphi 0, %s107
    %s110 = sphi 0, %s109
    %s124 = sphi 0, %s110
    %s128 = sphi 0, %s128
    %s130 = sphi 0, %s128
    %s131 = sphi 0, %s130
    %s145 = sphi 0, %s131
    %s149 = sphi 0, %s149
    %s151 = sphi 0, %s149
    %s152 = sphi 0, %s151
    %s166 = sphi 0, %s152
    %s170 = sphi 0, %s170
    %s172 = sphi 0, %s170
    %s173 = sphi 0, %s172
    %s187 = sphi 0, %s173
    %s191 = sphi 0, %s191
    %s193 = sphi 0, %s191
    %s194 = sphi 0, %s193
    %s208 = sphi 0, %s194
    %s212 = sphi 0, %s212
    %s214 = sphi 0, %s212
    %s215 = sphi 0, %s214
    %s229 = sphi 0, %s215
    %s233 = sphi 0, %s233
    %s235 = sphi 0, %s233
    %s236 = sphi 0, %s235
    %s250 = sphi 0, %s236
    %s254 = sphi 0, %s254
    %s256 = sphi 0, %s254
    %s257 = sphi 0, %s256
    %s271 = sphi 0, %s257
    %s275 = sphi 0, %s275
    %s277 = sphi 0, %s275
    %s278 = sphi 0, %s277
    %s292 = sphi 0, %s278
    %s296 = sphi 0, %s296
    %s298 = sphi 0, %s296
    %s299 = sphi 0, %s298
    %s313 = sphi 0, %s299
    %s317 = sphi 0, %s317
    %s319 = sphi 0, %s317
    %s320 = sphi 0, %s319
    %s334 = sphi 0, %s320
    %s338 = sphi 0, %s338
    %s340 = sphi 0, %s338
    %s341 = sphi 0, %s340
    %s355 = sphi 0, %s341
    %s359 = sphi 0, %s359
    %s361 = sphi 0, %s359
    %s362 = sphi 0, %s361
    %s376 = sphi 0, %s362
    %s380 = sphi 0, %s380
    %s382 = sphi 0, %s380
    %s383 = sphi 0, %s382
    %s397 = sphi 0, %s383
    %s401 = sphi 0, %s401
    %s403 = sphi 0, %s401
    %s404 = sphi 0, %s403
    %s418 = sphi 0, %s404
    %s422 = sphi 0, %s422
    %s424 = sphi 0, %s422
    %s425 = sphi 0, %s424
    %s439 = sphi 0, %s425
    %s443 = sphi 0, %s443
    %s445 = sphi 0, %s443
    %s446 = sphi 0, %s445
    %s460 = sphi 0, %s446
    %s466 = sphi 0, %s468
    %s469 = sphi 0, %s466
    %s470 = sphi 0, %s469
    %s486 = sphi 0, %s470
  $region4: #{transformer_decoder_forward.3} parent=0 // loop_header_branch
    %29 = sbr.rel (%p27) target = $region8
  $region5: #{transformer_decoder_forward.3} parent=0 // loop_body
    %s31 = ssub.s32 %s26, 1
    %s32 = ssub.s32 %s26, 2
    %s33 = sadd.s32 %s26, 1
    %s34 = ssub.s32 %s26, %s33
    %p35 = scmp.eq.s32.totalorder %s34, 0
    %s37 = sadd.s32 %s36, 1
    %s38 = scalar_select %p35, %s36, %s37
    %p41 = pneg %p35
    %p42 = scmp.eq.s32.totalorder %s26, 1
    %p43 = por %p41, %p42
    %p44 = scmp.ne.s32.totalorder %s36, %s39
    %p45 = scmp.eq.s32.totalorder %s26, 0
    %p46 = por %p44, %p45
    %p47 = scmp.ne.s32.totalorder %s36, %s39
    %p48 = scmp.eq.s32.totalorder %s31, 1
    %p49 = por %p47, %p48
    %p50 = scmp.ne.s32.totalorder %s39, %s40
    %p51 = scmp.eq.s32.totalorder %s31, 0
    %p52 = por %p50, %p51
    %p53 = scmp.ne.s32.totalorder %s39, %s40
    %p54 = scmp.eq.s32.totalorder %s32, 1
    %p55 = por %p53, %p54
    %p57 = scmp.ne.s32.totalorder %s40, %s56
    %p58 = scmp.eq.s32.totalorder %s32, 0
    %p59 = por %p57, %p58
    %s60 = ssub.s32 %s26, %s33
    %p61 = scmp.eq.s32.totalorder %s60, 0
    %s63 = sadd.s32 %s62, 1
    %s64 = scalar_select %p61, %s62, %s63
    %p67 = pneg %p61
    %p68 = scmp.eq.s32.totalorder %s26, 1
    %p69 = por %p67, %p68
    %p70 = scmp.ne.s32.totalorder %s62, %s65
    %p71 = scmp.eq.s32.totalorder %s26, 0
    %p72 = por %p70, %p71
    %p73 = scmp.ne.s32.totalorder %s62, %s65
    %p74 = scmp.eq.s32.totalorder %s31, 1
    %p75 = por %p73, %p74
    %p76 = scmp.ne.s32.totalorder %s65, %s66
    %p77 = scmp.eq.s32.totalorder %s31, 0
    %p78 = por %p76, %p77
    %p79 = scmp.ne.s32.totalorder %s65, %s66
    %p80 = scmp.eq.s32.totalorder %s32, 1
    %p81 = por %p79, %p80
    %p83 = scmp.ne.s32.totalorder %s66, %s82
    %p84 = scmp.eq.s32.totalorder %s32, 0
    %p85 = por %p83, %p84
    %s87 = sadd.s32 %s86, 1
    %p90 = scmp.eq.s32.totalorder %s26, 1
    %p91 = scmp.ne.s32.totalorder %s86, %s88
    %p92 = scmp.eq.s32.totalorder %s26, 0
    %p93 = por %p91, %p92
    %p94 = scmp.ne.s32.totalorder %s86, %s88
    %p95 = scmp.eq.s32.totalorder %s31, 1
    %p96 = por %p94, %p95
    %p97 = scmp.ne.s32.totalorder %s88, %s89
    %p98 = scmp.eq.s32.totalorder %s31, 0
    %p99 = por %p97, %p98
    %p100 = scmp.ne.s32.totalorder %s88, %s89
    %p101 = scmp.eq.s32.totalorder %s32, 1
    %p102 = por %p100, %p101
    %p104 = scmp.ne.s32.totalorder %s89, %s103
    %p105 = scmp.eq.s32.totalorder %s32, 0
    %p106 = por %p104, %p105
    %s108 = sadd.s32 %s107, 1
    %p111 = scmp.eq.s32.totalorder %s26, 1
    %p112 = scmp.ne.s32.totalorder %s107, %s109
    %p113 = scmp.eq.s32.totalorder %s26, 0
    %p114 = por %p112, %p113
    %p115 = scmp.ne.s32.totalorder %s107, %s109
    %p116 = scmp.eq.s32.totalorder %s31, 1
    %p117 = por %p115, %p116
    %p118 = scmp.ne.s32.totalorder %s109, %s110
    %p119 = scmp.eq.s32.totalorder %s31, 0
    %p120 = por %p118, %p119
    %p121 = scmp.ne.s32.totalorder %s109, %s110
    %p122 = scmp.eq.s32.totalorder %s32, 1
    %p123 = por %p121, %p122
    %p125 = scmp.ne.s32.totalorder %s110, %s124
    %p126 = scmp.eq.s32.totalorder %s32, 0
    %p127 = por %p125, %p126
    %s129 = sadd.s32 %s128, 1
    %p132 = scmp.eq.s32.totalorder %s26, 1
    %p133 = scmp.ne.s32.totalorder %s128, %s130
    %p134 = scmp.eq.s32.totalorder %s26, 0
    %p135 = por %p133, %p134
    %p136 = scmp.ne.s32.totalorder %s128, %s130
    %p137 = scmp.eq.s32.totalorder %s31, 1
    %p138 = por %p136, %p137
    %p139 = scmp.ne.s32.totalorder %s130, %s131
    %p140 = scmp.eq.s32.totalorder %s31, 0
    %p141 = por %p139, %p140
    %p142 = scmp.ne.s32.totalorder %s130, %s131
    %p143 = scmp.eq.s32.totalorder %s32, 1
    %p144 = por %p142, %p143
    %p146 = scmp.ne.s32.totalorder %s131, %s145
    %p147 = scmp.eq.s32.totalorder %s32, 0
    %p148 = por %p146, %p147
    %s150 = sadd.s32 %s149, 1
    %p153 = scmp.eq.s32.totalorder %s26, 1
    %p154 = scmp.ne.s32.totalorder %s149, %s151
    %p155 = scmp.eq.s32.totalorder %s26, 0
    %p156 = por %p154, %p155
    %p157 = scmp.ne.s32.totalorder %s149, %s151
    %p158 = scmp.eq.s32.totalorder %s31, 1
    %p159 = por %p157, %p158
    %p160 = scmp.ne.s32.totalorder %s151, %s152
    %p161 = scmp.eq.s32.totalorder %s31, 0
    %p162 = por %p160, %p161
    %p163 = scmp.ne.s32.totalorder %s151, %s152
    %p164 = scmp.eq.s32.totalorder %s32, 1
    %p165 = por %p163, %p164
    %p167 = scmp.ne.s32.totalorder %s152, %s166
    %p168 = scmp.eq.s32.totalorder %s32, 0
    %p169 = por %p167, %p168
    %s171 = sadd.s32 %s170, 1
    %p174 = scmp.eq.s32.totalorder %s26, 1
    %p175 = scmp.ne.s32.totalorder %s170, %s172
    %p176 = scmp.eq.s32.totalorder %s26, 0
    %p177 = por %p175, %p176
    %p178 = scmp.ne.s32.totalorder %s170, %s172
    %p179 = scmp.eq.s32.totalorder %s31, 1
    %p180 = por %p178, %p179
    %p181 = scmp.ne.s32.totalorder %s172, %s173
    %p182 = scmp.eq.s32.totalorder %s31, 0
    %p183 = por %p181, %p182
    %p184 = scmp.ne.s32.totalorder %s172, %s173
    %p185 = scmp.eq.s32.totalorder %s32, 1
    %p186 = por %p184, %p185
    %p188 = scmp.ne.s32.totalorder %s173, %s187
    %p189 = scmp.eq.s32.totalorder %s32, 0
    %p190 = por %p188, %p189
    %s192 = sadd.s32 %s191, 1
    %p195 = scmp.eq.s32.totalorder %s26, 1
    %p196 = scmp.ne.s32.totalorder %s191, %s193
    %p197 = scmp.eq.s32.totalorder %s26, 0
    %p198 = por %p196, %p197
    %p199 = scmp.ne.s32.totalorder %s191, %s193
    %p200 = scmp.eq.s32.totalorder %s31, 1
    %p201 = por %p199, %p200
    %p202 = scmp.ne.s32.totalorder %s193, %s194
    %p203 = scmp.eq.s32.totalorder %s31, 0
    %p204 = por %p202, %p203
    %p205 = scmp.ne.s32.totalorder %s193, %s194
    %p206 = scmp.eq.s32.totalorder %s32, 1
    %p207 = por %p205, %p206
    %p209 = scmp.ne.s32.totalorder %s194, %s208
    %p210 = scmp.eq.s32.totalorder %s32, 0
    %p211 = por %p209, %p210
    %s213 = sadd.s32 %s212, 1
    %p216 = scmp.eq.s32.totalorder %s26, 1
    %p217 = scmp.ne.s32.totalorder %s212, %s214
    %p218 = scmp.eq.s32.totalorder %s26, 0
    %p219 = por %p217, %p218
    %p220 = scmp.ne.s32.totalorder %s212, %s214
    %p221 = scmp.eq.s32.totalorder %s31, 1
    %p222 = por %p220, %p221
    %p223 = scmp.ne.s32.totalorder %s214, %s215
    %p224 = scmp.eq.s32.totalorder %s31, 0
    %p225 = por %p223, %p224
    %p226 = scmp.ne.s32.totalorder %s214, %s215
    %p227 = scmp.eq.s32.totalorder %s32, 1
    %p228 = por %p226, %p227
    %p230 = scmp.ne.s32.totalorder %s215, %s229
    %p231 = scmp.eq.s32.totalorder %s32, 0
    %p232 = por %p230, %p231
    %s234 = sadd.s32 %s233, 1
    %p237 = scmp.eq.s32.totalorder %s26, 1
    %p238 = scmp.ne.s32.totalorder %s233, %s235
    %p239 = scmp.eq.s32.totalorder %s26, 0
    %p240 = por %p238, %p239
    %p241 = scmp.ne.s32.totalorder %s233, %s235
    %p242 = scmp.eq.s32.totalorder %s31, 1
    %p243 = por %p241, %p242
    %p244 = scmp.ne.s32.totalorder %s235, %s236
    %p245 = scmp.eq.s32.totalorder %s31, 0
    %p246 = por %p244, %p245
    %p247 = scmp.ne.s32.totalorder %s235, %s236
    %p248 = scmp.eq.s32.totalorder %s32, 1
    %p249 = por %p247, %p248
    %p251 = scmp.ne.s32.totalorder %s236, %s250
    %p252 = scmp.eq.s32.totalorder %s32, 0
    %p253 = por %p251, %p252
    %s255 = sadd.s32 %s254, 1
    %p258 = scmp.eq.s32.totalorder %s26, 1
    %p259 = scmp.ne.s32.totalorder %s254, %s256
    %p260 = scmp.eq.s32.totalorder %s26, 0
    %p261 = por %p259, %p260
    %p262 = scmp.ne.s32.totalorder %s254, %s256
    %p263 = scmp.eq.s32.totalorder %s31, 1
    %p264 = por %p262, %p263
    %p265 = scmp.ne.s32.totalorder %s256, %s257
    %p266 = scmp.eq.s32.totalorder %s31, 0
    %p267 = por %p265, %p266
    %p268 = scmp.ne.s32.totalorder %s256, %s257
    %p269 = scmp.eq.s32.totalorder %s32, 1
    %p270 = por %p268, %p269
    %p272 = scmp.ne.s32.totalorder %s257, %s271
    %p273 = scmp.eq.s32.totalorder %s32, 0
    %p274 = por %p272, %p273
    %s276 = sadd.s32 %s275, 1
    %p279 = scmp.eq.s32.totalorder %s26, 1
    %p280 = scmp.ne.s32.totalorder %s275, %s277
    %p281 = scmp.eq.s32.totalorder %s26, 0
    %p282 = por %p280, %p281
    %p283 = scmp.ne.s32.totalorder %s275, %s277
    %p284 = scmp.eq.s32.totalorder %s31, 1
    %p285 = por %p283, %p284
    %p286 = scmp.ne.s32.totalorder %s277, %s278
    %p287 = scmp.eq.s32.totalorder %s31, 0
    %p288 = por %p286, %p287
    %p289 = scmp.ne.s32.totalorder %s277, %s278
    %p290 = scmp.eq.s32.totalorder %s32, 1
    %p291 = por %p289, %p290
    %p293 = scmp.ne.s32.totalorder %s278, %s292
    %p294 = scmp.eq.s32.totalorder %s32, 0
    %p295 = por %p293, %p294
    %s297 = sadd.s32 %s296, 1
    %p300 = scmp.eq.s32.totalorder %s26, 1
    %p301 = scmp.ne.s32.totalorder %s296, %s298
    %p302 = scmp.eq.s32.totalorder %s26, 0
    %p303 = por %p301, %p302
    %p304 = scmp.ne.s32.totalorder %s296, %s298
    %p305 = scmp.eq.s32.totalorder %s31, 1
    %p306 = por %p304, %p305
    %p307 = scmp.ne.s32.totalorder %s298, %s299
    %p308 = scmp.eq.s32.totalorder %s31, 0
    %p309 = por %p307, %p308
    %p310 = scmp.ne.s32.totalorder %s298, %s299
    %p311 = scmp.eq.s32.totalorder %s32, 1
    %p312 = por %p310, %p311
    %p314 = scmp.ne.s32.totalorder %s299, %s313
    %p315 = scmp.eq.s32.totalorder %s32, 0
    %p316 = por %p314, %p315
    %s318 = sadd.s32 %s317, 1
    %p321 = scmp.eq.s32.totalorder %s26, 1
    %p322 = scmp.ne.s32.totalorder %s317, %s319
    %p323 = scmp.eq.s32.totalorder %s26, 0
    %p324 = por %p322, %p323
    %p325 = scmp.ne.s32.totalorder %s317, %s319
    %p326 = scmp.eq.s32.totalorder %s31, 1
    %p327 = por %p325, %p326
    %p328 = scmp.ne.s32.totalorder %s319, %s320
    %p329 = scmp.eq.s32.totalorder %s31, 0
    %p330 = por %p328, %p329
    %p331 = scmp.ne.s32.totalorder %s319, %s320
    %p332 = scmp.eq.s32.totalorder %s32, 1
    %p333 = por %p331, %p332
    %p335 = scmp.ne.s32.totalorder %s320, %s334
    %p336 = scmp.eq.s32.totalorder %s32, 0
    %p337 = por %p335, %p336
    %s339 = sadd.s32 %s338, 1
    %p342 = scmp.eq.s32.totalorder %s26, 1
    %p343 = scmp.ne.s32.totalorder %s338, %s340
    %p344 = scmp.eq.s32.totalorder %s26, 0
    %p345 = por %p343, %p344
    %p346 = scmp.ne.s32.totalorder %s338, %s340
    %p347 = scmp.eq.s32.totalorder %s31, 1
    %p348 = por %p346, %p347
    %p349 = scmp.ne.s32.totalorder %s340, %s341
    %p350 = scmp.eq.s32.totalorder %s31, 0
    %p351 = por %p349, %p350
    %p352 = scmp.ne.s32.totalorder %s340, %s341
    %p353 = scmp.eq.s32.totalorder %s32, 1
    %p354 = por %p352, %p353
    %p356 = scmp.ne.s32.totalorder %s341, %s355
    %p357 = scmp.eq.s32.totalorder %s32, 0
    %p358 = por %p356, %p357
    %s360 = sadd.s32 %s359, 1
    %p363 = scmp.eq.s32.totalorder %s26, 1
    %p364 = scmp.ne.s32.totalorder %s359, %s361
    %p365 = scmp.eq.s32.totalorder %s26, 0
    %p366 = por %p364, %p365
    %p367 = scmp.ne.s32.totalorder %s359, %s361
    %p368 = scmp.eq.s32.totalorder %s31, 1
    %p369 = por %p367, %p368
    %p370 = scmp.ne.s32.totalorder %s361, %s362
    %p371 = scmp.eq.s32.totalorder %s31, 0
    %p372 = por %p370, %p371
    %p373 = scmp.ne.s32.totalorder %s361, %s362
    %p374 = scmp.eq.s32.totalorder %s32, 1
    %p375 = por %p373, %p374
    %p377 = scmp.ne.s32.totalorder %s362, %s376
    %p378 = scmp.eq.s32.totalorder %s32, 0
    %p379 = por %p377, %p378
    %s381 = sadd.s32 %s380, 1
    %p384 = scmp.eq.s32.totalorder %s26, 1
    %p385 = scmp.ne.s32.totalorder %s380, %s382
    %p386 = scmp.eq.s32.totalorder %s26, 0
    %p387 = por %p385, %p386
    %p388 = scmp.ne.s32.totalorder %s380, %s382
    %p389 = scmp.eq.s32.totalorder %s31, 1
    %p390 = por %p388, %p389
    %p391 = scmp.ne.s32.totalorder %s382, %s383
    %p392 = scmp.eq.s32.totalorder %s31, 0
    %p393 = por %p391, %p392
    %p394 = scmp.ne.s32.totalorder %s382, %s383
    %p395 = scmp.eq.s32.totalorder %s32, 1
    %p396 = por %p394, %p395
    %p398 = scmp.ne.s32.totalorder %s383, %s397
    %p399 = scmp.eq.s32.totalorder %s32, 0
    %p400 = por %p398, %p399
    %s402 = sadd.s32 %s401, 1
    %p405 = scmp.eq.s32.totalorder %s26, 1
    %p406 = scmp.ne.s32.totalorder %s401, %s403
    %p407 = scmp.eq.s32.totalorder %s26, 0
    %p408 = por %p406, %p407
    %p409 = scmp.ne.s32.totalorder %s401, %s403
    %p410 = scmp.eq.s32.totalorder %s31, 1
    %p411 = por %p409, %p410
    %p412 = scmp.ne.s32.totalorder %s403, %s404
    %p413 = scmp.eq.s32.totalorder %s31, 0
    %p414 = por %p412, %p413
    %p415 = scmp.ne.s32.totalorder %s403, %s404
    %p416 = scmp.eq.s32.totalorder %s32, 1
    %p417 = por %p415, %p416
    %p419 = scmp.ne.s32.totalorder %s404, %s418
    %p420 = scmp.eq.s32.totalorder %s32, 0
    %p421 = por %p419, %p420
    %s423 = sadd.s32 %s422, 1
    %p426 = scmp.eq.s32.totalorder %s26, 1
    %p427 = scmp.ne.s32.totalorder %s422, %s424
    %p428 = scmp.eq.s32.totalorder %s26, 0
    %p429 = por %p427, %p428
    %p430 = scmp.ne.s32.totalorder %s422, %s424
    %p431 = scmp.eq.s32.totalorder %s31, 1
    %p432 = por %p430, %p431
    %p433 = scmp.ne.s32.totalorder %s424, %s425
    %p434 = scmp.eq.s32.totalorder %s31, 0
    %p435 = por %p433, %p434
    %p436 = scmp.ne.s32.totalorder %s424, %s425
    %p437 = scmp.eq.s32.totalorder %s32, 1
    %p438 = por %p436, %p437
    %p440 = scmp.ne.s32.totalorder %s425, %s439
    %p441 = scmp.eq.s32.totalorder %s32, 0
    %p442 = por %p440, %p441
    %s444 = sadd.s32 %s443, 1
    %p447 = scmp.eq.s32.totalorder %s26, 1
    %p448 = scmp.ne.s32.totalorder %s443, %s445
    %p449 = scmp.eq.s32.totalorder %s26, 0
    %p450 = por %p448, %p449
    %p451 = scmp.ne.s32.totalorder %s443, %s445
    %p452 = scmp.eq.s32.totalorder %s31, 1
    %p453 = por %p451, %p452
    %p454 = scmp.ne.s32.totalorder %s445, %s446
    %p455 = scmp.eq.s32.totalorder %s31, 0
    %p456 = por %p454, %p455
    %p457 = scmp.ne.s32.totalorder %s445, %s446
    %p458 = scmp.eq.s32.totalorder %s32, 1
    %p459 = por %p457, %p458
    %p461 = scmp.ne.s32.totalorder %s446, %s460
    %p462 = scmp.eq.s32.totalorder %s32, 0
    %p463 = por %p461, %p462
    %s464 = ssub.s32 %s26, %s33
    %p465 = scmp.eq.s32.totalorder %s464, 0
    %s467 = sadd.s32 %s466, 1
    %s468 = scalar_select %p465, %s466, %s467
    %p471 = pneg %p465
    %p472 = scmp.eq.s32.totalorder %s26, 1
    %p473 = por %p471, %p472
    %p474 = scmp.ne.s32.totalorder %s466, %s469
    %p475 = scmp.eq.s32.totalorder %s26, 0
    %p476 = por %p474, %p475
    %p477 = scmp.ne.s32.totalorder %s466, %s469
    %p478 = scmp.eq.s32.totalorder %s31, 1
    %p479 = por %p477, %p478
    %p480 = scmp.ne.s32.totalorder %s469, %s470
    %p481 = scmp.eq.s32.totalorder %s31, 0
    %p482 = por %p480, %p481
    %p483 = scmp.ne.s32.totalorder %s469, %s470
    %p484 = scmp.eq.s32.totalorder %s32, 1
    %p485 = por %p483, %p484
    %p487 = scmp.ne.s32.totalorder %s470, %s486
    %p488 = scmp.eq.s32.totalorder %s32, 0
    %p489 = por %p487, %p488
    %p490 = scmp.le.s32.totalorder 1, %s26
    %p491 = scmp.lt.s32.totalorder %s26, 3
    %p492 = pnand %p490, %p491
    %p493 = pneg %p492
    // Predicated region
    $region9: #{transformer_decoder_forward.3} parent=5 // pred_check
      _
    $region10: #{transformer_decoder_forward.3} parent=5 // pred_check_branch
      %495 = sbr.rel (%p492) target = $region12
    $region11: #{transformer_decoder_forward.3} parent=5 // pred_region
      %s496 = ssub.s32 %s26, 1
      // Predicated region
      $region13: #{transformer_decoder_forward.3} parent=11 // pred_check
        %p497 = pneg %p99
      $region14: #{transformer_decoder_forward.3} parent=11 // pred_check_branch
        %499 = sbr.rel (%p497) target = $region16
      $region15: #{transformer_decoder_forward.3} parent=11 // pred_region
        _
      $region16: #{transformer_decoder_forward.3} parent=11 // pred_fallthru
        _
      // Predicated region
      $region17: #{transformer_decoder_forward.3} parent=11 // pred_check
        %p500 = pneg %p120
      $region18: #{transformer_decoder_forward.3} parent=11 // pred_check_branch
        %502 = sbr.rel (%p500) target = $region20
      $region19: #{transformer_decoder_forward.3} parent=11 // pred_region
        _
      $region20: #{transformer_decoder_forward.3} parent=11 // pred_fallthru
        _
      // Predicated region
      $region21: #{transformer_decoder_forward.3} parent=11 // pred_check
        %p503 = pneg %p141
      $region22: #{transformer_decoder_forward.3} parent=11 // pred_check_branch
        %505 = sbr.rel (%p503) target = $region24
      $region23: #{transformer_decoder_forward.3} parent=11 // pred_region
        _
      $region24: #{transformer_decoder_forward.3} parent=11 // pred_fallthru
        _
      // Predicated region
      $region25: #{transformer_decoder_forward.3} parent=11 // pred_check
        %p506 = pneg %p162
      $region26: #{transformer_decoder_forward.3} parent=11 // pred_check_branch
        %508 = sbr.rel (%p506) target = $region28
      $region27: #{transformer_decoder_forward.3} parent=11 // pred_region
        _
      $region28: #{transformer_decoder_forward.3} parent=11 // pred_fallthru
        _
      // Predicated region
      $region29: #{transformer_decoder_forward.3} parent=11 // pred_check
        %p509 = pneg %p183
      $region30: #{transformer_decoder_forward.3} parent=11 // pred_check_branch
        %511 = sbr.rel (%p509) target = $region32
      $region31: #{transformer_decoder_forward.3} parent=11 // pred_region
        _
      $region32: #{transformer_decoder_forward.3} parent=11 // pred_fallthru
        _
      // Predicated region
      $region33: #{transformer_decoder_forward.3} parent=11 // pred_check
        %p512 = pneg %p204
      $region34: #{transformer_decoder_forward.3} parent=11 // pred_check_branch
        %514 = sbr.rel (%p512) target = $region36
      $region35: #{transformer_decoder_forward.3} parent=11 // pred_region
        _
      $region36: #{transformer_decoder_forward.3} parent=11 // pred_fallthru
        _
      // Predicated region
      $region37: #{transformer_decoder_forward.3} parent=11 // pred_check
        %p515 = pneg %p225
      $region38: #{transformer_decoder_forward.3} parent=11 // pred_check_branch
        %517 = sbr.rel (%p515) target = $region40
      $region39: #{transformer_decoder_forward.3} parent=11 // pred_region
        _
      $region40: #{transformer_decoder_forward.3} parent=11 // pred_fallthru
        _
      // Predicated region
      $region41: #{transformer_decoder_forward.3} parent=11 // pred_check
        %p518 = pneg %p246
      $region42: #{transformer_decoder_forward.3} parent=11 // pred_check_branch
        %520 = sbr.rel (%p518) target = $region44
      $region43: #{transformer_decoder_forward.3} parent=11 // pred_region
        _
      $region44: #{transformer_decoder_forward.3} parent=11 // pred_fallthru
        _
      // Predicated region
      $region45: #{transformer_decoder_forward.3} parent=11 // pred_check
        %p521 = pneg %p267
      $region46: #{transformer_decoder_forward.3} parent=11 // pred_check_branch
        %523 = sbr.rel (%p521) target = $region48
      $region47: #{transformer_decoder_forward.3} parent=11 // pred_region
        _
      $region48: #{transformer_decoder_forward.3} parent=11 // pred_fallthru
        _
      // Predicated region
      $region49: #{transformer_decoder_forward.3} parent=11 // pred_check
        %p524 = pneg %p288
      $region50: #{transformer_decoder_forward.3} parent=11 // pred_check_branch
        %526 = sbr.rel (%p524) target = $region52
      $region51: #{transformer_decoder_forward.3} parent=11 // pred_region
        _
      $region52: #{transformer_decoder_forward.3} parent=11 // pred_fallthru
        _
      // Predicated region
      $region53: #{transformer_decoder_forward.3} parent=11 // pred_check
        %p527 = pneg %p309
      $region54: #{transformer_decoder_forward.3} parent=11 // pred_check_branch
        %529 = sbr.rel (%p527) target = $region56
      $region55: #{transformer_decoder_forward.3} parent=11 // pred_region
        _
      $region56: #{transformer_decoder_forward.3} parent=11 // pred_fallthru
        _
      // Predicated region
      $region57: #{transformer_decoder_forward.3} parent=11 // pred_check
        %p530 = pneg %p330
      $region58: #{transformer_decoder_forward.3} parent=11 // pred_check_branch
        %532 = sbr.rel (%p530) target = $region60
      $region59: #{transformer_decoder_forward.3} parent=11 // pred_region
        _
      $region60: #{transformer_decoder_forward.3} parent=11 // pred_fallthru
        _
      // Predicated region
      $region61: #{transformer_decoder_forward.3} parent=11 // pred_check
        %p533 = pneg %p351
      $region62: #{transformer_decoder_forward.3} parent=11 // pred_check_branch
        %535 = sbr.rel (%p533) target = $region64
      $region63: #{transformer_decoder_forward.3} parent=11 // pred_region
        _
      $region64: #{transformer_decoder_forward.3} parent=11 // pred_fallthru
        _
      // Predicated region
      $region65: #{transformer_decoder_forward.3} parent=11 // pred_check
        %p536 = pneg %p372
      $region66: #{transformer_decoder_forward.3} parent=11 // pred_check_branch
        %538 = sbr.rel (%p536) target = $region68
      $region67: #{transformer_decoder_forward.3} parent=11 // pred_region
        _
      $region68: #{transformer_decoder_forward.3} parent=11 // pred_fallthru
        _
      // Predicated region
      $region69: #{transformer_decoder_forward.3} parent=11 // pred_check
        %p539 = pneg %p393
      $region70: #{transformer_decoder_forward.3} parent=11 // pred_check_branch
        %541 = sbr.rel (%p539) target = $region72
      $region71: #{transformer_decoder_forward.3} parent=11 // pred_region
        _
      $region72: #{transformer_decoder_forward.3} parent=11 // pred_fallthru
        _
      // Predicated region
      $region73: #{transformer_decoder_forward.3} parent=11 // pred_check
        %p542 = pneg %p414
      $region74: #{transformer_decoder_forward.3} parent=11 // pred_check_branch
        %544 = sbr.rel (%p542) target = $region76
      $region75: #{transformer_decoder_forward.3} parent=11 // pred_region
        _
      $region76: #{transformer_decoder_forward.3} parent=11 // pred_fallthru
        _
      // Predicated region
      $region77: #{transformer_decoder_forward.3} parent=11 // pred_check
        %p545 = pneg %p435
      $region78: #{transformer_decoder_forward.3} parent=11 // pred_check_branch
        %547 = sbr.rel (%p545) target = $region80
      $region79: #{transformer_decoder_forward.3} parent=11 // pred_region
        _
      $region80: #{transformer_decoder_forward.3} parent=11 // pred_fallthru
        _
      // Predicated region
      $region81: #{transformer_decoder_forward.3} parent=11 // pred_check
        %p548 = pneg %p456
      $region82: #{transformer_decoder_forward.3} parent=11 // pred_check_branch
        %550 = sbr.rel (%p548) target = $region84
      $region83: #{transformer_decoder_forward.3} parent=11 // pred_region
        _
      $region84: #{transformer_decoder_forward.3} parent=11 // pred_fallthru
        _
    $region12: #{transformer_decoder_forward.3} parent=5 // pred_fallthru
      _
    %p551 = scmp.lt.s32.totalorder %s26, 2
    // Predicated region
    $region85: #{transformer_decoder_forward.3} parent=5 // pred_check
      %p552 = pneg %p551
    $region86: #{transformer_decoder_forward.3} parent=5 // pred_check_branch
      %554 = sbr.rel (%p552) target = $region88
    $region87: #{transformer_decoder_forward.3} parent=5 // pred_region
      // Predicated region
      $region89: #{transformer_decoder_forward.3} parent=87 // pred_check
        %p555 = pneg %p46
      $region90: #{transformer_decoder_forward.3} parent=87 // pred_check_branch
        %557 = sbr.rel (%p555) target = $region92
      $region91: #{transformer_decoder_forward.3} parent=87 // pred_region
        %p558 = scmp.lt.s32.totalorder %s26, 1
        %s559 = scalar_select %p558, %s26, 1
        %s560 = smul.addr %s559, 8
        %s561 = scalar_lea.vmem %s0, %s560
      $region92: #{transformer_decoder_forward.3} parent=87 // pred_fallthru
        _
      // Predicated region
      $region93: #{transformer_decoder_forward.3} parent=87 // pred_check
        %p562 = pneg %p72
      $region94: #{transformer_decoder_forward.3} parent=87 // pred_check_branch
        %564 = sbr.rel (%p562) target = $region96
      $region95: #{transformer_decoder_forward.3} parent=87 // pred_region
        %p565 = scmp.lt.s32.totalorder %s26, 1
        %s566 = scalar_select %p565, %s26, 1
        %s567 = smul.addr %s566, 8
        %s568 = scalar_lea.vmem %s1, %s567
      $region96: #{transformer_decoder_forward.3} parent=87 // pred_fallthru
        _
    $region88: #{transformer_decoder_forward.3} parent=5 // pred_fallthru
      _
    %p569 = scmp.le.s32.totalorder 1, %s26
    %p570 = scmp.lt.s32.totalorder %s26, 3
    %p571 = pnand %p569, %p570
    %p572 = pneg %p571
    // Predicated region
    $region97: #{transformer_decoder_forward.3} parent=5 // pred_check
      _
    $region98: #{transformer_decoder_forward.3} parent=5 // pred_check_branch
      %574 = sbr.rel (%p571) target = $region100
    $region99: #{transformer_decoder_forward.3} parent=5 // pred_region
      %s575 = ssub.s32 %s26, 1
      %p576 = scmp.lt.s32.totalorder %s31, 1
      %s577 = scalar_select %p576, %s31, 1
      %s578 = smul.addr %s577, 8
      %s579 = scalar_lea.vmem %s0, %s578
      %p580 = pneg %p52
      %p581 = pneg %p49
      %p582 = scmp.lt.s32.totalorder %s31, 1
      %s583 = scalar_select %p582, %s31, 1
      %s584 = smul.addr %s583, 8
      %s585 = scalar_lea.vmem %s1, %s584
      %p586 = pneg %p78
      %p587 = pneg %p75
      %p588 = pneg %p99
      %p589 = pneg %p96
      %p590 = pneg %p120
      %p591 = pneg %p117
      %p592 = pneg %p141
      %p593 = pneg %p138
      %p594 = pneg %p162
      %p595 = pneg %p159
      %p596 = pneg %p183
      %p597 = pneg %p180
      %p598 = pneg %p204
      %p599 = pneg %p201
      %p600 = pneg %p225
      %p601 = pneg %p222
      %p602 = pneg %p246
      %p603 = pneg %p243
      %p604 = pneg %p267
      %p605 = pneg %p264
      %p606 = pneg %p288
      %p607 = pneg %p285
      %p608 = pneg %p309
      %p609 = pneg %p306
      %p610 = pneg %p330
      %p611 = pneg %p327
      %p612 = pneg %p351
      %p613 = pneg %p348
      %p614 = pneg %p372
      %p615 = pneg %p369
      %p616 = pneg %p393
      %p617 = pneg %p390
      %p618 = pneg %p414
      %p619 = pneg %p411
      %p620 = pneg %p435
      %p621 = pneg %p432
      %p622 = pneg %p456
      %p623 = pneg %p453
      %p624 = pneg %p482
      %p625 = pneg %p479
      %p626 = scmp.lt.s32.totalorder %s31, 1
      %s627 = scalar_select %p626, %s31, 1
      %s628 = smul.addr %s627, 8
      %s629 = scalar_lea.vmem %s20, %s628
      %p630 = scmp.lt.s32.totalorder %s31, 1
      %s631 = scalar_select %p630, %s31, 1
      %s632 = smul.addr %s631, 8
      %s633 = scalar_lea.vmem %s0, %s632
      %p634 = scmp.lt.s32.totalorder %s31, 1
      %s635 = scalar_select %p634, %s31, 1
      %s636 = smul.addr %s635, 8
      %s637 = scalar_lea.vmem %s1, %s636
      %p638 = scmp.lt.s32.totalorder %s31, 1
      %s639 = scalar_select %p638, %s31, 1
      %s640 = smul.addr %s639, 8
      %s641 = scalar_lea.vmem %s20, %s640
      %v643 = vld [vmem:[%s633] sm:$0x3f]
      %v644 = vld [vmem:[%s637] sm:$0xff]
      %v645 = vld [vmem:[%s2] sm:$0xf]
      %v646 = vld [vmem:[%s2 + $0x4] sm:$0xf]
      %v647 = vld [vmem:[%s2 + $0x8] sm:$0xf]
      %v648 = vld [vmem:[%s2 + $0xc] sm:$0xf]
      %v649 = vld [vmem:[%s2 + $0x10] sm:$0xf]
      %v650 = vld [vmem:[%s2 + $0x14] sm:$0xf]
      %v651 = vld [vmem:[%s2 + $0x18] sm:$0xf]
      %v652 = vld [vmem:[%s2 + $0x1c] sm:$0xf]
      %v653 = vld [vmem:[%s2 + $0x20] sm:$0xf]
      %v654 = vld [vmem:[%s2 + $0x24] sm:$0xf]
      %v655 = vld [vmem:[%s2 + $0x28] sm:$0xf]
      %v656 = vld [vmem:[%s2 + $0x2c] sm:$0xf]
      %v657 = vld [vmem:[%s2 + $0x30] sm:$0xf]
      %v658 = vld [vmem:[%s2 + $0x34] sm:$0xf]
      %v659 = vld [vmem:[%s2 + $0x38] sm:$0xf]
      %v660 = vld [vmem:[%s2 + $0x3c] sm:$0xf]
      %v661 = vld [vmem:[%s3] sm:$0x1]
      %v662 = vld [vmem:[%s4] sm:$0xf]
      %v663 = vld [vmem:[%s4 + $0x4] sm:$0xf]
      %v664 = vld [vmem:[%s4 + $0x8] sm:$0xf]
      %v665 = vld [vmem:[%s4 + $0xc] sm:$0xf]
      %v666 = vld [vmem:[%s4 + $0x10] sm:$0xf]
      %v667 = vld [vmem:[%s4 + $0x14] sm:$0xf]
      %v668 = vld [vmem:[%s4 + $0x18] sm:$0xf]
      %v669 = vld [vmem:[%s4 + $0x1c] sm:$0xf]
      %v670 = vld [vmem:[%s4 + $0x20] sm:$0xf]
      %v671 = vld [vmem:[%s4 + $0x24] sm:$0xf]
      %v672 = vld [vmem:[%s4 + $0x28] sm:$0xf]
      %v673 = vld [vmem:[%s4 + $0x2c] sm:$0xf]
      %v674 = vld [vmem:[%s4 + $0x30] sm:$0xf]
      %v675 = vld [vmem:[%s4 + $0x34] sm:$0xf]
      %v676 = vld [vmem:[%s4 + $0x38] sm:$0xf]
      %v677 = vld [vmem:[%s4 + $0x3c] sm:$0xf]
      %v678 = vld [vmem:[%s5] sm:$0x1]
      %v679 = vld [vmem:[%s6] sm:$0xf]
      %v680 = vld [vmem:[%s6 + $0x4] sm:$0xf]
      %v681 = vld [vmem:[%s6 + $0x8] sm:$0xf]
      %v682 = vld [vmem:[%s6 + $0xc] sm:$0xf]
      %v683 = vld [vmem:[%s6 + $0x10] sm:$0xf]
      %v684 = vld [vmem:[%s6 + $0x14] sm:$0xf]
      %v685 = vld [vmem:[%s6 + $0x18] sm:$0xf]
      %v686 = vld [vmem:[%s6 + $0x1c] sm:$0xf]
      %v687 = vld [vmem:[%s6 + $0x20] sm:$0xf]
      %v688 = vld [vmem:[%s6 + $0x24] sm:$0xf]
      %v689 = vld [vmem:[%s6 + $0x28] sm:$0xf]
      %v690 = vld [vmem:[%s6 + $0x2c] sm:$0xf]
      %v691 = vld [vmem:[%s6 + $0x30] sm:$0xf]
      %v692 = vld [vmem:[%s6 + $0x34] sm:$0xf]
      %v693 = vld [vmem:[%s6 + $0x38] sm:$0xf]
      %v694 = vld [vmem:[%s6 + $0x3c] sm:$0xf]
      %v695 = vld [vmem:[%s7] sm:$0x1]
      %v696 = vld [vmem:[%s8] sm:$0xf]
      %v697 = vld [vmem:[%s8 + $0x4] sm:$0xf]
      %v698 = vld [vmem:[%s8 + $0x8] sm:$0xf]
      %v699 = vld [vmem:[%s8 + $0xc] sm:$0xf]
      %v700 = vld [vmem:[%s8 + $0x10] sm:$0xf]
      %v701 = vld [vmem:[%s8 + $0x14] sm:$0xf]
      %v702 = vld [vmem:[%s8 + $0x18] sm:$0xf]
      %v703 = vld [vmem:[%s8 + $0x1c] sm:$0xf]
      %v704 = vld [vmem:[%s8 + $0x20] sm:$0xf]
      %v705 = vld [vmem:[%s8 + $0x24] sm:$0xf]
      %v706 = vld [vmem:[%s8 + $0x28] sm:$0xf]
      %v707 = vld [vmem:[%s8 + $0x2c] sm:$0xf]
      %v708 = vld [vmem:[%s8 + $0x30] sm:$0xf]
      %v709 = vld [vmem:[%s8 + $0x34] sm:$0xf]
      %v710 = vld [vmem:[%s8 + $0x38] sm:$0xf]
      %v711 = vld [vmem:[%s8 + $0x3c] sm:$0xf]
      %v712 = vld [vmem:[%s9] sm:$0x1]
      %v713 = vld [vmem:[%s10] sm:$0x1]
      %v714 = vld [vmem:[%s11] sm:$0x1]
      %v715 = vld [vmem:[%s12] sm:$0xff]
      %v716 = vld [vmem:[%s12 + $0x8] sm:$0xff]
      %v717 = vld [vmem:[%s12 + $0x10] sm:$0xff]
      %v718 = vld [vmem:[%s12 + $0x18] sm:$0xff]
      %v719 = vld [vmem:[%s12 + $0x20] sm:$0xff]
      %v720 = vld [vmem:[%s12 + $0x28] sm:$0xff]
      %v721 = vld [vmem:[%s12 + $0x30] sm:$0xff]
      %v722 = vld [vmem:[%s12 + $0x38] sm:$0xff]
      %v723 = vld [vmem:[%s12 + $0x40] sm:$0xff]
      %v724 = vld [vmem:[%s12 + $0x48] sm:$0xff]
      %v725 = vld [vmem:[%s12 + $0x50] sm:$0xff]
      %v726 = vld [vmem:[%s12 + $0x58] sm:$0xff]
      %v727 = vld [vmem:[%s12 + $0x60] sm:$0xff]
      %v728 = vld [vmem:[%s12 + $0x68] sm:$0xff]
      %v729 = vld [vmem:[%s12 + $0x70] sm:$0xff]
      %v730 = vld [vmem:[%s12 + $0x78] sm:$0xff]
      %v731 = vld [vmem:[%s13] sm:$0x3]
      %v732 = vld [vmem:[%s14] sm:$0xf]
      %v733 = vld [vmem:[%s14 + $0x4] sm:$0xf]
      %v734 = vld [vmem:[%s14 + $0x8] sm:$0xf]
      %v735 = vld [vmem:[%s14 + $0xc] sm:$0xf]
      %v736 = vld [vmem:[%s14 + $0x10] sm:$0xf]
      %v737 = vld [vmem:[%s14 + $0x14] sm:$0xf]
      %v738 = vld [vmem:[%s14 + $0x18] sm:$0xf]
      %v739 = vld [vmem:[%s14 + $0x1c] sm:$0xf]
      %v740 = vld [vmem:[%s14 + $0x20] sm:$0xf]
      %v741 = vld [vmem:[%s14 + $0x24] sm:$0xf]
      %v742 = vld [vmem:[%s14 + $0x28] sm:$0xf]
      %v743 = vld [vmem:[%s14 + $0x2c] sm:$0xf]
      %v744 = vld [vmem:[%s14 + $0x30] sm:$0xf]
      %v745 = vld [vmem:[%s14 + $0x34] sm:$0xf]
      %v746 = vld [vmem:[%s14 + $0x38] sm:$0xf]
      %v747 = vld [vmem:[%s14 + $0x3c] sm:$0xf]
      %v748 = vld [vmem:[%s14 + $0x40] sm:$0xf]
      %v749 = vld [vmem:[%s14 + $0x44] sm:$0xf]
      %v750 = vld [vmem:[%s14 + $0x48] sm:$0xf]
      %v751 = vld [vmem:[%s14 + $0x4c] sm:$0xf]
      %v752 = vld [vmem:[%s14 + $0x50] sm:$0xf]
      %v753 = vld [vmem:[%s14 + $0x54] sm:$0xf]
      %v754 = vld [vmem:[%s14 + $0x58] sm:$0xf]
      %v755 = vld [vmem:[%s14 + $0x5c] sm:$0xf]
      %v756 = vld [vmem:[%s14 + $0x60] sm:$0xf]
      %v757 = vld [vmem:[%s14 + $0x64] sm:$0xf]
      %v758 = vld [vmem:[%s14 + $0x68] sm:$0xf]
      %v759 = vld [vmem:[%s14 + $0x6c] sm:$0xf]
      %v760 = vld [vmem:[%s14 + $0x70] sm:$0xf]
      %v761 = vld [vmem:[%s14 + $0x74] sm:$0xf]
      %v762 = vld [vmem:[%s14 + $0x78] sm:$0xf]
      %v763 = vld [vmem:[%s14 + $0x7c] sm:$0xf]
      %v764 = vld [vmem:[%s15] sm:$0x1]
      %v765 = vld [vmem:[%s16] sm:$0x1]
      %v766 = vld [vmem:[%s17] sm:$0x1]
      %v767 = vpack.c.bf16 %v643, %v643
      %v768 = vpack.c.bf16 %v644, %v644
      %v770 = vlaneseq
      %v771 = vshrl.u32 %v770, 7
      %v772 = vsub.s32 0, %v771
      %v773 = vrot.slane %v661, %v772
      %v791 = vunpack.c.l.b16 %v645
      %v792 = vunpack.c.l.b16 %v646
      %v793 = vunpack.c.l.b16 %v647
      %v794 = vunpack.c.l.b16 %v648
      %v795 = vunpack.c.l.b16 %v649
      %v796 = vunpack.c.l.b16 %v650
      %v797 = vunpack.c.l.b16 %v651
      %v798 = vunpack.c.l.b16 %v652
      %v799 = vunpack.c.l.b16 %v653
      %v800 = vunpack.c.l.b16 %v654
      %v801 = vunpack.c.l.b16 %v655
      %v802 = vunpack.c.l.b16 %v656
      %v803 = vunpack.c.l.b16 %v657
      %v804 = vunpack.c.l.b16 %v658
      %v805 = vunpack.c.l.b16 %v659
      %v806 = vunpack.c.l.b16 %v660
      %v807 = vpack.c.b16 %v792, %v791
      %v808 = vpack.c.b16 %v794, %v793
      %v809 = vpack.c.b16 %v796, %v795
      %v810 = vpack.c.b16 %v798, %v797
      %v811 = vpack.c.b16 %v800, %v799
      %v812 = vpack.c.b16 %v802, %v801
      %v813 = vpack.c.b16 %v804, %v803
      %v814 = vpack.c.b16 %v806, %v805
      %823 = vmatprep.subr.bf16.mxu0 0
      %824 = vmatpush1.bf16.msra.mxu0 %v814
      %825 = vmatprep.subr.bf16.mxu0 0
      %826 = vmatpush1.bf16.msra.mxu0 %v813
      %827 = vmatprep.subr.bf16.mxu0 0
      %828 = vmatpush1.bf16.msra.mxu0 %v812
      %829 = vmatprep.subr.bf16.mxu0 0
      %830 = vmatpush1.bf16.msra.mxu0 %v811
      %831 = vmatprep.subr.bf16.mxu0 0
      %832 = vmatpush1.bf16.msra.mxu0 %v810
      %833 = vmatprep.subr.bf16.mxu0 0
      %834 = vmatpush1.bf16.msra.mxu0 %v809
      %835 = vmatprep.subr.bf16.mxu0 0
      %836 = vmatpush1.bf16.msra.mxu0 %v808
      %837 = vmatprep.subr.bf16.mxu0 0
      %838 = vmatpush1.bf16.msra.mxu0 %v807
      %839 = vmatprep.subr.bf16.mxu0 0
      %840 = vmatpush2.bf16.msra.mxu0 0
      %841 = vmatprep.subr.bf16.mxu0 0
      %842 = vmatpush2.bf16.msra.mxu0 0
      %843 = vmatprep.subr.bf16.mxu0 0
      %844 = vmatpush2.bf16.msra.mxu0 0
      %845 = vmatprep.subr.bf16.mxu0 0
      %846 = vmatpush2.bf16.msra.mxu0 0
      %847 = vmatprep.subr.bf16.mxu0 0
      %848 = vmatpush2.bf16.msra.mxu0 0
      %849 = vmatprep.subr.bf16.mxu0 0
      %850 = vmatpush2.bf16.msra.mxu0 0
      %851 = vmatprep.subr.bf16.mxu0 0
      %852 = vmatpush2.bf16.msra.mxu0 0
      %853 = vmatprep.subr.bf16.mxu0 0
      %854 = vmatpush2.bf16.msra.mxu0 0
      %855 = vmatprep.mubr.bf16.mxu0 0
      %856 = vmatmul.mubr.bf16.gmra.mxu0 %v767
      %v857 = vpop.f32.mrf.mxu0
      %v858 = vadd.f32 %v773, %v857
      %v859 = vpop.f32.mrf.mxu0
      %v860 = vpop.f32.mrf.mxu0
      %v861 = vpop.f32.mrf.mxu0
      %862 = vdwg.mxu0
      %v864 = vlaneseq
      %v865 = vshrl.u32 %v864, 7
      %v866 = vsub.s32 0, %v865
      %v867 = vrot.slane %v678, %v866
      %v885 = vunpack.c.l.b16 %v662
      %v886 = vunpack.c.l.b16 %v663
      %v887 = vunpack.c.l.b16 %v664
      %v888 = vunpack.c.l.b16 %v665
      %v889 = vunpack.c.l.b16 %v666
      %v890 = vunpack.c.l.b16 %v667
      %v891 = vunpack.c.l.b16 %v668
      %v892 = vunpack.c.l.b16 %v669
      %v893 = vunpack.c.l.b16 %v670
      %v894 = vunpack.c.l.b16 %v671
      %v895 = vunpack.c.l.b16 %v672
      %v896 = vunpack.c.l.b16 %v673
      %v897 = vunpack.c.l.b16 %v674
      %v898 = vunpack.c.l.b16 %v675
      %v899 = vunpack.c.l.b16 %v676
      %v900 = vunpack.c.l.b16 %v677
      %v901 = vpack.c.b16 %v886, %v885
      %v902 = vpack.c.b16 %v888, %v887
      %v903 = vpack.c.b16 %v890, %v889
      %v904 = vpack.c.b16 %v892, %v891
      %v905 = vpack.c.b16 %v894, %v893
      %v906 = vpack.c.b16 %v896, %v895
      %v907 = vpack.c.b16 %v898, %v897
      %v908 = vpack.c.b16 %v900, %v899
      %917 = vmatprep.subr.bf16.mxu0 0
      %918 = vmatpush1.bf16.msra.mxu0 %v908
      %919 = vmatprep.subr.bf16.mxu0 0
      %920 = vmatpush1.bf16.msra.mxu0 %v907
      %921 = vmatprep.subr.bf16.mxu0 0
      %922 = vmatpush1.bf16.msra.mxu0 %v906
      %923 = vmatprep.subr.bf16.mxu0 0
      %924 = vmatpush1.bf16.msra.mxu0 %v905
      %925 = vmatprep.subr.bf16.mxu0 0
      %926 = vmatpush1.bf16.msra.mxu0 %v904
      %927 = vmatprep.subr.bf16.mxu0 0
      %928 = vmatpush1.bf16.msra.mxu0 %v903
      %929 = vmatprep.subr.bf16.mxu0 0
      %930 = vmatpush1.bf16.msra.mxu0 %v902
      %931 = vmatprep.subr.bf16.mxu0 0
      %932 = vmatpush1.bf16.msra.mxu0 %v901
      %933 = vmatprep.subr.bf16.mxu0 0
      %934 = vmatpush2.bf16.msra.mxu0 0
      %935 = vmatprep.subr.bf16.mxu0 0
      %936 = vmatpush2.bf16.msra.mxu0 0
      %937 = vmatprep.subr.bf16.mxu0 0
      %938 = vmatpush2.bf16.msra.mxu0 0
      %939 = vmatprep.subr.bf16.mxu0 0
      %940 = vmatpush2.bf16.msra.mxu0 0
      %941 = vmatprep.subr.bf16.mxu0 0
      %942 = vmatpush2.bf16.msra.mxu0 0
      %943 = vmatprep.subr.bf16.mxu0 0
      %944 = vmatpush2.bf16.msra.mxu0 0
      %945 = vmatprep.subr.bf16.mxu0 0
      %946 = vmatpush2.bf16.msra.mxu0 0
      %947 = vmatprep.subr.bf16.mxu0 0
      %948 = vmatpush2.bf16.msra.mxu0 0
      %949 = vmatprep.mubr.bf16.mxu0 0
      %950 = vmatmul.mubr.bf16.gmra.mxu0 %v768
      %v951 = vpop.f32.mrf.mxu0
      %v952 = vadd.f32 %v867, %v951
      %v953 = vpop.f32.mrf.mxu0
      %v954 = vpop.f32.mrf.mxu0
      %v955 = vpop.f32.mrf.mxu0
      %956 = vdwg.mxu0
      %v958 = vlaneseq
      %v959 = vshrl.u32 %v958, 7
      %v960 = vsub.s32 0, %v959
      %v961 = vrot.slane %v695, %v960
      %v979 = vunpack.c.l.b16 %v679
      %v980 = vunpack.c.l.b16 %v680
      %v981 = vunpack.c.l.b16 %v681
      %v982 = vunpack.c.l.b16 %v682
      %v983 = vunpack.c.l.b16 %v683
      %v984 = vunpack.c.l.b16 %v684
      %v985 = vunpack.c.l.b16 %v685
      %v986 = vunpack.c.l.b16 %v686
      %v987 = vunpack.c.l.b16 %v687
      %v988 = vunpack.c.l.b16 %v688
      %v989 = vunpack.c.l.b16 %v689
      %v990 = vunpack.c.l.b16 %v690
      %v991 = vunpack.c.l.b16 %v691
      %v992 = vunpack.c.l.b16 %v692
      %v993 = vunpack.c.l.b16 %v693
      %v994 = vunpack.c.l.b16 %v694
      %v995 = vpack.c.b16 %v980, %v979
      %v996 = vpack.c.b16 %v982, %v981
      %v997 = vpack.c.b16 %v984, %v983
      %v998 = vpack.c.b16 %v986, %v985
      %v999 = vpack.c.b16 %v988, %v987
      %v1000 = vpack.c.b16 %v990, %v989
      %v1001 = vpack.c.b16 %v992, %v991
      %v1002 = vpack.c.b16 %v994, %v993
      %1011 = vmatprep.subr.bf16.mxu0 0
      %1012 = vmatpush1.bf16.msra.mxu0 %v1002
      %1013 = vmatprep.subr.bf16.mxu0 0
      %1014 = vmatpush1.bf16.msra.mxu0 %v1001
      %1015 = vmatprep.subr.bf16.mxu0 0
      %1016 = vmatpush1.bf16.msra.mxu0 %v1000
      %1017 = vmatprep.subr.bf16.mxu0 0
      %1018 = vmatpush1.bf16.msra.mxu0 %v999
      %1019 = vmatprep.subr.bf16.mxu0 0
      %1020 = vmatpush1.bf16.msra.mxu0 %v998
      %1021 = vmatprep.subr.bf16.mxu0 0
      %1022 = vmatpush1.bf16.msra.mxu0 %v997
      %1023 = vmatprep.subr.bf16.mxu0 0
      %1024 = vmatpush1.bf16.msra.mxu0 %v996
      %1025 = vmatprep.subr.bf16.mxu0 0
      %1026 = vmatpush1.bf16.msra.mxu0 %v995
      %1027 = vmatprep.subr.bf16.mxu0 0
      %1028 = vmatpush2.bf16.msra.mxu0 0
      %1029 = vmatprep.subr.bf16.mxu0 0
      %1030 = vmatpush2.bf16.msra.mxu0 0
      %1031 = vmatprep.subr.bf16.mxu0 0
      %1032 = vmatpush2.bf16.msra.mxu0 0
      %1033 = vmatprep.subr.bf16.mxu0 0
      %1034 = vmatpush2.bf16.msra.mxu0 0
      %1035 = vmatprep.subr.bf16.mxu0 0
      %1036 = vmatpush2.bf16.msra.mxu0 0
      %1037 = vmatprep.subr.bf16.mxu0 0
      %1038 = vmatpush2.bf16.msra.mxu0 0
      %1039 = vmatprep.subr.bf16.mxu0 0
      %1040 = vmatpush2.bf16.msra.mxu0 0
      %1041 = vmatprep.subr.bf16.mxu0 0
      %1042 = vmatpush2.bf16.msra.mxu0 0
      %1043 = vmatprep.mubr.bf16.mxu0 0
      %1044 = vmatmul.mubr.bf16.gmra.mxu0 %v768
      %v1045 = vpop.f32.mrf.mxu0
      %v1046 = vadd.f32 %v961, %v1045
      %v1047 = vpop.f32.mrf.mxu0
      %v1048 = vpop.f32.mrf.mxu0
      %v1049 = vpop.f32.mrf.mxu0
      %1050 = vdwg.mxu0
      %v1051 = vmul.f32 %v858, 0.17677669
      %v1052 = vpack.c.bf16 %v1051, %v1051
      %v1053 = vpack.c.bf16 %v952, %v952
      %v1054 = vpack.c.bf16 %v1046, %v1046
      %vm1055 = vcmask 261120
      %v1057 = vsel %vm1055, %v1052, 0
      %v1060 = vsel %vm1055, %v1053, 0
      %1062 = vmatprep.subr.bf16.mxu0 0
      %1063 = vmatpush1.bf16.xpose.msra.mxu0 0
      %1064 = vmatprep.subr.bf16.mxu0 0
      %1065 = vmatpush1.bf16.xpose.msra.mxu0 0
      %1066 = vmatprep.subr.bf16.mxu0 0
      %1067 = vmatpush1.bf16.xpose.msra.mxu0 0
      %1068 = vmatprep.subr.bf16.mxu0 0
      %1069 = vmatpush1.bf16.xpose.msra.mxu0 0
      %1070 = vmatprep.subr.bf16.mxu0 0
      %1071 = vmatpush1.bf16.xpose.msra.mxu0 0
      %1072 = vmatprep.subr.bf16.mxu0 0
      %1073 = vmatpush1.bf16.xpose.msra.mxu0 0
      %1074 = vmatprep.subr.bf16.mxu0 0
      %1075 = vmatpush1.bf16.xpose.msra.mxu0 0
      %1076 = vmatprep.subr.bf16.mxu0 0
      %1077 = vmatpush1.bf16.xpose.msra.mxu0 %v1060
      %1078 = vmatprep.subr.bf16.mxu0 0
      %1079 = vmatpush2.bf16.xpose.msra.mxu0 0
      %1080 = vmatprep.subr.bf16.mxu0 0
      %1081 = vmatpush2.bf16.xpose.msra.mxu0 0
      %1082 = vmatprep.subr.bf16.mxu0 0
      %1083 = vmatpush2.bf16.xpose.msra.mxu0 0
      %1084 = vmatprep.subr.bf16.mxu0 0
      %1085 = vmatpush2.bf16.xpose.msra.mxu0 0
      %1086 = vmatprep.subr.bf16.mxu0 0
      %1087 = vmatpush2.bf16.xpose.msra.mxu0 0
      %1088 = vmatprep.subr.bf16.mxu0 0
      %1089 = vmatpush2.bf16.xpose.msra.mxu0 0
      %1090 = vmatprep.subr.bf16.mxu0 0
      %1091 = vmatpush2.bf16.xpose.msra.mxu0 0
      %1092 = vmatprep.subr.bf16.mxu0 0
      %1093 = vmatpush2.bf16.xpose.msra.mxu0 0
      %1094 = vmatprep.mubr.bf16.mxu0 0
      %1095 = vmatmul.mubr.bf16.gmra.mxu0 %v1057
      %v1096 = vpop.f32.mrf.mxu0
      %v1097 = vadd.f32 0.0, %v1096
      %v1098 = vpop.f32.mrf.mxu0
      %v1099 = vpop.f32.mrf.mxu0
      %v1100 = vpop.f32.mrf.mxu0
      %1101 = vdwg.mxu0
      %vm1102 = vcmask 62464
      %v1103 = vsel %vm1102, %v1097, -inf
      %1104 = vmax.xlane.f32.xlu0 %v1103
      %v1105 = vpop.xlane.xlu0 %1104
      %v1106 = vsub.f32 %v1097, %v1105
      %v1107 = vmul.f32 %v1106, 1.442695
      %v1108 = vpow.pop %v1107
      %v1109 = vsel %vm1102, %v1108, 0.0
      %1110 = vadd.xlane.f32.xlu0 %v1109
      %v1111 = vpop.xlane.xlu0 %1110
      %v1112 = vrcp.pop %v1111
      %v1113 = vmul.f32 %v1108, %v1112
      %v1114 = vpack.c.bf16 %v1113, %v1113
      %vm1115 = vcmask 64512
      %v1117 = vsel %vm1115, %v1114, 0
      %vm1119 = vcmask 1043456
      %v1121 = vsel %vm1119, %v1054, 0
      %1123 = vmatprep.subr.bf16.mxu0 0
      %1124 = vmatpush1.bf16.msra.mxu0 0
      %1125 = vmatprep.subr.bf16.mxu0 0
      %1126 = vmatpush1.bf16.msra.mxu0 0
      %1127 = vmatprep.subr.bf16.mxu0 0
      %1128 = vmatpush1.bf16.msra.mxu0 0
      %1129 = vmatprep.subr.bf16.mxu0 0
      %1130 = vmatpush1.bf16.msra.mxu0 0
      %1131 = vmatprep.subr.bf16.mxu0 0
      %1132 = vmatpush1.bf16.msra.mxu0 0
      %1133 = vmatprep.subr.bf16.mxu0 0
      %1134 = vmatpush1.bf16.msra.mxu0 0
      %1135 = vmatprep.subr.bf16.mxu0 0
      %1136 = vmatpush1.bf16.msra.mxu0 0
      %1137 = vmatprep.subr.bf16.mxu0 0
      %1138 = vmatpush1.bf16.msra.mxu0 %v1121
      %1139 = vmatprep.subr.bf16.mxu0 0
      %1140 = vmatpush2.bf16.msra.mxu0 0
      %1141 = vmatprep.subr.bf16.mxu0 0
      %1142 = vmatpush2.bf16.msra.mxu0 0
      %1143 = vmatprep.subr.bf16.mxu0 0
      %1144 = vmatpush2.bf16.msra.mxu0 0
      %1145 = vmatprep.subr.bf16.mxu0 0
      %1146 = vmatpush2.bf16.msra.mxu0 0
      %1147 = vmatprep.subr.bf16.mxu0 0
      %1148 = vmatpush2.bf16.msra.mxu0 0
      %1149 = vmatprep.subr.bf16.mxu0 0
      %1150 = vmatpush2.bf16.msra.mxu0 0
      %1151 = vmatprep.subr.bf16.mxu0 0
      %1152 = vmatpush2.bf16.msra.mxu0 0
      %1153 = vmatprep.subr.bf16.mxu0 0
      %1154 = vmatpush2.bf16.msra.mxu0 0
      %1155 = vmatprep.mubr.bf16.mxu0 0
      %1156 = vmatmul.mubr.bf16.gmra.mxu0 %v1117
      %v1157 = vpop.f32.mrf.mxu0
      %v1158 = vadd.f32 0.0, %v1157
      %v1159 = vpop.f32.mrf.mxu0
      %v1160 = vpop.f32.mrf.mxu0
      %v1161 = vpop.f32.mrf.mxu0
      %1162 = vdwg.mxu0
      %v1163 = vpack.c.bf16 %v1158, %v1158
      %1165 = vrot.lane.b32.xlu0 %v1052, 96
      %v1166 = vpop.permute.xlu0 %1165
      %1168 = vrot.lane.b32.xlu0 %v1053, 96
      %v1169 = vpop.permute.xlu0 %1168
      %v1171 = vsel %vm1055, %v1166, 0
      %v1174 = vsel %vm1055, %v1169, 0
      %1176 = vmatprep.subr.bf16.mxu0 0
      %1177 = vmatpush1.bf16.xpose.msra.mxu0 0
      %1178 = vmatprep.subr.bf16.mxu0 0
      %1179 = vmatpush1.bf16.xpose.msra.mxu0 0
      %1180 = vmatprep.subr.bf16.mxu0 0
      %1181 = vmatpush1.bf16.xpose.msra.mxu0 0
      %1182 = vmatprep.subr.bf16.mxu0 0
      %1183 = vmatpush1.bf16.xpose.msra.mxu0 0
      %1184 = vmatprep.subr.bf16.mxu0 0
      %1185 = vmatpush1.bf16.xpose.msra.mxu0 0
      %1186 = vmatprep.subr.bf16.mxu0 0
      %1187 = vmatpush1.bf16.xpose.msra.mxu0 0
      %1188 = vmatprep.subr.bf16.mxu0 0
      %1189 = vmatpush1.bf16.xpose.msra.mxu0 0
      %1190 = vmatprep.subr.bf16.mxu0 0
      %1191 = vmatpush1.bf16.xpose.msra.mxu0 %v1174
      %1192 = vmatprep.subr.bf16.mxu0 0
      %1193 = vmatpush2.bf16.xpose.msra.mxu0 0
      %1194 = vmatprep.subr.bf16.mxu0 0
      %1195 = vmatpush2.bf16.xpose.msra.mxu0 0
      %1196 = vmatprep.subr.bf16.mxu0 0
      %1197 = vmatpush2.bf16.xpose.msra.mxu0 0
      %1198 = vmatprep.subr.bf16.mxu0 0
      %1199 = vmatpush2.bf16.xpose.msra.mxu0 0
      %1200 = vmatprep.subr.bf16.mxu0 0
      %1201 = vmatpush2.bf16.xpose.msra.mxu0 0
      %1202 = vmatprep.subr.bf16.mxu0 0
      %1203 = vmatpush2.bf16.xpose.msra.mxu0 0
      %1204 = vmatprep.subr.bf16.mxu0 0
      %1205 = vmatpush2.bf16.xpose.msra.mxu0 0
      %1206 = vmatprep.subr.bf16.mxu0 0
      %1207 = vmatpush2.bf16.xpose.msra.mxu0 0
      %1208 = vmatprep.mubr.bf16.mxu0 0
      %1209 = vmatmul.mubr.bf16.gmra.mxu0 %v1171
      %v1210 = vpop.f32.mrf.mxu0
      %v1211 = vadd.f32 0.0, %v1210
      %v1212 = vpop.f32.mrf.mxu0
      %v1213 = vpop.f32.mrf.mxu0
      %v1214 = vpop.f32.mrf.mxu0
      %1215 = vdwg.mxu0
      %v1216 = vsel %vm1102, %v1211, -inf
      %1217 = vmax.xlane.f32.xlu0 %v1216
      %v1218 = vpop.xlane.xlu0 %1217
      %v1219 = vsub.f32 %v1211, %v1218
      %v1220 = vmul.f32 %v1219, 1.442695
      %v1221 = vpow.pop %v1220
      %v1222 = vsel %vm1102, %v1221, 0.0
      %1223 = vadd.xlane.f32.xlu0 %v1222
      %v1224 = vpop.xlane.xlu0 %1223
      %v1225 = vrcp.pop %v1224
      %v1226 = vmul.f32 %v1221, %v1225
      %v1227 = vpack.c.bf16 %v1226, %v1226
      %1229 = vrot.lane.b32.xlu0 %v1054, 96
      %v1230 = vpop.permute.xlu0 %1229
      %v1232 = vsel %vm1115, %v1227, 0
      %v1235 = vsel %vm1119, %v1230, 0
      %1237 = vmatprep.subr.bf16.mxu0 0
      %1238 = vmatpush1.bf16.msra.mxu0 0
      %1239 = vmatprep.subr.bf16.mxu0 0
      %1240 = vmatpush1.bf16.msra.mxu0 0
      %1241 = vmatprep.subr.bf16.mxu0 0
      %1242 = vmatpush1.bf16.msra.mxu0 0
      %1243 = vmatprep.subr.bf16.mxu0 0
      %1244 = vmatpush1.bf16.msra.mxu0 0
      %1245 = vmatprep.subr.bf16.mxu0 0
      %1246 = vmatpush1.bf16.msra.mxu0 0
      %1247 = vmatprep.subr.bf16.mxu0 0
      %1248 = vmatpush1.bf16.msra.mxu0 0
      %1249 = vmatprep.subr.bf16.mxu0 0
      %1250 = vmatpush1.bf16.msra.mxu0 0
      %1251 = vmatprep.subr.bf16.mxu0 0
      %1252 = vmatpush1.bf16.msra.mxu0 %v1235
      %1253 = vmatprep.subr.bf16.mxu0 0
      %1254 = vmatpush2.bf16.msra.mxu0 0
      %1255 = vmatprep.subr.bf16.mxu0 0
      %1256 = vmatpush2.bf16.msra.mxu0 0
      %1257 = vmatprep.subr.bf16.mxu0 0
      %1258 = vmatpush2.bf16.msra.mxu0 0
      %1259 = vmatprep.subr.bf16.mxu0 0
      %1260 = vmatpush2.bf16.msra.mxu0 0
      %1261 = vmatprep.subr.bf16.mxu0 0
      %1262 = vmatpush2.bf16.msra.mxu0 0
      %1263 = vmatprep.subr.bf16.mxu0 0
      %1264 = vmatpush2.bf16.msra.mxu0 0
      %1265 = vmatprep.subr.bf16.mxu0 0
      %1266 = vmatpush2.bf16.msra.mxu0 0
      %1267 = vmatprep.subr.bf16.mxu0 0
      %1268 = vmatpush2.bf16.msra.mxu0 0
      %1269 = vmatprep.mubr.bf16.mxu0 0
      %1270 = vmatmul.mubr.bf16.gmra.mxu0 %v1232
      %v1271 = vpop.f32.mrf.mxu0
      %v1272 = vadd.f32 0.0, %v1271
      %v1273 = vpop.f32.mrf.mxu0
      %v1274 = vpop.f32.mrf.mxu0
      %v1275 = vpop.f32.mrf.mxu0
      %1276 = vdwg.mxu0
      %v1277 = vpack.c.bf16 %v1272, %v1272
      %v1282 = vunpack.c.l.b16 %v700
      %v1283 = vunpack.c.l.b16 %v701
      %v1284 = vunpack.c.l.b16 %v702
      %v1285 = vunpack.c.l.b16 %v703
      %v1286 = vpack.c.b16 %v1283, %v1282
      %v1287 = vpack.c.b16 %v1285, %v1284
      %v1291 = vsel %vm1055, %v1277, 0
      %1293 = vmatprep.subr.bf16.mxu0 0
      %1294 = vmatpush1.bf16.msra.mxu0 0
      %1295 = vmatprep.subr.bf16.mxu0 0
      %1296 = vmatpush1.bf16.msra.mxu0 0
      %1297 = vmatprep.subr.bf16.mxu0 0
      %1298 = vmatpush1.bf16.msra.mxu0 0
      %1299 = vmatprep.subr.bf16.mxu0 0
      %1300 = vmatpush1.bf16.msra.mxu0 0
      %1301 = vmatprep.subr.bf16.mxu0 0
      %1302 = vmatpush1.bf16.msra.mxu0 0
      %1303 = vmatprep.subr.bf16.mxu0 0
      %1304 = vmatpush1.bf16.msra.mxu0 0
      %1305 = vmatprep.subr.bf16.mxu0 0
      %1306 = vmatpush1.bf16.msra.mxu0 %v1287
      %1307 = vmatprep.subr.bf16.mxu0 0
      %1308 = vmatpush1.bf16.msra.mxu0 %v1286
      %1309 = vmatprep.subr.bf16.mxu0 0
      %1310 = vmatpush2.bf16.msra.mxu0 0
      %1311 = vmatprep.subr.bf16.mxu0 0
      %1312 = vmatpush2.bf16.msra.mxu0 0
      %1313 = vmatprep.subr.bf16.mxu0 0
      %1314 = vmatpush2.bf16.msra.mxu0 0
      %1315 = vmatprep.subr.bf16.mxu0 0
      %1316 = vmatpush2.bf16.msra.mxu0 0
      %1317 = vmatprep.subr.bf16.mxu0 0
      %1318 = vmatpush2.bf16.msra.mxu0 0
      %1319 = vmatprep.subr.bf16.mxu0 0
      %1320 = vmatpush2.bf16.msra.mxu0 0
      %1321 = vmatprep.subr.bf16.mxu0 0
      %1322 = vmatpush2.bf16.msra.mxu0 0
      %1323 = vmatprep.subr.bf16.mxu0 0
      %1324 = vmatpush2.bf16.msra.mxu0 0
      %1325 = vmatprep.mubr.bf16.mxu0 0
      %1326 = vmatmul.mubr.bf16.gmra.mxu0 %v1291
      %v1327 = vpop.f32.mrf.mxu0
      %v1328 = vadd.f32 0.0, %v1327
      %v1329 = vpop.f32.mrf.mxu0
      %v1330 = vpop.f32.mrf.mxu0
      %v1331 = vpop.f32.mrf.mxu0
      %1332 = vdwg.mxu0
      %v1337 = vunpack.c.l.b16 %v696
      %v1338 = vunpack.c.l.b16 %v697
      %v1339 = vunpack.c.l.b16 %v698
      %v1340 = vunpack.c.l.b16 %v699
      %v1341 = vpack.c.b16 %v1338, %v1337
      %v1342 = vpack.c.b16 %v1340, %v1339
      %v1346 = vsel %vm1055, %v1163, 0
      %1348 = vmatprep.subr.bf16.mxu0 0
      %1349 = vmatpush1.bf16.msra.mxu0 0
      %1350 = vmatprep.subr.bf16.mxu0 0
      %1351 = vmatpush1.bf16.msra.mxu0 0
      %1352 = vmatprep.subr.bf16.mxu0 0
      %1353 = vmatpush1.bf16.msra.mxu0 0
      %1354 = vmatprep.subr.bf16.mxu0 0
      %1355 = vmatpush1.bf16.msra.mxu0 0
      %1356 = vmatprep.subr.bf16.mxu0 0
      %1357 = vmatpush1.bf16.msra.mxu0 0
      %1358 = vmatprep.subr.bf16.mxu0 0
      %1359 = vmatpush1.bf16.msra.mxu0 0
      %1360 = vmatprep.subr.bf16.mxu0 0
      %1361 = vmatpush1.bf16.msra.mxu0 %v1342
      %1362 = vmatprep.subr.bf16.mxu0 0
      %1363 = vmatpush1.bf16.msra.mxu0 %v1341
      %1364 = vmatprep.subr.bf16.mxu0 0
      %1365 = vmatpush2.bf16.msra.mxu0 0
      %1366 = vmatprep.subr.bf16.mxu0 0
      %1367 = vmatpush2.bf16.msra.mxu0 0
      %1368 = vmatprep.subr.bf16.mxu0 0
      %1369 = vmatpush2.bf16.msra.mxu0 0
      %1370 = vmatprep.subr.bf16.mxu0 0
      %1371 = vmatpush2.bf16.msra.mxu0 0
      %1372 = vmatprep.subr.bf16.mxu0 0
      %1373 = vmatpush2.bf16.msra.mxu0 0
      %1374 = vmatprep.subr.bf16.mxu0 0
      %1375 = vmatpush2.bf16.msra.mxu0 0
      %1376 = vmatprep.subr.bf16.mxu0 0
      %1377 = vmatpush2.bf16.msra.mxu0 0
      %1378 = vmatprep.subr.bf16.mxu0 0
      %1379 = vmatpush2.bf16.msra.mxu0 0
      %1380 = vmatprep.mubr.bf16.mxu0 0
      %1381 = vmatmul.mubr.bf16.gmra.mxu0 %v1346
      %v1382 = vpop.f32.mrf.mxu0
      %v1383 = vadd.f32 %v1328, %v1382
      %v1384 = vpop.f32.mrf.mxu0
      %v1385 = vpop.f32.mrf.mxu0
      %v1386 = vpop.f32.mrf.mxu0
      %1387 = vdwg.mxu0
      %1388 = vrot.lane.b32.xlu0 %v1052, 64
      %v1389 = vpop.permute.xlu0 %1388
      %1390 = vrot.lane.b32.xlu0 %v1053, 64
      %v1391 = vpop.permute.xlu0 %1390
      %v1393 = vsel %vm1055, %v1389, 0
      %v1396 = vsel %vm1055, %v1391, 0
      %1398 = vmatprep.subr.bf16.mxu0 0
      %1399 = vmatpush1.bf16.xpose.msra.mxu0 0
      %1400 = vmatprep.subr.bf16.mxu0 0
      %1401 = vmatpush1.bf16.xpose.msra.mxu0 0
      %1402 = vmatprep.subr.bf16.mxu0 0
      %1403 = vmatpush1.bf16.xpose.msra.mxu0 0
      %1404 = vmatprep.subr.bf16.mxu0 0
      %1405 = vmatpush1.bf16.xpose.msra.mxu0 0
      %1406 = vmatprep.subr.bf16.mxu0 0
      %1407 = vmatpush1.bf16.xpose.msra.mxu0 0
      %1408 = vmatprep.subr.bf16.mxu0 0
      %1409 = vmatpush1.bf16.xpose.msra.mxu0 0
      %1410 = vmatprep.subr.bf16.mxu0 0
      %1411 = vmatpush1.bf16.xpose.msra.mxu0 0
      %1412 = vmatprep.subr.bf16.mxu0 0
      %1413 = vmatpush1.bf16.xpose.msra.mxu0 %v1396
      %1414 = vmatprep.subr.bf16.mxu0 0
      %1415 = vmatpush2.bf16.xpose.msra.mxu0 0
      %1416 = vmatprep.subr.bf16.mxu0 0
      %1417 = vmatpush2.bf16.xpose.msra.mxu0 0
      %1418 = vmatprep.subr.bf16.mxu0 0
      %1419 = vmatpush2.bf16.xpose.msra.mxu0 0
      %1420 = vmatprep.subr.bf16.mxu0 0
      %1421 = vmatpush2.bf16.xpose.msra.mxu0 0
      %1422 = vmatprep.subr.bf16.mxu0 0
      %1423 = vmatpush2.bf16.xpose.msra.mxu0 0
      %1424 = vmatprep.subr.bf16.mxu0 0
      %1425 = vmatpush2.bf16.xpose.msra.mxu0 0
      %1426 = vmatprep.subr.bf16.mxu0 0
      %1427 = vmatpush2.bf16.xpose.msra.mxu0 0
      %1428 = vmatprep.subr.bf16.mxu0 0
      %1429 = vmatpush2.bf16.xpose.msra.mxu0 0
      %1430 = vmatprep.mubr.bf16.mxu0 0
      %1431 = vmatmul.mubr.bf16.gmra.mxu0 %v1393
      %v1432 = vpop.f32.mrf.mxu0
      %v1433 = vadd.f32 0.0, %v1432
      %v1434 = vpop.f32.mrf.mxu0
      %v1435 = vpop.f32.mrf.mxu0
      %v1436 = vpop.f32.mrf.mxu0
      %1437 = vdwg.mxu0
      %v1438 = vsel %vm1102, %v1433, -inf
      %1439 = vmax.xlane.f32.xlu0 %v1438
      %v1440 = vpop.xlane.xlu0 %1439
      %v1441 = vsub.f32 %v1433, %v1440
      %v1442 = vmul.f32 %v1441, 1.442695
      %v1443 = vpow.pop %v1442
      %v1444 = vsel %vm1102, %v1443, 0.0
      %1445 = vadd.xlane.f32.xlu0 %v1444
      %v1446 = vpop.xlane.xlu0 %1445
      %v1447 = vrcp.pop %v1446
      %v1448 = vmul.f32 %v1443, %v1447
      %v1449 = vpack.c.bf16 %v1448, %v1448
      %1450 = vrot.lane.b32.xlu0 %v1054, 64
      %v1451 = vpop.permute.xlu0 %1450
      %v1453 = vsel %vm1115, %v1449, 0
      %v1456 = vsel %vm1119, %v1451, 0
      %1458 = vmatprep.subr.bf16.mxu0 0
      %1459 = vmatpush1.bf16.msra.mxu0 0
      %1460 = vmatprep.subr.bf16.mxu0 0
      %1461 = vmatpush1.bf16.msra.mxu0 0
      %1462 = vmatprep.subr.bf16.mxu0 0
      %1463 = vmatpush1.bf16.msra.mxu0 0
      %1464 = vmatprep.subr.bf16.mxu0 0
      %1465 = vmatpush1.bf16.msra.mxu0 0
      %1466 = vmatprep.subr.bf16.mxu0 0
      %1467 = vmatpush1.bf16.msra.mxu0 0
      %1468 = vmatprep.subr.bf16.mxu0 0
      %1469 = vmatpush1.bf16.msra.mxu0 0
      %1470 = vmatprep.subr.bf16.mxu0 0
      %1471 = vmatpush1.bf16.msra.mxu0 0
      %1472 = vmatprep.subr.bf16.mxu0 0
      %1473 = vmatpush1.bf16.msra.mxu0 %v1456
      %1474 = vmatprep.subr.bf16.mxu0 0
      %1475 = vmatpush2.bf16.msra.mxu0 0
      %1476 = vmatprep.subr.bf16.mxu0 0
      %1477 = vmatpush2.bf16.msra.mxu0 0
      %1478 = vmatprep.subr.bf16.mxu0 0
      %1479 = vmatpush2.bf16.msra.mxu0 0
      %1480 = vmatprep.subr.bf16.mxu0 0
      %1481 = vmatpush2.bf16.msra.mxu0 0
      %1482 = vmatprep.subr.bf16.mxu0 0
      %1483 = vmatpush2.bf16.msra.mxu0 0
      %1484 = vmatprep.subr.bf16.mxu0 0
      %1485 = vmatpush2.bf16.msra.mxu0 0
      %1486 = vmatprep.subr.bf16.mxu0 0
      %1487 = vmatpush2.bf16.msra.mxu0 0
      %1488 = vmatprep.subr.bf16.mxu0 0
      %1489 = vmatpush2.bf16.msra.mxu0 0
      %1490 = vmatprep.mubr.bf16.mxu0 0
      %1491 = vmatmul.mubr.bf16.gmra.mxu0 %v1453
      %v1492 = vpop.f32.mrf.mxu0
      %v1493 = vadd.f32 0.0, %v1492
      %v1494 = vpop.f32.mrf.mxu0
      %v1495 = vpop.f32.mrf.mxu0
      %v1496 = vpop.f32.mrf.mxu0
      %1497 = vdwg.mxu0
      %v1498 = vpack.c.bf16 %v1493, %v1493
      %v1503 = vunpack.c.l.b16 %v704
      %v1504 = vunpack.c.l.b16 %v705
      %v1505 = vunpack.c.l.b16 %v706
      %v1506 = vunpack.c.l.b16 %v707
      %v1507 = vpack.c.b16 %v1504, %v1503
      %v1508 = vpack.c.b16 %v1506, %v1505
      %v1512 = vsel %vm1055, %v1498, 0
      %1514 = vmatprep.subr.bf16.mxu0 0
      %1515 = vmatpush1.bf16.msra.mxu0 0
      %1516 = vmatprep.subr.bf16.mxu0 0
      %1517 = vmatpush1.bf16.msra.mxu0 0
      %1518 = vmatprep.subr.bf16.mxu0 0
      %1519 = vmatpush1.bf16.msra.mxu0 0
      %1520 = vmatprep.subr.bf16.mxu0 0
      %1521 = vmatpush1.bf16.msra.mxu0 0
      %1522 = vmatprep.subr.bf16.mxu0 0
      %1523 = vmatpush1.bf16.msra.mxu0 0
      %1524 = vmatprep.subr.bf16.mxu0 0
      %1525 = vmatpush1.bf16.msra.mxu0 0
      %1526 = vmatprep.subr.bf16.mxu0 0
      %1527 = vmatpush1.bf16.msra.mxu0 %v1508
      %1528 = vmatprep.subr.bf16.mxu0 0
      %1529 = vmatpush1.bf16.msra.mxu0 %v1507
      %1530 = vmatprep.subr.bf16.mxu0 0
      %1531 = vmatpush2.bf16.msra.mxu0 0
      %1532 = vmatprep.subr.bf16.mxu0 0
      %1533 = vmatpush2.bf16.msra.mxu0 0
      %1534 = vmatprep.subr.bf16.mxu0 0
      %1535 = vmatpush2.bf16.msra.mxu0 0
      %1536 = vmatprep.subr.bf16.mxu0 0
      %1537 = vmatpush2.bf16.msra.mxu0 0
      %1538 = vmatprep.subr.bf16.mxu0 0
      %1539 = vmatpush2.bf16.msra.mxu0 0
      %1540 = vmatprep.subr.bf16.mxu0 0
      %1541 = vmatpush2.bf16.msra.mxu0 0
      %1542 = vmatprep.subr.bf16.mxu0 0
      %1543 = vmatpush2.bf16.msra.mxu0 0
      %1544 = vmatprep.subr.bf16.mxu0 0
      %1545 = vmatpush2.bf16.msra.mxu0 0
      %1546 = vmatprep.mubr.bf16.mxu0 0
      %1547 = vmatmul.mubr.bf16.gmra.mxu0 %v1512
      %v1548 = vpop.f32.mrf.mxu0
      %v1549 = vadd.f32 0.0, %v1548
      %v1550 = vpop.f32.mrf.mxu0
      %v1551 = vpop.f32.mrf.mxu0
      %v1552 = vpop.f32.mrf.mxu0
      %1553 = vdwg.mxu0
      %v1554 = vadd.f32 %v1383, %v1549
      %1555 = vrot.lane.b32.xlu0 %v1052, 32
      %v1556 = vpop.permute.xlu0 %1555
      %1557 = vrot.lane.b32.xlu0 %v1053, 32
      %v1558 = vpop.permute.xlu0 %1557
      %v1560 = vsel %vm1055, %v1556, 0
      %v1563 = vsel %vm1055, %v1558, 0
      %1565 = vmatprep.subr.bf16.mxu0 0
      %1566 = vmatpush1.bf16.xpose.msra.mxu0 0
      %1567 = vmatprep.subr.bf16.mxu0 0
      %1568 = vmatpush1.bf16.xpose.msra.mxu0 0
      %1569 = vmatprep.subr.bf16.mxu0 0
      %1570 = vmatpush1.bf16.xpose.msra.mxu0 0
      %1571 = vmatprep.subr.bf16.mxu0 0
      %1572 = vmatpush1.bf16.xpose.msra.mxu0 0
      %1573 = vmatprep.subr.bf16.mxu0 0
      %1574 = vmatpush1.bf16.xpose.msra.mxu0 0
      %1575 = vmatprep.subr.bf16.mxu0 0
      %1576 = vmatpush1.bf16.xpose.msra.mxu0 0
      %1577 = vmatprep.subr.bf16.mxu0 0
      %1578 = vmatpush1.bf16.xpose.msra.mxu0 0
      %1579 = vmatprep.subr.bf16.mxu0 0
      %1580 = vmatpush1.bf16.xpose.msra.mxu0 %v1563
      %1581 = vmatprep.subr.bf16.mxu0 0
      %1582 = vmatpush2.bf16.xpose.msra.mxu0 0
      %1583 = vmatprep.subr.bf16.mxu0 0
      %1584 = vmatpush2.bf16.xpose.msra.mxu0 0
      %1585 = vmatprep.subr.bf16.mxu0 0
      %1586 = vmatpush2.bf16.xpose.msra.mxu0 0
      %1587 = vmatprep.subr.bf16.mxu0 0
      %1588 = vmatpush2.bf16.xpose.msra.mxu0 0
      %1589 = vmatprep.subr.bf16.mxu0 0
      %1590 = vmatpush2.bf16.xpose.msra.mxu0 0
      %1591 = vmatprep.subr.bf16.mxu0 0
      %1592 = vmatpush2.bf16.xpose.msra.mxu0 0
      %1593 = vmatprep.subr.bf16.mxu0 0
      %1594 = vmatpush2.bf16.xpose.msra.mxu0 0
      %1595 = vmatprep.subr.bf16.mxu0 0
      %1596 = vmatpush2.bf16.xpose.msra.mxu0 0
      %1597 = vmatprep.mubr.bf16.mxu0 0
      %1598 = vmatmul.mubr.bf16.gmra.mxu0 %v1560
      %v1599 = vpop.f32.mrf.mxu0
      %v1600 = vadd.f32 0.0, %v1599
      %v1601 = vpop.f32.mrf.mxu0
      %v1602 = vpop.f32.mrf.mxu0
      %v1603 = vpop.f32.mrf.mxu0
      %1604 = vdwg.mxu0
      %v1605 = vsel %vm1102, %v1600, -inf
      %1606 = vmax.xlane.f32.xlu0 %v1605
      %v1607 = vpop.xlane.xlu0 %1606
      %v1608 = vsub.f32 %v1600, %v1607
      %v1609 = vmul.f32 %v1608, 1.442695
      %v1610 = vpow.pop %v1609
      %v1611 = vsel %vm1102, %v1610, 0.0
      %1612 = vadd.xlane.f32.xlu0 %v1611
      %v1613 = vpop.xlane.xlu0 %1612
      %v1614 = vrcp.pop %v1613
      %v1615 = vmul.f32 %v1610, %v1614
      %v1616 = vpack.c.bf16 %v1615, %v1615
      %1617 = vrot.lane.b32.xlu0 %v1054, 32
      %v1618 = vpop.permute.xlu0 %1617
      %v1620 = vsel %vm1115, %v1616, 0
      %v1623 = vsel %vm1119, %v1618, 0
      %1625 = vmatprep.subr.bf16.mxu0 0
      %1626 = vmatpush1.bf16.msra.mxu0 0
      %1627 = vmatprep.subr.bf16.mxu0 0
      %1628 = vmatpush1.bf16.msra.mxu0 0
      %1629 = vmatprep.subr.bf16.mxu0 0
      %1630 = vmatpush1.bf16.msra.mxu0 0
      %1631 = vmatprep.subr.bf16.mxu0 0
      %1632 = vmatpush1.bf16.msra.mxu0 0
      %1633 = vmatprep.subr.bf16.mxu0 0
      %1634 = vmatpush1.bf16.msra.mxu0 0
      %1635 = vmatprep.subr.bf16.mxu0 0
      %1636 = vmatpush1.bf16.msra.mxu0 0
      %1637 = vmatprep.subr.bf16.mxu0 0
      %1638 = vmatpush1.bf16.msra.mxu0 0
      %1639 = vmatprep.subr.bf16.mxu0 0
      %1640 = vmatpush1.bf16.msra.mxu0 %v1623
      %1641 = vmatprep.subr.bf16.mxu0 0
      %1642 = vmatpush2.bf16.msra.mxu0 0
      %1643 = vmatprep.subr.bf16.mxu0 0
      %1644 = vmatpush2.bf16.msra.mxu0 0
      %1645 = vmatprep.subr.bf16.mxu0 0
      %1646 = vmatpush2.bf16.msra.mxu0 0
      %1647 = vmatprep.subr.bf16.mxu0 0
      %1648 = vmatpush2.bf16.msra.mxu0 0
      %1649 = vmatprep.subr.bf16.mxu0 0
      %1650 = vmatpush2.bf16.msra.mxu0 0
      %1651 = vmatprep.subr.bf16.mxu0 0
      %1652 = vmatpush2.bf16.msra.mxu0 0
      %1653 = vmatprep.subr.bf16.mxu0 0
      %1654 = vmatpush2.bf16.msra.mxu0 0
      %1655 = vmatprep.subr.bf16.mxu0 0
      %1656 = vmatpush2.bf16.msra.mxu0 0
      %1657 = vmatprep.mubr.bf16.mxu0 0
      %1658 = vmatmul.mubr.bf16.gmra.mxu0 %v1620
      %v1659 = vpop.f32.mrf.mxu0
      %v1660 = vadd.f32 0.0, %v1659
      %v1661 = vpop.f32.mrf.mxu0
      %v1662 = vpop.f32.mrf.mxu0
      %v1663 = vpop.f32.mrf.mxu0
      %1664 = vdwg.mxu0
      %v1665 = vpack.c.bf16 %v1660, %v1660
      %v1670 = vunpack.c.l.b16 %v708
      %v1671 = vunpack.c.l.b16 %v709
      %v1672 = vunpack.c.l.b16 %v710
      %v1673 = vunpack.c.l.b16 %v711
      %v1674 = vpack.c.b16 %v1671, %v1670
      %v1675 = vpack.c.b16 %v1673, %v1672
      %v1679 = vsel %vm1055, %v1665, 0
      %1681 = vmatprep.subr.bf16.mxu0 0
      %1682 = vmatpush1.bf16.msra.mxu0 0
      %1683 = vmatprep.subr.bf16.mxu0 0
      %1684 = vmatpush1.bf16.msra.mxu0 0
      %1685 = vmatprep.subr.bf16.mxu0 0
      %1686 = vmatpush1.bf16.msra.mxu0 0
      %1687 = vmatprep.subr.bf16.mxu0 0
      %1688 = vmatpush1.bf16.msra.mxu0 0
      %1689 = vmatprep.subr.bf16.mxu0 0
      %1690 = vmatpush1.bf16.msra.mxu0 0
      %1691 = vmatprep.subr.bf16.mxu0 0
      %1692 = vmatpush1.bf16.msra.mxu0 0
      %1693 = vmatprep.subr.bf16.mxu0 0
      %1694 = vmatpush1.bf16.msra.mxu0 %v1675
      %1695 = vmatprep.subr.bf16.mxu0 0
      %1696 = vmatpush1.bf16.msra.mxu0 %v1674
      %1697 = vmatprep.subr.bf16.mxu0 0
      %1698 = vmatpush2.bf16.msra.mxu0 0
      %1699 = vmatprep.subr.bf16.mxu0 0
      %1700 = vmatpush2.bf16.msra.mxu0 0
      %1701 = vmatprep.subr.bf16.mxu0 0
      %1702 = vmatpush2.bf16.msra.mxu0 0
      %1703 = vmatprep.subr.bf16.mxu0 0
      %1704 = vmatpush2.bf16.msra.mxu0 0
      %1705 = vmatprep.subr.bf16.mxu0 0
      %1706 = vmatpush2.bf16.msra.mxu0 0
      %1707 = vmatprep.subr.bf16.mxu0 0
      %1708 = vmatpush2.bf16.msra.mxu0 0
      %1709 = vmatprep.subr.bf16.mxu0 0
      %1710 = vmatpush2.bf16.msra.mxu0 0
      %1711 = vmatprep.subr.bf16.mxu0 0
      %1712 = vmatpush2.bf16.msra.mxu0 0
      %1713 = vmatprep.mubr.bf16.mxu0 0
      %1714 = vmatmul.mubr.bf16.gmra.mxu0 %v1679
      %v1715 = vpop.f32.mrf.mxu0
      %v1716 = vadd.f32 0.0, %v1715
      %v1717 = vpop.f32.mrf.mxu0
      %v1718 = vpop.f32.mrf.mxu0
      %v1719 = vpop.f32.mrf.mxu0
      %1720 = vdwg.mxu0
      %v1721 = vadd.f32 %v1554, %v1716
      %v1722 = vadd.f32 %v643, %v1721
      %v1724 = vlaneseq
      %v1725 = vshrl.u32 %v1724, 7
      %v1726 = vsub.s32 0, %v1725
      %v1727 = vrot.slane %v712, %v1726
      %v1729 = vadd.f32 %v1722, %v1727
      %vm1730 = vcmask 1045504
      %v1731 = vsel %vm1730, %v1729, 0.0
      %1732 = vadd.xlane.f32.xlu0 %v1731
      %v1733 = vpop.xlane.xlu0 %1732
      %v1734 = vrcp.pop 128.0
      %v1735 = vmul.f32 %v1733, %v1734
      %v1736 = vsub.f32 %v1729, %v1735
      %v1737 = vmul.f32 %v1736, %v1736
      %v1738 = vsel %vm1730, %v1737, 0.0
      %1739 = vadd.xlane.f32.xlu0 %v1738
      %v1740 = vpop.xlane.xlu0 %1739
      %v1741 = vmul.f32 %v1740, %v1734
      %v1742 = vadd.f32 %v1741, 1e-05
      %v1743 = vrsqrt.pop %v1742
      %v1744 = vmul.f32 %v1736, %v1743
      %v1746 = vlaneseq
      %v1747 = vshrl.u32 %v1746, 7
      %v1748 = vsub.s32 0, %v1747
      %v1749 = vrot.slane %v713, %v1748
      %v1751 = vmul.f32 %v1744, %v1749
      %v1753 = vlaneseq
      %v1754 = vshrl.u32 %v1753, 7
      %v1755 = vsub.s32 0, %v1754
      %v1756 = vrot.slane %v714, %v1755
      %v1758 = vadd.f32 %v1751, %v1756
      %v1759 = vpack.c.bf16 %v1758, %v1758
      %v1761 = vlaneseq
      %v1762 = vshrl.u32 %v1761, 7
      %v1763 = vsub.s32 0, %v1762
      %v1764 = vrot.slane %v731, %v1763
      %v1765 = vlaneseq
      %v1766 = vshrl.u32 %v1765, 7
      %v1767 = vsub.s32 1, %v1766
      %v1768 = vrot.slane %v731, %v1767
      %v1787 = vunpack.c.l.b16 %v715
      %v1788 = vunpack.c.h.b16 %v715
      %v1789 = vunpack.c.l.b16 %v716
      %v1790 = vunpack.c.h.b16 %v716
      %v1791 = vunpack.c.l.b16 %v717
      %v1792 = vunpack.c.h.b16 %v717
      %v1793 = vunpack.c.l.b16 %v718
      %v1794 = vunpack.c.h.b16 %v718
      %v1795 = vunpack.c.l.b16 %v719
      %v1796 = vunpack.c.h.b16 %v719
      %v1797 = vunpack.c.l.b16 %v720
      %v1798 = vunpack.c.h.b16 %v720
      %v1799 = vunpack.c.l.b16 %v721
      %v1800 = vunpack.c.h.b16 %v721
      %v1801 = vunpack.c.l.b16 %v722
      %v1802 = vunpack.c.h.b16 %v722
      %v1803 = vunpack.c.l.b16 %v723
      %v1804 = vunpack.c.h.b16 %v723
      %v1805 = vunpack.c.l.b16 %v724
      %v1806 = vunpack.c.h.b16 %v724
      %v1807 = vunpack.c.l.b16 %v725
      %v1808 = vunpack.c.h.b16 %v725
      %v1809 = vunpack.c.l.b16 %v726
      %v1810 = vunpack.c.h.b16 %v726
      %v1811 = vunpack.c.l.b16 %v727
      %v1812 = vunpack.c.h.b16 %v727
      %v1813 = vunpack.c.l.b16 %v728
      %v1814 = vunpack.c.h.b16 %v728
      %v1815 = vunpack.c.l.b16 %v729
      %v1816 = vunpack.c.h.b16 %v729
      %v1817 = vunpack.c.l.b16 %v730
      %v1818 = vunpack.c.h.b16 %v730
      %v1819 = vpack.c.b16 %v1789, %v1787
      %v1820 = vpack.c.b16 %v1790, %v1788
      %v1821 = vpack.c.b16 %v1793, %v1791
      %v1822 = vpack.c.b16 %v1794, %v1792
      %v1823 = vpack.c.b16 %v1797, %v1795
      %v1824 = vpack.c.b16 %v1798, %v1796
      %v1825 = vpack.c.b16 %v1801, %v1799
      %v1826 = vpack.c.b16 %v1802, %v1800
      %v1827 = vpack.c.b16 %v1805, %v1803
      %v1828 = vpack.c.b16 %v1806, %v1804
      %v1829 = vpack.c.b16 %v1809, %v1807
      %v1830 = vpack.c.b16 %v1810, %v1808
      %v1831 = vpack.c.b16 %v1813, %v1811
      %v1832 = vpack.c.b16 %v1814, %v1812
      %v1833 = vpack.c.b16 %v1817, %v1815
      %v1834 = vpack.c.b16 %v1818, %v1816
      %1851 = vmatprep.subr.bf16.mxu0 %v1834
      %1852 = vmatpush1.bf16.msra.mxu0 %v1833
      %1853 = vmatprep.subr.bf16.mxu0 %v1832
      %1854 = vmatpush1.bf16.msra.mxu0 %v1831
      %1855 = vmatprep.subr.bf16.mxu0 %v1830
      %1856 = vmatpush1.bf16.msra.mxu0 %v1829
      %1857 = vmatprep.subr.bf16.mxu0 %v1828
      %1858 = vmatpush1.bf16.msra.mxu0 %v1827
      %1859 = vmatprep.subr.bf16.mxu0 %v1826
      %1860 = vmatpush1.bf16.msra.mxu0 %v1825
      %1861 = vmatprep.subr.bf16.mxu0 %v1824
      %1862 = vmatpush1.bf16.msra.mxu0 %v1823
      %1863 = vmatprep.subr.bf16.mxu0 %v1822
      %1864 = vmatpush1.bf16.msra.mxu0 %v1821
      %1865 = vmatprep.subr.bf16.mxu0 %v1820
      %1866 = vmatpush1.bf16.msra.mxu0 %v1819
      %1867 = vmatprep.subr.bf16.mxu0 0
      %1868 = vmatpush2.bf16.msra.mxu0 0
      %1869 = vmatprep.subr.bf16.mxu0 0
      %1870 = vmatpush2.bf16.msra.mxu0 0
      %1871 = vmatprep.subr.bf16.mxu0 0
      %1872 = vmatpush2.bf16.msra.mxu0 0
      %1873 = vmatprep.subr.bf16.mxu0 0
      %1874 = vmatpush2.bf16.msra.mxu0 0
      %1875 = vmatprep.subr.bf16.mxu0 0
      %1876 = vmatpush2.bf16.msra.mxu0 0
      %1877 = vmatprep.subr.bf16.mxu0 0
      %1878 = vmatpush2.bf16.msra.mxu0 0
      %1879 = vmatprep.subr.bf16.mxu0 0
      %1880 = vmatpush2.bf16.msra.mxu0 0
      %1881 = vmatprep.subr.bf16.mxu0 0
      %1882 = vmatpush2.bf16.msra.mxu0 0
      %1883 = vmatprep.mubr.bf16.mxu0 0
      %1884 = vmatmul.mubr.bf16.gmra.mxu0 %v1759
      %v1885 = vpop.f32.mrf.mxu0
      %v1886 = vadd.f32 %v1764, %v1885
      %v1887 = vpop.f32.mrf.mxu0
      %v1888 = vadd.f32 %v1768, %v1887
      %v1889 = vpop.f32.mrf.mxu0
      %v1890 = vpop.f32.mrf.mxu0
      %1891 = vdwg.mxu0
      %v1892 = vmax.f32 %v1886, 0.0
      %v1893 = vmax.f32 %v1888, 0.0
      %v1894 = vpack.c.bf16 %v1892, %v1892
      %v1895 = vpack.c.bf16 %v1893, %v1893
      %v1897 = vlaneseq
      %v1898 = vshrl.u32 %v1897, 7
      %v1899 = vsub.s32 0, %v1898
      %v1900 = vrot.slane %v764, %v1899
      %v1934 = vunpack.c.l.b16 %v732
      %v1935 = vunpack.c.l.b16 %v733
      %v1936 = vunpack.c.l.b16 %v734
      %v1937 = vunpack.c.l.b16 %v735
      %v1938 = vunpack.c.l.b16 %v736
      %v1939 = vunpack.c.l.b16 %v737
      %v1940 = vunpack.c.l.b16 %v738
      %v1941 = vunpack.c.l.b16 %v739
      %v1942 = vunpack.c.l.b16 %v740
      %v1943 = vunpack.c.l.b16 %v741
      %v1944 = vunpack.c.l.b16 %v742
      %v1945 = vunpack.c.l.b16 %v743
      %v1946 = vunpack.c.l.b16 %v744
      %v1947 = vunpack.c.l.b16 %v745
      %v1948 = vunpack.c.l.b16 %v746
      %v1949 = vunpack.c.l.b16 %v747
      %v1950 = vunpack.c.l.b16 %v748
      %v1951 = vunpack.c.l.b16 %v749
      %v1952 = vunpack.c.l.b16 %v750
      %v1953 = vunpack.c.l.b16 %v751
      %v1954 = vunpack.c.l.b16 %v752
      %v1955 = vunpack.c.l.b16 %v753
      %v1956 = vunpack.c.l.b16 %v754
      %v1957 = vunpack.c.l.b16 %v755
      %v1958 = vunpack.c.l.b16 %v756
      %v1959 = vunpack.c.l.b16 %v757
      %v1960 = vunpack.c.l.b16 %v758
      %v1961 = vunpack.c.l.b16 %v759
      %v1962 = vunpack.c.l.b16 %v760
      %v1963 = vunpack.c.l.b16 %v761
      %v1964 = vunpack.c.l.b16 %v762
      %v1965 = vunpack.c.l.b16 %v763
      %v1966 = vpack.c.b16 %v1935, %v1934
      %v1967 = vpack.c.b16 %v1937, %v1936
      %v1968 = vpack.c.b16 %v1939, %v1938
      %v1969 = vpack.c.b16 %v1941, %v1940
      %v1970 = vpack.c.b16 %v1943, %v1942
      %v1971 = vpack.c.b16 %v1945, %v1944
      %v1972 = vpack.c.b16 %v1947, %v1946
      %v1973 = vpack.c.b16 %v1949, %v1948
      %v1974 = vpack.c.b16 %v1951, %v1950
      %v1975 = vpack.c.b16 %v1953, %v1952
      %v1976 = vpack.c.b16 %v1955, %v1954
      %v1977 = vpack.c.b16 %v1957, %v1956
      %v1978 = vpack.c.b16 %v1959, %v1958
      %v1979 = vpack.c.b16 %v1961, %v1960
      %v1980 = vpack.c.b16 %v1963, %v1962
      %v1981 = vpack.c.b16 %v1965, %v1964
      %1998 = vmatprep.subr.bf16.mxu0 0
      %1999 = vmatpush1.bf16.msra.mxu0 %v1973
      %2000 = vmatprep.subr.bf16.mxu0 0
      %2001 = vmatpush1.bf16.msra.mxu0 %v1972
      %2002 = vmatprep.subr.bf16.mxu0 0
      %2003 = vmatpush1.bf16.msra.mxu0 %v1971
      %2004 = vmatprep.subr.bf16.mxu0 0
      %2005 = vmatpush1.bf16.msra.mxu0 %v1970
      %2006 = vmatprep.subr.bf16.mxu0 0
      %2007 = vmatpush1.bf16.msra.mxu0 %v1969
      %2008 = vmatprep.subr.bf16.mxu0 0
      %2009 = vmatpush1.bf16.msra.mxu0 %v1968
      %2010 = vmatprep.subr.bf16.mxu0 0
      %2011 = vmatpush1.bf16.msra.mxu0 %v1967
      %2012 = vmatprep.subr.bf16.mxu0 0
      %2013 = vmatpush1.bf16.msra.mxu0 %v1966
      %2014 = vmatprep.subr.bf16.mxu0 0
      %2015 = vmatpush2.bf16.msra.mxu0 %v1981
      %2016 = vmatprep.subr.bf16.mxu0 0
      %2017 = vmatpush2.bf16.msra.mxu0 %v1980
      %2018 = vmatprep.subr.bf16.mxu0 0
      %2019 = vmatpush2.bf16.msra.mxu0 %v1979
      %2020 = vmatprep.subr.bf16.mxu0 0
      %2021 = vmatpush2.bf16.msra.mxu0 %v1978
      %2022 = vmatprep.subr.bf16.mxu0 0
      %2023 = vmatpush2.bf16.msra.mxu0 %v1977
      %2024 = vmatprep.subr.bf16.mxu0 0
      %2025 = vmatpush2.bf16.msra.mxu0 %v1976
      %2026 = vmatprep.subr.bf16.mxu0 0
      %2027 = vmatpush2.bf16.msra.mxu0 %v1975
      %2028 = vmatprep.subr.bf16.mxu0 0
      %2029 = vmatpush2.bf16.msra.mxu0 %v1974
      %2030 = vmatprep.mubr.bf16.mxu0 %v1895
      %2031 = vmatmul.mubr.bf16.gmra.mxu0 %v1894
      %v2032 = vpop.f32.mrf.mxu0
      %v2033 = vadd.f32 %v1900, %v2032
      %v2034 = vpop.f32.mrf.mxu0
      %v2035 = vpop.f32.mrf.mxu0
      %v2036 = vpop.f32.mrf.mxu0
      %2037 = vdwg.mxu0
      %v2038 = vadd.f32 %v1758, %v2033
      %v2039 = vsel %vm1730, %v2038, 0.0
      %2040 = vadd.xlane.f32.xlu0 %v2039
      %v2041 = vpop.xlane.xlu0 %2040
      %v2042 = vmul.f32 %v2041, %v1734
      %v2043 = vsub.f32 %v2038, %v2042
      %v2044 = vmul.f32 %v2043, %v2043
      %v2045 = vsel %vm1730, %v2044, 0.0
      %2046 = vadd.xlane.f32.xlu0 %v2045
      %v2047 = vpop.xlane.xlu0 %2046
      %v2048 = vmul.f32 %v2047, %v1734
      %v2049 = vadd.f32 %v2048, 1e-05
      %v2050 = vrsqrt.pop %v2049
      %v2051 = vmul.f32 %v2043, %v2050
      %v2053 = vlaneseq
      %v2054 = vshrl.u32 %v2053, 7
      %v2055 = vsub.s32 0, %v2054
      %v2056 = vrot.slane %v765, %v2055
      %v2058 = vmul.f32 %v2051, %v2056
      %v2060 = vlaneseq
      %v2061 = vshrl.u32 %v2060, 7
      %v2062 = vsub.s32 0, %v2061
      %v2063 = vrot.slane %v766, %v2062
      %v2065 = vadd.f32 %v2058, %v2063
      %v2066 = vpack.c.bf16 %v2065, %v2065
      %v2067 = vld [vmem:[%s18] sm:$0xf]
      %v2068 = vld [vmem:[%s18 + $0x4] sm:$0xf]
      %v2069 = vld [vmem:[%s18 + $0x8] sm:$0xf]
      %v2070 = vld [vmem:[%s18 + $0xc] sm:$0xf]
      %v2071 = vld [vmem:[%s18 + $0x10] sm:$0xf]
      %v2072 = vld [vmem:[%s18 + $0x14] sm:$0xf]
      %v2073 = vld [vmem:[%s18 + $0x18] sm:$0xf]
      %v2074 = vld [vmem:[%s18 + $0x1c] sm:$0xf]
      %v2075 = vld [vmem:[%s18 + $0x20] sm:$0xf]
      %v2076 = vld [vmem:[%s18 + $0x24] sm:$0xf]
      %v2077 = vld [vmem:[%s18 + $0x28] sm:$0xf]
      %v2078 = vld [vmem:[%s18 + $0x2c] sm:$0xf]
      %v2079 = vld [vmem:[%s18 + $0x30] sm:$0xf]
      %v2080 = vld [vmem:[%s18 + $0x34] sm:$0xf]
      %v2081 = vld [vmem:[%s18 + $0x38] sm:$0xf]
      %v2082 = vld [vmem:[%s18 + $0x3c] sm:$0xf]
      %v2083 = vld [vmem:[%s19] sm:$0x1]
      %v2085 = vlaneseq
      %v2086 = vshrl.u32 %v2085, 7
      %v2087 = vsub.s32 0, %v2086
      %v2088 = vrot.slane %v2083, %v2087
      %v2106 = vunpack.c.l.b16 %v2067
      %v2107 = vunpack.c.l.b16 %v2068
      %v2108 = vunpack.c.l.b16 %v2069
      %v2109 = vunpack.c.l.b16 %v2070
      %v2110 = vunpack.c.l.b16 %v2071
      %v2111 = vunpack.c.l.b16 %v2072
      %v2112 = vunpack.c.l.b16 %v2073
      %v2113 = vunpack.c.l.b16 %v2074
      %v2114 = vunpack.c.l.b16 %v2075
      %v2115 = vunpack.c.l.b16 %v2076
      %v2116 = vunpack.c.l.b16 %v2077
      %v2117 = vunpack.c.l.b16 %v2078
      %v2118 = vunpack.c.l.b16 %v2079
      %v2119 = vunpack.c.l.b16 %v2080
      %v2120 = vunpack.c.l.b16 %v2081
      %v2121 = vunpack.c.l.b16 %v2082
      %v2122 = vpack.c.b16 %v2107, %v2106
      %v2123 = vpack.c.b16 %v2109, %v2108
      %v2124 = vpack.c.b16 %v2111, %v2110
      %v2125 = vpack.c.b16 %v2113, %v2112
      %v2126 = vpack.c.b16 %v2115, %v2114
      %v2127 = vpack.c.b16 %v2117, %v2116
      %v2128 = vpack.c.b16 %v2119, %v2118
      %v2129 = vpack.c.b16 %v2121, %v2120
      %2138 = vmatprep.subr.bf16.mxu0 0
      %2139 = vmatpush1.bf16.msra.mxu0 %v2129
      %2140 = vmatprep.subr.bf16.mxu0 0
      %2141 = vmatpush1.bf16.msra.mxu0 %v2128
      %2142 = vmatprep.subr.bf16.mxu0 0
      %2143 = vmatpush1.bf16.msra.mxu0 %v2127
      %2144 = vmatprep.subr.bf16.mxu0 0
      %2145 = vmatpush1.bf16.msra.mxu0 %v2126
      %2146 = vmatprep.subr.bf16.mxu0 0
      %2147 = vmatpush1.bf16.msra.mxu0 %v2125
      %2148 = vmatprep.subr.bf16.mxu0 0
      %2149 = vmatpush1.bf16.msra.mxu0 %v2124
      %2150 = vmatprep.subr.bf16.mxu0 0
      %2151 = vmatpush1.bf16.msra.mxu0 %v2123
      %2152 = vmatprep.subr.bf16.mxu0 0
      %2153 = vmatpush1.bf16.msra.mxu0 %v2122
      %2154 = vmatprep.subr.bf16.mxu0 0
      %2155 = vmatpush2.bf16.msra.mxu0 0
      %2156 = vmatprep.subr.bf16.mxu0 0
      %2157 = vmatpush2.bf16.msra.mxu0 0
      %2158 = vmatprep.subr.bf16.mxu0 0
      %2159 = vmatpush2.bf16.msra.mxu0 0
      %2160 = vmatprep.subr.bf16.mxu0 0
      %2161 = vmatpush2.bf16.msra.mxu0 0
      %2162 = vmatprep.subr.bf16.mxu0 0
      %2163 = vmatpush2.bf16.msra.mxu0 0
      %2164 = vmatprep.subr.bf16.mxu0 0
      %2165 = vmatpush2.bf16.msra.mxu0 0
      %2166 = vmatprep.subr.bf16.mxu0 0
      %2167 = vmatpush2.bf16.msra.mxu0 0
      %2168 = vmatprep.subr.bf16.mxu0 0
      %2169 = vmatpush2.bf16.msra.mxu0 0
      %2170 = vmatprep.mubr.bf16.mxu0 0
      %2171 = vmatmul.mubr.bf16.gmra.mxu0 %v2066
      %v2172 = vpop.f32.mrf.mxu0
      %v2173 = vadd.f32 %v2088, %v2172
      %v2174 = vpop.f32.mrf.mxu0
      %v2175 = vpop.f32.mrf.mxu0
      %v2176 = vpop.f32.mrf.mxu0
      %2177 = vdwg.mxu0
      %vm2178 = vcmask 29696
      %2179 = vst.msk [vmem:[%s641] sm:$0x3f] %vm2178, %v2173
      %p2180 = scmp.lt.s32.totalorder %s31, 1
      %s2181 = scalar_select %p2180, %s31, 1
      %s2182 = smul.addr %s2181, 8
      %s2183 = scalar_lea.vmem %s20, %s2182
      // Predicated region
      $region101: #{transformer_decoder_forward.3} parent=99 // pred_check
        %p2184 = pneg %p479
      $region102: #{transformer_decoder_forward.3} parent=99 // pred_check_branch
        %2186 = sbr.rel (%p2184) target = $region104
      $region103: #{transformer_decoder_forward.3} parent=99 // pred_region
        _
      $region104: #{transformer_decoder_forward.3} parent=99 // pred_fallthru
        _
    $region100: #{transformer_decoder_forward.3} parent=5 // pred_fallthru
      _
    %p2187 = scmp.le.s32.totalorder 2, %s26
    // Predicated region
    $region105: #{transformer_decoder_forward.3} parent=5 // pred_check
      %p2188 = pneg %p2187
    $region106: #{transformer_decoder_forward.3} parent=5 // pred_check_branch
      %2190 = sbr.rel (%p2188) target = $region108
    $region107: #{transformer_decoder_forward.3} parent=5 // pred_region
      %s2191 = ssub.s32 %s26, 2
      // Predicated region
      $region109: #{transformer_decoder_forward.3} parent=107 // pred_check
        %p2192 = pneg %p485
      $region110: #{transformer_decoder_forward.3} parent=107 // pred_check_branch
        %2194 = sbr.rel (%p2192) target = $region112
      $region111: #{transformer_decoder_forward.3} parent=107 // pred_region
        %p2195 = scmp.lt.s32.totalorder %s32, 1
        %s2196 = scalar_select %p2195, %s32, 1
        %s2197 = smul.addr %s2196, 8
        %s2198 = scalar_lea.vmem %s20, %s2197
      $region112: #{transformer_decoder_forward.3} parent=107 // pred_fallthru
        _
    $region108: #{transformer_decoder_forward.3} parent=5 // pred_fallthru
      _
  $region6: #{transformer_decoder_forward.3} parent=0 // loop_footer
    %s30 = sadd.s32 1, %s26
  $region7: #{transformer_decoder_forward.3} parent=0 // loop_footer_branch
    %25 = sbr.rel target = $region3
  $region8: #{transformer_decoder_forward.3} parent=0 // loop_exit
    _

</llo_original>
